<compile_context>
chip_gen: v7x
topology: tpu7x:2x2x1
jax: 0.10.0
libtpu: 0.0.40
codegen_flags: <defaults>
</compile_context>

<pallas_src>
import functools

import jax
import jax.numpy as jnp
from jax.experimental import pallas as pl
from jax.experimental.pallas import tpu as pltpu

LANE = 128
# (in_channels, num_anchors) for heads 1..6, as in the PyTorch module.
HEAD_CFG = [(512, 4), (1024, 6), (512, 6), (256, 6), (256, 4), (256, 4)]


# ----------------------------------------------------------------------------
# Kernel: fused box+class 3x3 SAME conv for one batch block of one head
# ----------------------------------------------------------------------------

def _fused_head_kernel(x_ref, w_ref, b_ref, o_ref, *, NB, H, W, Cin, Cout):
    """x_ref : (NB, H, W, Cin)   activations (f32; cast to bf16 in-kernel)
       w_ref : (9*Cin, Cout)     fused box+cls taps, bf16, Cout padded to 128
       b_ref : (1, Cout)         fused bias, f32
       o_ref : (NB, H*W, Cout)   NHWC output flattened over spatial dims
    """
    # bf16 activations for the MXU; build the 1-pixel SAME border directly in
    # VMEM via value-level concatenation with zeros (no padded HBM copy).
    xb = x_ref[...].astype(jnp.bfloat16)                        # (NB, H, W, Cin)
    zw = jnp.zeros((NB, H, 1, Cin), jnp.bfloat16)
    xb = jnp.concatenate([zw, xb, zw], axis=2)                  # (NB, H, W+2, Cin)
    zh = jnp.zeros((NB, 1, W + 2, Cin), jnp.bfloat16)
    xb = jnp.concatenate([zh, xb, zh], axis=1)                  # (NB, H+2, W+2, Cin)

    M = NB * H * W
    # im2col: the 9 shifted taps side by side -> one big-K MXU matmul.
    cols = []
    for dy in range(3):
        for dx in range(3):
            cols.append(xb[:, dy:dy + H, dx:dx + W, :].reshape(M, Cin))
    patches = jnp.concatenate(cols, axis=1)                     # (M, 9*Cin)

    acc = jnp.dot(patches, w_ref[...], preferred_element_type=jnp.float32)
    acc = acc + b_ref[...].astype(jnp.float32)                  # single VPU pass
    o_ref[...] = acc.reshape(NB, H * W, Cout).astype(o_ref.dtype)


def _batch_block(n):
    # Keep a >=2-way "parallel" grid axis when N > 1 (v7x has 2 TensorCores),
    # folding the remaining batch rows into the matmul M dimension.
    if n > 1 and n % 2 == 0:
        return n // 2
    return 1


def fused_head_conv(x_nhwc, w_fused, b_fused):
    """x: (N,H,W,Cin) f32, w: (9*Cin,Cout) bf16, b: (1,Cout) f32 -> (N,H*W,Cout)."""
    N, H, W, Cin = x_nhwc.shape
    Cout = w_fused.shape[-1]
    NB = _batch_block(N)
    kernel = functools.partial(_fused_head_kernel,
                               NB=NB, H=H, W=W, Cin=Cin, Cout=Cout)
    return pl.pallas_call(
        kernel,
        out_shape=jax.ShapeDtypeStruct((N, H * W, Cout), jnp.float32),
        grid_spec=pltpu.PrefetchScalarGridSpec(
            num_scalar_prefetch=0,
            grid=(N // NB,),
            in_specs=[
                pl.BlockSpec((NB, H, W, Cin), lambda n: (n, 0, 0, 0)),
                pl.BlockSpec((9 * Cin, Cout), lambda n: (0, 0)),
                pl.BlockSpec((1, Cout), lambda n: (0, 0)),
            ],
            out_specs=pl.BlockSpec((NB, H * W, Cout), lambda n: (n, 0, 0)),
        ),
        compiler_params=pltpu.CompilerParams(
            dimension_semantics=("parallel",),
            # Headroom for real SSD spatial sizes after batch folding; still
            # below physical VMEM on all generations (v7x: 64 MiB per TC).
            vmem_limit_bytes=48 * 1024 * 1024,
        ),
    )(x_nhwc, w_fused, b_fused)


# ----------------------------------------------------------------------------
# Module params (synthetic, deterministic) and forward pass
# ----------------------------------------------------------------------------

def init_params(classes, key):
    """Per head: fused bf16 weights (9*Cin, Cout_pad128) + f32 bias, plus the
    separate f32 weights kept only for the pure-JAX reference check."""
    params = []
    for cin, anchors in HEAD_CFG:
        cout_box = anchors * 4
        cout_cls = anchors * classes
        key, kwb, kbb, kwc, kbc = jax.random.split(key, 5)
        bound = float(1.0 / (9 * cin) ** 0.5)
        w_box = jax.random.uniform(kwb, (3, 3, cin, cout_box), jnp.float32, -bound, bound)
        b_box = jax.random.uniform(kbb, (cout_box,), jnp.float32, -bound, bound)
        w_cls = jax.random.uniform(kwc, (3, 3, cin, cout_cls), jnp.float32, -bound, bound)
        b_cls = jax.random.uniform(kbc, (cout_cls,), jnp.float32, -bound, bound)

        cout_f = cout_box + cout_cls
        cout_pad = ((cout_f + LANE - 1) // LANE) * LANE
        w_f = jnp.concatenate([w_box, w_cls], axis=-1)                    # (3,3,Cin,cf)
        w_f = jnp.pad(w_f, ((0, 0), (0, 0), (0, 0), (0, cout_pad - cout_f)))
        # (dy, dx, cin) row-major -> matches the im2col column order in-kernel.
        w_f = w_f.reshape(9 * cin, cout_pad).astype(jnp.bfloat16)
        b_f = jnp.concatenate([b_box, b_cls])
        b_f = jnp.pad(b_f, (0, cout_pad - cout_f)).reshape(1, cout_pad).astype(jnp.float32)

        params.append(dict(
            anchors=anchors, cout_box=cout_box, cout_cls=cout_cls,
            w_fused=w_f, b_fused=b_f,
            w_box=w_box, b_box=b_box, w_cls=w_cls, b_cls=b_cls))
    return params


def predection_forward(heads_nhwc, params, classes):
    """heads_nhwc: list of 6 NHWC arrays. Returns (boxes, classess)."""
    boxes, clss = [], []
    for x, p in zip(heads_nhwc, params):
        N, H, W, _ = x.shape
        A = p["anchors"]
        out = fused_head_conv(x, p["w_fused"], p["b_fused"])   # (N, H*W, cout_pad)
        box = out[:, :, :p["cout_box"]]
        cls = out[:, :, p["cout_box"]:p["cout_box"] + p["cout_cls"]]
        boxes.append(box.reshape(N, H * W * A, 4))
        clss.append(cls.reshape(N, H * W * A, classes))
    return jnp.concatenate(boxes, axis=1), jnp.concatenate(clss, axis=1)


# ----------------------------------------------------------------------------
# Pure-JAX reference (f32 conv) for the correctness check
# ----------------------------------------------------------------------------

def _ref_conv3x3(x_nhwc, w_hwio, bias):
    y = jax.lax.conv_general_dilated(
        x_nhwc, w_hwio, window_strides=(1, 1), padding="SAME",
        dimension_numbers=("NHWC", "HWIO", "NHWC"))
    N, H, W, _ = x_nhwc.shape
    return (y + bias).reshape(N, H * W, w_hwio.shape[-1])


def reference_forward(heads_nhwc, params, classes):
    boxes, clss = [], []
    for x, p in zip(heads_nhwc, params):
        N, H, W, _ = x.shape
        A = p["anchors"]
        boxes.append(_ref_conv3x3(x, p["w_box"], p["b_box"]).reshape(N, H * W * A, 4))
        clss.append(_ref_conv3x3(x, p["w_cls"], p["b_cls"]).reshape(N, H * W * A, classes))
    return jnp.concatenate(boxes, axis=1), jnp.concatenate(clss, axis=1)


if __name__ == "__main__":
    classes = 3
    batch = 2
    # Small spatial pyramid (channel counts fixed by the module definition).
    spatial = [8, 4, 4, 2, 2, 1]

    key = jax.random.PRNGKey(0)
    key, pkey = jax.random.split(key)
    params = init_params(classes, pkey)

    heads = []
    for (cin, _), s in zip(HEAD_CFG, spatial):
        key, hk = jax.random.split(key)
        heads.append(jax.random.normal(hk, (batch, s, s, cin), jnp.float32))

    boxes, classess = predection_forward(heads, params, classes)
    boxes = jax.block_until_ready(boxes)
    classess = jax.block_until_ready(classess)

    # Sanity check against the pure-JAX f32 reference conv.
    # (bf16 MXU inputs with f32 accumulation -> tolerance loosened vs f32.)
    boxes_ref, classess_ref = reference_forward(heads, params, classes)
    assert boxes.shape == boxes_ref.shape and classess.shape == classess_ref.shape
    assert jnp.allclose(boxes, boxes_ref, atol=3e-2, rtol=3e-2)
    assert jnp.allclose(classess, classess_ref, atol=3e-2, rtol=3e-2)

    print("KERNEL_OK")
</pallas_src>

<mosaic_0001>
module attributes {stable_mosaic.version = 11 : i64} {
  func.func @_fused_head_kernel(%arg0: i32, %arg1: memref<1x8x8x512xf32, #tpu.memory_space<vmem>>, %arg2: memref<4608x128xbf16, #tpu.memory_space<vmem>>, %arg3: memref<1x128xf32, #tpu.memory_space<vmem>>, %arg4: memref<1x64x128xf32, #tpu.memory_space<vmem>>) attributes {dimension_semantics = [#tpu.dimension_semantics<parallel>], iteration_bounds = array<i64: 2>, scalar_prefetch = 0 : i64, scratch_operands = 0 : i64, tpu.core_type = #tpu.core_type<tc>, window_params = [{transform_indices = @transform_0, window_bounds = array<i64: 1, 8, 8, 512>}, {pipeline_mode = #tpu.pipeline_mode<synchronous>, transform_indices = @transform_1, window_bounds = array<i64: 4608, 128>}, {pipeline_mode = #tpu.pipeline_mode<synchronous>, transform_indices = @transform_2, window_bounds = array<i64: 1, 128>}, {transform_indices = @transform_3, window_bounds = array<i64: 1, 64, 128>}]} {
    %c0 = arith.constant 0 : index
    %c0_0 = arith.constant 0 : index
    %c0_1 = arith.constant 0 : index
    %c0_2 = arith.constant 0 : index
    %0 = vector.load %arg1[%c0, %c0_0, %c0_1, %c0_2] : memref<1x8x8x512xf32, #tpu.memory_space<vmem>>, vector<1x8x8x512xf32>
    %1 = arith.truncf %0 : vector<1x8x8x512xf32> to vector<1x8x8x512xbf16>
    %cst = arith.constant 0.000000e+00 : bf16
    %2 = vector.broadcast %cst : bf16 to vector<1x8x1x512xbf16>
    %3 = tpu.concatenate %2, %1, %2 in 2 : vector<1x8x1x512xbf16>, vector<1x8x8x512xbf16>, vector<1x8x1x512xbf16> -> vector<1x8x10x512xbf16>
    %cst_3 = arith.constant 0.000000e+00 : bf16
    %4 = vector.broadcast %cst_3 : bf16 to vector<1x1x10x512xbf16>
    %5 = tpu.concatenate %4, %3, %4 in 1 : vector<1x1x10x512xbf16>, vector<1x8x10x512xbf16>, vector<1x1x10x512xbf16> -> vector<1x10x10x512xbf16>
    %6 = vector.extract_strided_slice %5 {offsets = [0, 0, 0, 0], sizes = [1, 8, 8, 512], strides = [1, 1, 1, 1]} : vector<1x10x10x512xbf16> to vector<1x8x8x512xbf16>
    %7 = vector.shape_cast %6 : vector<1x8x8x512xbf16> to vector<64x512xbf16>
    %8 = vector.extract_strided_slice %5 {offsets = [0, 0, 1, 0], sizes = [1, 8, 8, 512], strides = [1, 1, 1, 1]} : vector<1x10x10x512xbf16> to vector<1x8x8x512xbf16>
    %9 = vector.shape_cast %8 : vector<1x8x8x512xbf16> to vector<64x512xbf16>
    %10 = vector.extract_strided_slice %5 {offsets = [0, 0, 2, 0], sizes = [1, 8, 8, 512], strides = [1, 1, 1, 1]} : vector<1x10x10x512xbf16> to vector<1x8x8x512xbf16>
    %11 = vector.shape_cast %10 : vector<1x8x8x512xbf16> to vector<64x512xbf16>
    %12 = vector.extract_strided_slice %5 {offsets = [0, 1, 0, 0], sizes = [1, 8, 8, 512], strides = [1, 1, 1, 1]} : vector<1x10x10x512xbf16> to vector<1x8x8x512xbf16>
    %13 = vector.shape_cast %12 : vector<1x8x8x512xbf16> to vector<64x512xbf16>
    %14 = vector.extract_strided_slice %5 {offsets = [0, 1, 1, 0], sizes = [1, 8, 8, 512], strides = [1, 1, 1, 1]} : vector<1x10x10x512xbf16> to vector<1x8x8x512xbf16>
    %15 = vector.shape_cast %14 : vector<1x8x8x512xbf16> to vector<64x512xbf16>
    %16 = vector.extract_strided_slice %5 {offsets = [0, 1, 2, 0], sizes = [1, 8, 8, 512], strides = [1, 1, 1, 1]} : vector<1x10x10x512xbf16> to vector<1x8x8x512xbf16>
    %17 = vector.shape_cast %16 : vector<1x8x8x512xbf16> to vector<64x512xbf16>
    %18 = vector.extract_strided_slice %5 {offsets = [0, 2, 0, 0], sizes = [1, 8, 8, 512], strides = [1, 1, 1, 1]} : vector<1x10x10x512xbf16> to vector<1x8x8x512xbf16>
    %19 = vector.shape_cast %18 : vector<1x8x8x512xbf16> to vector<64x512xbf16>
    %20 = vector.extract_strided_slice %5 {offsets = [0, 2, 1, 0], sizes = [1, 8, 8, 512], strides = [1, 1, 1, 1]} : vector<1x10x10x512xbf16> to vector<1x8x8x512xbf16>
    %21 = vector.shape_cast %20 : vector<1x8x8x512xbf16> to vector<64x512xbf16>
    %22 = vector.extract_strided_slice %5 {offsets = [0, 2, 2, 0], sizes = [1, 8, 8, 512], strides = [1, 1, 1, 1]} : vector<1x10x10x512xbf16> to vector<1x8x8x512xbf16>
    %23 = vector.shape_cast %22 : vector<1x8x8x512xbf16> to vector<64x512xbf16>
    %24 = tpu.concatenate %7, %9, %11, %13, %15, %17, %19, %21, %23 in 1 : vector<64x512xbf16>, vector<64x512xbf16>, vector<64x512xbf16>, vector<64x512xbf16>, vector<64x512xbf16>, vector<64x512xbf16>, vector<64x512xbf16>, vector<64x512xbf16>, vector<64x512xbf16> -> vector<64x4608xbf16>
    %c0_4 = arith.constant 0 : index
    %c0_5 = arith.constant 0 : index
    %25 = vector.load %arg2[%c0_4, %c0_5] : memref<4608x128xbf16, #tpu.memory_space<vmem>>, vector<4608x128xbf16>
    %cst_6 = arith.constant dense<0.000000e+00> : vector<64x128xf32>
    %26 = tpu.matmul %24, %25, %cst_6 {dimension_numbers = #tpu.dot_dimension_numbers<[1], [0], [0], [1], [0, 0, 1, 1], [], []>} : vector<64x4608xbf16>, vector<4608x128xbf16>, vector<64x128xf32> -> vector<64x128xf32>
    %c0_7 = arith.constant 0 : index
    %c0_8 = arith.constant 0 : index
    %27 = vector.load %arg3[%c0_7, %c0_8] : memref<1x128xf32, #tpu.memory_space<vmem>>, vector<1x128xf32>
    %28 = vector.broadcast %27 : vector<1x128xf32> to vector<64x128xf32>
    %29 = arith.addf %26, %28 : vector<64x128xf32>
    %30 = vector.shape_cast %29 : vector<64x128xf32> to vector<1x64x128xf32>
    %c0_9 = arith.constant 0 : index
    %c0_10 = arith.constant 0 : index
    %c0_11 = arith.constant 0 : index
    %31 = vector.load %arg4[%c0_9, %c0_10, %c0_11] : memref<1x64x128xf32, #tpu.memory_space<vmem>>, vector<1x64x128xf32>
    tpu.vector_store %arg4[%c0_9, %c0_10, %c0_11], %30 {strides = array<i32>} : memref<1x64x128xf32, #tpu.memory_space<vmem>>, vector<1x64x128xf32>,
    return
  }
  func.func @transform_0(%arg0: i32) -> (i32, i32, i32, i32) {
    %c0_i32 = arith.constant 0 : i32
    %c0_i32_0 = arith.constant 0 : i32
    %c0_i32_1 = arith.constant 0 : i32
    %c0_i32_2 = arith.constant 0 : i32
    return %arg0, %c0_i32, %c0_i32_0, %c0_i32_1 : i32, i32, i32, i32
  }
  func.func @transform_1(%arg0: i32) -> (i32, i32) {
    %c0_i32 = arith.constant 0 : i32
    %c0_i32_0 = arith.constant 0 : i32
    %c0_i32_1 = arith.constant 0 : i32
    return %c0_i32, %c0_i32_0 : i32, i32
  }
  func.func @transform_2(%arg0: i32) -> (i32, i32) {
    %c0_i32 = arith.constant 0 : i32
    %c0_i32_0 = arith.constant 0 : i32
    %c0_i32_1 = arith.constant 0 : i32
    return %c0_i32, %c0_i32_0 : i32, i32
  }
  func.func @transform_3(%arg0: i32) -> (i32, i32, i32) {
    %c0_i32 = arith.constant 0 : i32
    %c0_i32_0 = arith.constant 0 : i32
    %c0_i32_1 = arith.constant 0 : i32
    return %arg0, %c0_i32, %c0_i32_0 : i32, i32, i32
  }
}

</mosaic_0001>

<llo_original>
// kernel: tpu_custom_call.1
$region0: #{tpu_custom_call.1}
  #allocation0 [shape = 'u32[]', space=smem, size = 0x4, offset = 0x4, fixed_abs, tag = 'smem constant byte address 0x4 - core index']
  #allocation1 [shape = 'u32[144,128]{1,0:T(1,128)}', space=vmem, size = 0x12000, scoped, tag = 'internal scratch']
  %s0 = inlined_call_operand.hbm [shape: f32[2,8,8,512], index: 0, kind: input, shape index: {}]
  %s1 = inlined_call_operand.hbm [shape: bf16[4608,128], index: 1, kind: input, shape index: {}]
  %s2 = inlined_call_operand.hbm [shape: f32[1,128], index: 2, kind: input, shape index: {}]
  %s3 = inlined_call_operand.hbm [shape: f32[2,64,128], index: 3, kind: output, shape index: {}]
  %s4 = sld [smem:[#allocation0]]
  $region57: #{tpu_custom_call.1} parent=0
    _
  %s6 = ssub.s32 1, %s4
  %s7 = scalar_select 0, %s6, %s4
  $region1: #{tpu_custom_call.1} parent=0
    #allocation2 [shape = 'u8[262144]{0}', space=vmem, size = 0x40000, scoped, tag = 'input window, operand 0']
    #allocation3 [shape = 's32[2]{0}', space=sflag, size = 0x8, scoped, tag = 'scoped memory for tpu_custom_call.1']
    #allocation4 [shape = 's32[2]{0}', space=sflag, size = 0x8, scoped, tag = 'scoped memory for tpu_custom_call.1']
    #allocation5 [shape = 'u8[1179648]{0}', space=vmem, size = 0x120000, scoped, tag = 'input window, operand 1, single buffered']
    #allocation6 [shape = 's32[1]{0}', space=sflag, size = 0x4, scoped, tag = 'scoped memory for tpu_custom_call.1']
    #allocation7 [shape = 'u8[512]{0}', space=vmem, size = 0x400, scoped, tag = 'input window, operand 2, single buffered']
    #allocation8 [shape = 'u8[65536]{0}', space=vmem, size = 0x10000, scoped, tag = 'output window, operand 0']
    %8 = vsyncpa [#allocation3], 0
    %s9 = scalar_lea.sflag [#allocation3], 1
    %10 = vsyncpa %s9, 0
    %11 = vsyncpa [#allocation6], 0
    %12 = vsyncpa [#allocation4], 0
    %s13 = scalar_lea.sflag [#allocation4], 1
    %14 = vsyncpa %s13, 0
    loop: start=0, step=1, limit=4
    $region2: #{tpu_custom_call.1} parent=1 // loop_pre_header
      _
    $region3: #{tpu_custom_call.1} parent=1 // loop_header
      %s16 = sphi 0, %s20
      %p17 = scmp.ge.s32.totalorder %s16, 4
      %s26 = sphi 0, %s28
      %s29 = sphi 0, %s26
      %s30 = sphi 0, %s29
      %s46 = sphi 0, %s30
      %s50 = sphi 0, %s50
      %s52 = sphi 0, %s50
      %s53 = sphi 0, %s52
      %s67 = sphi 0, %s53
      %s71 = sphi 0, %s71
      %s73 = sphi 0, %s71
      %s74 = sphi 0, %s73
      %s88 = sphi 0, %s74
      %s94 = sphi 0, %s96
      %s97 = sphi 0, %s94
      %s98 = sphi 0, %s97
      %s114 = sphi 0, %s98
    $region4: #{tpu_custom_call.1} parent=1 // loop_header_branch
      %19 = sbr.rel (%p17) target = $region8
    $region5: #{tpu_custom_call.1} parent=1 // loop_body
      %s21 = ssub.s32 %s16, 1
      %s22 = ssub.s32 %s16, 2
      %s23 = sadd.s32 %s16, 1
      %s24 = ssub.s32 %s16, %s23
      %p25 = scmp.eq.s32.totalorder %s24, 0
      %s27 = sadd.s32 %s26, 1
      %s28 = scalar_select %p25, %s26, %s27
      %p31 = pneg %p25
      %p32 = scmp.eq.s32.totalorder %s16, 1
      %p33 = por %p31, %p32
      %p34 = scmp.ne.s32.totalorder %s26, %s29
      %p35 = scmp.eq.s32.totalorder %s16, 0
      %p36 = por %p34, %p35
      %p37 = scmp.ne.s32.totalorder %s26, %s29
      %p38 = scmp.eq.s32.totalorder %s21, 1
      %p39 = por %p37, %p38
      %p40 = scmp.ne.s32.totalorder %s29, %s30
      %p41 = scmp.eq.s32.totalorder %s21, 0
      %p42 = por %p40, %p41
      %p43 = scmp.ne.s32.totalorder %s29, %s30
      %p44 = scmp.eq.s32.totalorder %s22, 1
      %p45 = por %p43, %p44
      %p47 = scmp.ne.s32.totalorder %s30, %s46
      %p48 = scmp.eq.s32.totalorder %s22, 0
      %p49 = por %p47, %p48
      %s51 = sadd.s32 %s50, 1
      %p54 = scmp.eq.s32.totalorder %s16, 1
      %p55 = scmp.ne.s32.totalorder %s50, %s52
      %p56 = scmp.eq.s32.totalorder %s16, 0
      %p57 = por %p55, %p56
      %p58 = scmp.ne.s32.totalorder %s50, %s52
      %p59 = scmp.eq.s32.totalorder %s21, 1
      %p60 = por %p58, %p59
      %p61 = scmp.ne.s32.totalorder %s52, %s53
      %p62 = scmp.eq.s32.totalorder %s21, 0
      %p63 = por %p61, %p62
      %p64 = scmp.ne.s32.totalorder %s52, %s53
      %p65 = scmp.eq.s32.totalorder %s22, 1
      %p66 = por %p64, %p65
      %p68 = scmp.ne.s32.totalorder %s53, %s67
      %p69 = scmp.eq.s32.totalorder %s22, 0
      %p70 = por %p68, %p69
      %s72 = sadd.s32 %s71, 1
      %p75 = scmp.eq.s32.totalorder %s16, 1
      %p76 = scmp.ne.s32.totalorder %s71, %s73
      %p77 = scmp.eq.s32.totalorder %s16, 0
      %p78 = por %p76, %p77
      %p79 = scmp.ne.s32.totalorder %s71, %s73
      %p80 = scmp.eq.s32.totalorder %s21, 1
      %p81 = por %p79, %p80
      %p82 = scmp.ne.s32.totalorder %s73, %s74
      %p83 = scmp.eq.s32.totalorder %s21, 0
      %p84 = por %p82, %p83
      %p85 = scmp.ne.s32.totalorder %s73, %s74
      %p86 = scmp.eq.s32.totalorder %s22, 1
      %p87 = por %p85, %p86
      %p89 = scmp.ne.s32.totalorder %s74, %s88
      %p90 = scmp.eq.s32.totalorder %s22, 0
      %p91 = por %p89, %p90
      %s92 = ssub.s32 %s16, %s23
      %p93 = scmp.eq.s32.totalorder %s92, 0
      %s95 = sadd.s32 %s94, 1
      %s96 = scalar_select %p93, %s94, %s95
      %p99 = pneg %p93
      %p100 = scmp.eq.s32.totalorder %s16, 1
      %p101 = por %p99, %p100
      %p102 = scmp.ne.s32.totalorder %s94, %s97
      %p103 = scmp.eq.s32.totalorder %s16, 0
      %p104 = por %p102, %p103
      %p105 = scmp.ne.s32.totalorder %s94, %s97
      %p106 = scmp.eq.s32.totalorder %s21, 1
      %p107 = por %p105, %p106
      %p108 = scmp.ne.s32.totalorder %s97, %s98
      %p109 = scmp.eq.s32.totalorder %s21, 0
      %p110 = por %p108, %p109
      %p111 = scmp.ne.s32.totalorder %s97, %s98
      %p112 = scmp.eq.s32.totalorder %s22, 1
      %p113 = por %p111, %p112
      %p115 = scmp.ne.s32.totalorder %s98, %s114
      %p116 = scmp.eq.s32.totalorder %s22, 0
      %p117 = por %p115, %p116
      %p118 = scmp.le.s32.totalorder 1, %s16
      %p119 = scmp.lt.s32.totalorder %s16, 3
      %p120 = pnand %p118, %p119
      %p121 = pneg %p120
      // Predicated region
      $region9: #{tpu_custom_call.1} parent=5 // pred_check
        _
      $region10: #{tpu_custom_call.1} parent=5 // pred_check_branch
        %123 = sbr.rel (%p120) target = $region12
      $region11: #{tpu_custom_call.1} parent=5 // pred_region
        %s124 = ssub.s32 %s16, 1
        // Predicated region
        $region13: #{tpu_custom_call.1} parent=11 // pred_check
          %p125 = pneg %p63
        $region14: #{tpu_custom_call.1} parent=11 // pred_check_branch
          %127 = sbr.rel (%p125) target = $region16
        $region15: #{tpu_custom_call.1} parent=11 // pred_region
          %s129 = ssub.s32 36864, 36864
          %130 = vsyncadd [#allocation6], %s129
          %s131 = sshll.u32 [#allocation5], 4
          %s132 = int_to_ptr.vmem [resolvable:$true] %s131
          %137 = dma.hbm_to_vmem [thread:$0]  %s1, 36864, %s132, [#allocation6], 64, 64, 4
        $region16: #{tpu_custom_call.1} parent=11 // pred_fallthru
          _
        // Predicated region
        $region17: #{tpu_custom_call.1} parent=11 // pred_check
          %p138 = pneg %p84
        $region18: #{tpu_custom_call.1} parent=11 // pred_check_branch
          %140 = sbr.rel (%p138) target = $region20
        $region19: #{tpu_custom_call.1} parent=11 // pred_region
          %s142 = ssub.s32 16, 16
          %143 = vsyncadd [#allocation6], %s142
          %s145 = sshll.u32 [#allocation7], 4
          %s146 = int_to_ptr.vmem [resolvable:$true] %s145
          %148 = dma.hbm_to_vmem [thread:$0]  %s2, 16, %s146, [#allocation6]
        $region20: #{tpu_custom_call.1} parent=11 // pred_fallthru
          _
      $region12: #{tpu_custom_call.1} parent=5 // pred_fallthru
        _
      %p149 = scmp.lt.s32.totalorder %s16, 2
      // Predicated region
      $region21: #{tpu_custom_call.1} parent=5 // pred_check
        %p150 = pneg %p149
      $region22: #{tpu_custom_call.1} parent=5 // pred_check_branch
        %152 = sbr.rel (%p150) target = $region24
      $region23: #{tpu_custom_call.1} parent=5 // pred_region
        // Predicated region
        $region25: #{tpu_custom_call.1} parent=23 // pred_check
          %p153 = pneg %p36
        $region26: #{tpu_custom_call.1} parent=23 // pred_check_branch
          %155 = sbr.rel (%p153) target = $region28
        $region27: #{tpu_custom_call.1} parent=23 // pred_region
          %s156 = sand.u32 %s26, 1
          %s157 = scalar_lea.sflag [#allocation3], %s156
          %s158 = sand.u32 %s26, 1
          %s159 = smul.addr %s158, 256
          %s160 = scalar_lea.vmem [#allocation2], %s159
          %s162 = ssub.s32 4096, 4096
          %163 = vsyncadd %s157, %s162
          %s164 = smul.addr %s16, 32
          %s165 = smul.addr %s164, 128
          %s166 = scalar_lea.hbm %s0, %s165
          %s167 = sshll.u32 %s160, 4
          %s168 = int_to_ptr.vmem [resolvable:$true] %s167
          %173 = dma.hbm_to_vmem [thread:$0]  %s166, 4096, %s168, %s157, 512, 512, 32
        $region28: #{tpu_custom_call.1} parent=23 // pred_fallthru
          _
      $region24: #{tpu_custom_call.1} parent=5 // pred_fallthru
        _
      %p174 = scmp.le.s32.totalorder 1, %s16
      %p175 = scmp.lt.s32.totalorder %s16, 3
      %p176 = pnand %p174, %p175
      %p177 = pneg %p176
      // Predicated region
      $region29: #{tpu_custom_call.1} parent=5 // pred_check
        _
      $region30: #{tpu_custom_call.1} parent=5 // pred_check_branch
        %179 = sbr.rel (%p176) target = $region32
      $region31: #{tpu_custom_call.1} parent=5 // pred_region
        %s180 = ssub.s32 %s16, 1
        %s181 = sand.u32 %s29, 1
        %s182 = scalar_lea.sflag [#allocation3], %s181
        %s183 = sand.u32 %s29, 1
        %s184 = smul.addr %s183, 256
        %s185 = scalar_lea.vmem [#allocation2], %s184
        // Predicated region
        $region33: #{tpu_custom_call.1} parent=31 // pred_check
          %p186 = pneg %p42
        $region34: #{tpu_custom_call.1} parent=31 // pred_check_branch
          %188 = sbr.rel (%p186) target = $region36
        $region35: #{tpu_custom_call.1} parent=31 // pred_region
          %189 = dma.done %s182, 4096
        $region36: #{tpu_custom_call.1} parent=31 // pred_fallthru
          _
        // Predicated region
        $region37: #{tpu_custom_call.1} parent=31 // pred_check
          %p190 = pneg %p63
        $region38: #{tpu_custom_call.1} parent=31 // pred_check_branch
          %192 = sbr.rel (%p190) target = $region40
        $region39: #{tpu_custom_call.1} parent=31 // pred_region
          %193 = dma.done [#allocation6], 36864
        $region40: #{tpu_custom_call.1} parent=31 // pred_fallthru
          _
        // Predicated region
        $region41: #{tpu_custom_call.1} parent=31 // pred_check
          %p194 = pneg %p84
        $region42: #{tpu_custom_call.1} parent=31 // pred_check_branch
          %196 = sbr.rel (%p194) target = $region44
        $region43: #{tpu_custom_call.1} parent=31 // pred_region
          %197 = dma.done [#allocation6], 16
        $region44: #{tpu_custom_call.1} parent=31 // pred_fallthru
          _
        %s198 = sand.u32 %s29, 1
        %s199 = scalar_lea.sflag [#allocation3], %s198
        %s200 = sand.u32 %s29, 1
        %s201 = smul.addr %s200, 256
        %s202 = scalar_lea.vmem [#allocation2], %s201
        %p203 = pneg %p42
        %p204 = pneg %p39
        %p205 = pneg %p63
        %p206 = pneg %p60
        %p207 = pneg %p84
        %p208 = pneg %p81
        %p209 = pneg %p110
        %p210 = pneg %p107
        %s211 = sand.u32 %s97, 1
        %s212 = scalar_lea.sflag [#allocation4], %s211
        %s213 = sand.u32 %s97, 1
        %s214 = smul.addr %s213, 64
        %s215 = scalar_lea.vmem [#allocation8], %s214
        %v217 = vld [vmem:[%s185] sm:$0xff]
        %v218 = vld [vmem:[%s185 + $0x8] sm:$0xff]
        %v219 = vld [vmem:[%s185 + $0x10] sm:$0xff]
        %v220 = vld [vmem:[%s185 + $0x18] sm:$0xff]
        %v221 = vld [vmem:[%s185 + $0x20] sm:$0xff]
        %v222 = vld [vmem:[%s185 + $0x28] sm:$0xff]
        %v223 = vld [vmem:[%s185 + $0x30] sm:$0xff]
        %v224 = vld [vmem:[%s185 + $0x38] sm:$0xff]
        %v225 = vld [vmem:[%s185 + $0x40] sm:$0xff]
        %v226 = vld [vmem:[%s185 + $0x48] sm:$0xff]
        %v227 = vld [vmem:[%s185 + $0x50] sm:$0xff]
        %v228 = vld [vmem:[%s185 + $0x58] sm:$0xff]
        %v229 = vld [vmem:[%s185 + $0x60] sm:$0xff]
        %v230 = vld [vmem:[%s185 + $0x68] sm:$0xff]
        %v231 = vld [vmem:[%s185 + $0x70] sm:$0xff]
        %v232 = vld [vmem:[%s185 + $0x78] sm:$0xff]
        %v233 = vld [vmem:[%s185 + $0x80] sm:$0xff]
        %v234 = vld [vmem:[%s185 + $0x88] sm:$0xff]
        %v235 = vld [vmem:[%s185 + $0x90] sm:$0xff]
        %v236 = vld [vmem:[%s185 + $0x98] sm:$0xff]
        %v237 = vld [vmem:[%s185 + $0xa0] sm:$0xff]
        %v238 = vld [vmem:[%s185 + $0xa8] sm:$0xff]
        %v239 = vld [vmem:[%s185 + $0xb0] sm:$0xff]
        %v240 = vld [vmem:[%s185 + $0xb8] sm:$0xff]
        %v241 = vld [vmem:[%s185 + $0xc0] sm:$0xff]
        %v242 = vld [vmem:[%s185 + $0xc8] sm:$0xff]
        %v243 = vld [vmem:[%s185 + $0xd0] sm:$0xff]
        %v244 = vld [vmem:[%s185 + $0xd8] sm:$0xff]
        %v245 = vld [vmem:[%s185 + $0xe0] sm:$0xff]
        %v246 = vld [vmem:[%s185 + $0xe8] sm:$0xff]
        %v247 = vld [vmem:[%s185 + $0xf0] sm:$0xff]
        %v248 = vld [vmem:[%s185 + $0xf8] sm:$0xff]
        %v249 = vpack.c.bf16 %v217, %v217
        %v250 = vpack.c.bf16 %v218, %v218
        %v251 = vpack.c.bf16 %v219, %v219
        %v252 = vpack.c.bf16 %v220, %v220
        %v253 = vpack.c.bf16 %v221, %v221
        %v254 = vpack.c.bf16 %v222, %v222
        %v255 = vpack.c.bf16 %v223, %v223
        %v256 = vpack.c.bf16 %v224, %v224
        %v257 = vpack.c.bf16 %v225, %v225
        %v258 = vpack.c.bf16 %v226, %v226
        %v259 = vpack.c.bf16 %v227, %v227
        %v260 = vpack.c.bf16 %v228, %v228
        %v261 = vpack.c.bf16 %v229, %v229
        %v262 = vpack.c.bf16 %v230, %v230
        %v263 = vpack.c.bf16 %v231, %v231
        %v264 = vpack.c.bf16 %v232, %v232
        %v265 = vpack.c.bf16 %v233, %v233
        %v266 = vpack.c.bf16 %v234, %v234
        %v267 = vpack.c.bf16 %v235, %v235
        %v268 = vpack.c.bf16 %v236, %v236
        %v269 = vpack.c.bf16 %v237, %v237
        %v270 = vpack.c.bf16 %v238, %v238
        %v271 = vpack.c.bf16 %v239, %v239
        %v272 = vpack.c.bf16 %v240, %v240
        %v273 = vpack.c.bf16 %v241, %v241
        %v274 = vpack.c.bf16 %v242, %v242
        %v275 = vpack.c.bf16 %v243, %v243
        %v276 = vpack.c.bf16 %v244, %v244
        %v277 = vpack.c.bf16 %v245, %v245
        %v278 = vpack.c.bf16 %v246, %v246
        %v279 = vpack.c.bf16 %v247, %v247
        %v280 = vpack.c.bf16 %v248, %v248
        %v282 = vshrl.u32 %v249, 16
        %v284 = vrot.slane %v282, 7
        %v285 = vshll.u32 %v249, 16
        %v287 = vor.u32 %v284, %v285
        %v289 = vshrl.u32 %v250, 16
        %v291 = vrot.slane %v289, 7
        %v292 = vshll.u32 %v250, 16
        %v294 = vor.u32 %v291, %v292
        %v296 = vshrl.u32 %v251, 16
        %v298 = vrot.slane %v296, 7
        %v299 = vshll.u32 %v251, 16
        %v301 = vor.u32 %v298, %v299
        %v303 = vshrl.u32 %v252, 16
        %v305 = vrot.slane %v303, 7
        %v306 = vshll.u32 %v252, 16
        %v308 = vor.u32 %v305, %v306
        %v310 = vshrl.u32 %v253, 16
        %v312 = vrot.slane %v310, 7
        %v313 = vshll.u32 %v253, 16
        %v315 = vor.u32 %v312, %v313
        %v317 = vshrl.u32 %v254, 16
        %v319 = vrot.slane %v317, 7
        %v320 = vshll.u32 %v254, 16
        %v322 = vor.u32 %v319, %v320
        %v324 = vshrl.u32 %v255, 16
        %v326 = vrot.slane %v324, 7
        %v327 = vshll.u32 %v255, 16
        %v329 = vor.u32 %v326, %v327
        %v331 = vshrl.u32 %v256, 16
        %v333 = vrot.slane %v331, 7
        %v334 = vshll.u32 %v256, 16
        %v336 = vor.u32 %v333, %v334
        %v338 = vshrl.u32 %v257, 16
        %v340 = vrot.slane %v338, 7
        %v341 = vshll.u32 %v257, 16
        %v343 = vor.u32 %v340, %v341
        %v345 = vshrl.u32 %v258, 16
        %v347 = vrot.slane %v345, 7
        %v348 = vshll.u32 %v258, 16
        %v350 = vor.u32 %v347, %v348
        %v352 = vshrl.u32 %v259, 16
        %v354 = vrot.slane %v352, 7
        %v355 = vshll.u32 %v259, 16
        %v357 = vor.u32 %v354, %v355
        %v359 = vshrl.u32 %v260, 16
        %v361 = vrot.slane %v359, 7
        %v362 = vshll.u32 %v260, 16
        %v364 = vor.u32 %v361, %v362
        %v366 = vshrl.u32 %v261, 16
        %v368 = vrot.slane %v366, 7
        %v369 = vshll.u32 %v261, 16
        %v371 = vor.u32 %v368, %v369
        %v373 = vshrl.u32 %v262, 16
        %v375 = vrot.slane %v373, 7
        %v376 = vshll.u32 %v262, 16
        %v378 = vor.u32 %v375, %v376
        %v380 = vshrl.u32 %v263, 16
        %v382 = vrot.slane %v380, 7
        %v383 = vshll.u32 %v263, 16
        %v385 = vor.u32 %v382, %v383
        %v387 = vshrl.u32 %v264, 16
        %v389 = vrot.slane %v387, 7
        %v390 = vshll.u32 %v264, 16
        %v392 = vor.u32 %v389, %v390
        %v394 = vshrl.u32 %v265, 16
        %v396 = vrot.slane %v394, 7
        %v397 = vshll.u32 %v265, 16
        %v399 = vor.u32 %v396, %v397
        %v401 = vshrl.u32 %v266, 16
        %v403 = vrot.slane %v401, 7
        %v404 = vshll.u32 %v266, 16
        %v406 = vor.u32 %v403, %v404
        %v408 = vshrl.u32 %v267, 16
        %v410 = vrot.slane %v408, 7
        %v411 = vshll.u32 %v267, 16
        %v413 = vor.u32 %v410, %v411
        %v415 = vshrl.u32 %v268, 16
        %v417 = vrot.slane %v415, 7
        %v418 = vshll.u32 %v268, 16
        %v420 = vor.u32 %v417, %v418
        %v422 = vshrl.u32 %v269, 16
        %v424 = vrot.slane %v422, 7
        %v425 = vshll.u32 %v269, 16
        %v427 = vor.u32 %v424, %v425
        %v429 = vshrl.u32 %v270, 16
        %v431 = vrot.slane %v429, 7
        %v432 = vshll.u32 %v270, 16
        %v434 = vor.u32 %v431, %v432
        %v436 = vshrl.u32 %v271, 16
        %v438 = vrot.slane %v436, 7
        %v439 = vshll.u32 %v271, 16
        %v441 = vor.u32 %v438, %v439
        %v443 = vshrl.u32 %v272, 16
        %v445 = vrot.slane %v443, 7
        %v446 = vshll.u32 %v272, 16
        %v448 = vor.u32 %v445, %v446
        %v450 = vshrl.u32 %v273, 16
        %v452 = vrot.slane %v450, 7
        %v453 = vshll.u32 %v273, 16
        %v455 = vor.u32 %v452, %v453
        %v457 = vshrl.u32 %v274, 16
        %v459 = vrot.slane %v457, 7
        %v460 = vshll.u32 %v274, 16
        %v462 = vor.u32 %v459, %v460
        %v464 = vshrl.u32 %v275, 16
        %v466 = vrot.slane %v464, 7
        %v467 = vshll.u32 %v275, 16
        %v469 = vor.u32 %v466, %v467
        %v471 = vshrl.u32 %v276, 16
        %v473 = vrot.slane %v471, 7
        %v474 = vshll.u32 %v276, 16
        %v476 = vor.u32 %v473, %v474
        %v478 = vshrl.u32 %v277, 16
        %v480 = vrot.slane %v478, 7
        %v481 = vshll.u32 %v277, 16
        %v483 = vor.u32 %v480, %v481
        %v485 = vshrl.u32 %v278, 16
        %v487 = vrot.slane %v485, 7
        %v488 = vshll.u32 %v278, 16
        %v490 = vor.u32 %v487, %v488
        %v492 = vshrl.u32 %v279, 16
        %v494 = vrot.slane %v492, 7
        %v495 = vshll.u32 %v279, 16
        %v497 = vor.u32 %v494, %v495
        %v499 = vshrl.u32 %v280, 16
        %v501 = vrot.slane %v499, 7
        %v502 = vshll.u32 %v280, 16
        %v504 = vor.u32 %v501, %v502
        %vm537 = vcmask 1040384
        %vm538 = vsmask.f32 256
        %vm539 = vmand %vm537, %vm538
        %v540 = vsel %vm539, 0, %v287
        %v541 = vsel %vm539, 0, %v294
        %v542 = vsel %vm539, 0, %v301
        %v543 = vsel %vm539, 0, %v308
        %v544 = vsel %vm539, 0, %v315
        %v545 = vsel %vm539, 0, %v322
        %v546 = vsel %vm539, 0, %v329
        %v547 = vsel %vm539, 0, %v336
        %v548 = vsel %vm539, 0, %v343
        %v549 = vsel %vm539, 0, %v350
        %v550 = vsel %vm539, 0, %v357
        %v551 = vsel %vm539, 0, %v364
        %v552 = vsel %vm539, 0, %v371
        %v553 = vsel %vm539, 0, %v378
        %v554 = vsel %vm539, 0, %v385
        %v555 = vsel %vm539, 0, %v392
        %v556 = vsel %vm539, 0, %v399
        %v557 = vsel %vm539, 0, %v406
        %v558 = vsel %vm539, 0, %v413
        %v559 = vsel %vm539, 0, %v420
        %v560 = vsel %vm539, 0, %v427
        %v561 = vsel %vm539, 0, %v434
        %v562 = vsel %vm539, 0, %v441
        %v563 = vsel %vm539, 0, %v448
        %v564 = vsel %vm539, 0, %v455
        %v565 = vsel %vm539, 0, %v462
        %v566 = vsel %vm539, 0, %v469
        %v567 = vsel %vm539, 0, %v476
        %v568 = vsel %vm539, 0, %v483
        %v569 = vsel %vm539, 0, %v490
        %v570 = vsel %vm539, 0, %v497
        %v571 = vsel %vm539, 0, %v504
        %vm572 = vcmask 1044480
        %vm573 = vsmask.f32 4352
        %vm574 = vmand %vm572, %vm573
        %v575 = vsel %vm574, %v540, 0
        %v576 = vsel %vm574, %v541, 0
        %v577 = vsel %vm574, %v542, 0
        %v578 = vsel %vm574, %v543, 0
        %v579 = vsel %vm574, %v544, 0
        %v580 = vsel %vm574, %v545, 0
        %v581 = vsel %vm574, %v546, 0
        %v582 = vsel %vm574, %v547, 0
        %v583 = vsel %vm574, %v548, 0
        %v584 = vsel %vm574, %v549, 0
        %v585 = vsel %vm574, %v550, 0
        %v586 = vsel %vm574, %v551, 0
        %v587 = vsel %vm574, %v552, 0
        %v588 = vsel %vm574, %v553, 0
        %v589 = vsel %vm574, %v554, 0
        %v590 = vsel %vm574, %v555, 0
        %v591 = vsel %vm574, %v556, 0
        %v592 = vsel %vm574, %v557, 0
        %v593 = vsel %vm574, %v558, 0
        %v594 = vsel %vm574, %v559, 0
        %v595 = vsel %vm574, %v560, 0
        %v596 = vsel %vm574, %v561, 0
        %v597 = vsel %vm574, %v562, 0
        %v598 = vsel %vm574, %v563, 0
        %v599 = vsel %vm574, %v564, 0
        %v600 = vsel %vm574, %v565, 0
        %v601 = vsel %vm574, %v566, 0
        %v602 = vsel %vm574, %v567, 0
        %v603 = vsel %vm574, %v568, 0
        %v604 = vsel %vm574, %v569, 0
        %v605 = vsel %vm574, %v570, 0
        %v606 = vsel %vm574, %v571, 0
        %v636 = vunpack.c.l.b16 0
        %v637 = vunpack.c.l.b16 %v575
        %v638 = vunpack.c.l.b16 %v576
        %v639 = vunpack.c.l.b16 %v577
        %v640 = vunpack.c.l.b16 %v578
        %v641 = vunpack.c.l.b16 %v579
        %v642 = vunpack.c.l.b16 %v580
        %v643 = vunpack.c.l.b16 %v581
        %v644 = vunpack.c.l.b16 %v582
        %v645 = vunpack.c.l.b16 %v583
        %v646 = vunpack.c.l.b16 %v584
        %v647 = vunpack.c.l.b16 %v585
        %v648 = vunpack.c.l.b16 %v586
        %v649 = vunpack.c.l.b16 %v587
        %v650 = vunpack.c.l.b16 %v588
        %v651 = vunpack.c.l.b16 %v589
        %v652 = vunpack.c.l.b16 %v590
        %v653 = vunpack.c.l.b16 %v591
        %v654 = vunpack.c.l.b16 %v592
        %v655 = vunpack.c.l.b16 %v593
        %v656 = vunpack.c.l.b16 %v594
        %v657 = vunpack.c.l.b16 %v595
        %v658 = vunpack.c.l.b16 %v596
        %v659 = vunpack.c.l.b16 %v597
        %v660 = vunpack.c.l.b16 %v598
        %v661 = vunpack.c.l.b16 %v599
        %v662 = vunpack.c.l.b16 %v600
        %v663 = vunpack.c.l.b16 %v601
        %v664 = vunpack.c.l.b16 %v602
        %v665 = vunpack.c.h.b16 0
        %v666 = vunpack.c.h.b16 %v575
        %v667 = vunpack.c.h.b16 %v576
        %v668 = vunpack.c.h.b16 %v577
        %v669 = vunpack.c.h.b16 %v578
        %v670 = vunpack.c.h.b16 %v579
        %v671 = vunpack.c.h.b16 %v580
        %v672 = vunpack.c.h.b16 %v581
        %v673 = vunpack.c.h.b16 %v582
        %v674 = vunpack.c.h.b16 %v583
        %v675 = vunpack.c.h.b16 %v584
        %v676 = vunpack.c.h.b16 %v585
        %v677 = vunpack.c.h.b16 %v586
        %v678 = vunpack.c.h.b16 %v587
        %v679 = vunpack.c.h.b16 %v588
        %v680 = vunpack.c.h.b16 %v589
        %v681 = vunpack.c.h.b16 %v590
        %v682 = vunpack.c.h.b16 %v591
        %v683 = vunpack.c.h.b16 %v592
        %v684 = vunpack.c.h.b16 %v593
        %v685 = vunpack.c.h.b16 %v594
        %v686 = vunpack.c.h.b16 %v595
        %v687 = vunpack.c.h.b16 %v596
        %v688 = vunpack.c.h.b16 %v597
        %v689 = vunpack.c.h.b16 %v598
        %v690 = vunpack.c.h.b16 %v599
        %v691 = vunpack.c.h.b16 %v600
        %v692 = vunpack.c.h.b16 %v601
        %v693 = vunpack.c.h.b16 %v602
        %v694 = vpack.c.b16 %v636, %v636
        %v695 = vpack.c.b16 %v665, %v665
        %v696 = vpack.c.b16 %v638, %v637
        %v697 = vpack.c.b16 %v640, %v639
        %v698 = vpack.c.b16 %v667, %v666
        %v699 = vpack.c.b16 %v669, %v668
        %v700 = vpack.c.b16 %v642, %v641
        %v701 = vpack.c.b16 %v644, %v643
        %v702 = vpack.c.b16 %v671, %v670
        %v703 = vpack.c.b16 %v673, %v672
        %v704 = vpack.c.b16 %v646, %v645
        %v705 = vpack.c.b16 %v648, %v647
        %v706 = vpack.c.b16 %v675, %v674
        %v707 = vpack.c.b16 %v677, %v676
        %v708 = vpack.c.b16 %v650, %v649
        %v709 = vpack.c.b16 %v652, %v651
        %v710 = vpack.c.b16 %v679, %v678
        %v711 = vpack.c.b16 %v681, %v680
        %v712 = vpack.c.b16 %v654, %v653
        %v713 = vpack.c.b16 %v656, %v655
        %v714 = vpack.c.b16 %v683, %v682
        %v715 = vpack.c.b16 %v685, %v684
        %v716 = vpack.c.b16 %v658, %v657
        %v717 = vpack.c.b16 %v660, %v659
        %v718 = vpack.c.b16 %v687, %v686
        %v719 = vpack.c.b16 %v689, %v688
        %v720 = vpack.c.b16 %v662, %v661
        %v721 = vpack.c.b16 %v664, %v663
        %v722 = vpack.c.b16 %v691, %v690
        %v723 = vpack.c.b16 %v693, %v692
        %vm724 = vsmask.f32 3328
        %vm725 = vsmask.f32 7440
        %vm726 = vmor %vm724, %vm725
        %v728 = vshrl.u32 %v694, 16
        %v730 = vrot.slane %v728, 4
        %v731 = vshll.u32 %v694, 16
        %v733 = vrot.slane %v731, 5
        %v734 = vor.u32 %v730, %v733
        %v735 = vrot.slane %v734, 4
        %v737 = vshll.u32 %v695, 16
        %v739 = vrot.slane %v737, 5
        %v740 = vsel %vm726, %v735, %v739
        %v742 = vshrl.u32 %v696, 16
        %v744 = vrot.slane %v742, 4
        %v745 = vshll.u32 %v696, 16
        %v747 = vrot.slane %v745, 5
        %v748 = vor.u32 %v744, %v747
        %v749 = vrot.slane %v748, 4
        %v751 = vshll.u32 %v698, 16
        %v753 = vrot.slane %v751, 5
        %v754 = vsel %vm726, %v749, %v753
        %v756 = vshrl.u32 %v697, 16
        %v758 = vrot.slane %v756, 4
        %v759 = vshll.u32 %v697, 16
        %v761 = vrot.slane %v759, 5
        %v762 = vor.u32 %v758, %v761
        %v763 = vrot.slane %v762, 4
        %v765 = vshll.u32 %v699, 16
        %v767 = vrot.slane %v765, 5
        %v768 = vsel %vm726, %v763, %v767
        %v770 = vshrl.u32 %v700, 16
        %v772 = vrot.slane %v770, 4
        %v773 = vshll.u32 %v700, 16
        %v775 = vrot.slane %v773, 5
        %v776 = vor.u32 %v772, %v775
        %v777 = vrot.slane %v776, 4
        %v779 = vshll.u32 %v702, 16
        %v781 = vrot.slane %v779, 5
        %v782 = vsel %vm726, %v777, %v781
        %v784 = vshrl.u32 %v701, 16
        %v786 = vrot.slane %v784, 4
        %v787 = vshll.u32 %v701, 16
        %v789 = vrot.slane %v787, 5
        %v790 = vor.u32 %v786, %v789
        %v791 = vrot.slane %v790, 4
        %v793 = vshll.u32 %v703, 16
        %v795 = vrot.slane %v793, 5
        %v796 = vsel %vm726, %v791, %v795
        %v798 = vshrl.u32 %v704, 16
        %v800 = vrot.slane %v798, 4
        %v801 = vshll.u32 %v704, 16
        %v803 = vrot.slane %v801, 5
        %v804 = vor.u32 %v800, %v803
        %v805 = vrot.slane %v804, 4
        %v807 = vshll.u32 %v706, 16
        %v809 = vrot.slane %v807, 5
        %v810 = vsel %vm726, %v805, %v809
        %v812 = vshrl.u32 %v705, 16
        %v814 = vrot.slane %v812, 4
        %v815 = vshll.u32 %v705, 16
        %v817 = vrot.slane %v815, 5
        %v818 = vor.u32 %v814, %v817
        %v819 = vrot.slane %v818, 4
        %v821 = vshll.u32 %v707, 16
        %v823 = vrot.slane %v821, 5
        %v824 = vsel %vm726, %v819, %v823
        %v826 = vshrl.u32 %v708, 16
        %v828 = vrot.slane %v826, 4
        %v829 = vshll.u32 %v708, 16
        %v831 = vrot.slane %v829, 5
        %v832 = vor.u32 %v828, %v831
        %v833 = vrot.slane %v832, 4
        %v835 = vshll.u32 %v710, 16
        %v837 = vrot.slane %v835, 5
        %v838 = vsel %vm726, %v833, %v837
        %v840 = vshrl.u32 %v709, 16
        %v842 = vrot.slane %v840, 4
        %v843 = vshll.u32 %v709, 16
        %v845 = vrot.slane %v843, 5
        %v846 = vor.u32 %v842, %v845
        %v847 = vrot.slane %v846, 4
        %v849 = vshll.u32 %v711, 16
        %v851 = vrot.slane %v849, 5
        %v852 = vsel %vm726, %v847, %v851
        %v854 = vshrl.u32 %v712, 16
        %v856 = vrot.slane %v854, 4
        %v857 = vshll.u32 %v712, 16
        %v859 = vrot.slane %v857, 5
        %v860 = vor.u32 %v856, %v859
        %v861 = vrot.slane %v860, 4
        %v863 = vshll.u32 %v714, 16
        %v865 = vrot.slane %v863, 5
        %v866 = vsel %vm726, %v861, %v865
        %v868 = vshrl.u32 %v713, 16
        %v870 = vrot.slane %v868, 4
        %v871 = vshll.u32 %v713, 16
        %v873 = vrot.slane %v871, 5
        %v874 = vor.u32 %v870, %v873
        %v875 = vrot.slane %v874, 4
        %v877 = vshll.u32 %v715, 16
        %v879 = vrot.slane %v877, 5
        %v880 = vsel %vm726, %v875, %v879
        %v882 = vshrl.u32 %v716, 16
        %v884 = vrot.slane %v882, 4
        %v885 = vshll.u32 %v716, 16
        %v887 = vrot.slane %v885, 5
        %v888 = vor.u32 %v884, %v887
        %v889 = vrot.slane %v888, 4
        %v891 = vshll.u32 %v718, 16
        %v893 = vrot.slane %v891, 5
        %v894 = vsel %vm726, %v889, %v893
        %v896 = vshrl.u32 %v717, 16
        %v898 = vrot.slane %v896, 4
        %v899 = vshll.u32 %v717, 16
        %v901 = vrot.slane %v899, 5
        %v902 = vor.u32 %v898, %v901
        %v903 = vrot.slane %v902, 4
        %v905 = vshll.u32 %v719, 16
        %v907 = vrot.slane %v905, 5
        %v908 = vsel %vm726, %v903, %v907
        %v910 = vshrl.u32 %v720, 16
        %v912 = vrot.slane %v910, 4
        %v913 = vshll.u32 %v720, 16
        %v915 = vrot.slane %v913, 5
        %v916 = vor.u32 %v912, %v915
        %v917 = vrot.slane %v916, 4
        %v919 = vshll.u32 %v722, 16
        %v921 = vrot.slane %v919, 5
        %v922 = vsel %vm726, %v917, %v921
        %v924 = vshrl.u32 %v721, 16
        %v926 = vrot.slane %v924, 4
        %v927 = vshll.u32 %v721, 16
        %v929 = vrot.slane %v927, 5
        %v930 = vor.u32 %v926, %v929
        %v931 = vrot.slane %v930, 4
        %v933 = vshll.u32 %v723, 16
        %v935 = vrot.slane %v933, 5
        %v936 = vsel %vm726, %v931, %v935
        %vm937 = vcmask 1042432
        %vm938 = vcmask 1046532
        %vm939 = vmor %vm937, %vm938
        %v940 = vrot.slane %v694, 5
        %v941 = vrot.slane %v940, 4
        %v942 = vrot.slane %v695, 5
        %v943 = vsel %vm939, %v941, %v942
        %v944 = vrot.slane %v696, 5
        %v945 = vrot.slane %v944, 4
        %v946 = vrot.slane %v698, 5
        %v947 = vsel %vm939, %v945, %v946
        %v948 = vrot.slane %v697, 5
        %v949 = vrot.slane %v948, 4
        %v950 = vrot.slane %v699, 5
        %v951 = vsel %vm939, %v949, %v950
        %v952 = vrot.slane %v700, 5
        %v953 = vrot.slane %v952, 4
        %v954 = vrot.slane %v702, 5
        %v955 = vsel %vm939, %v953, %v954
        %v956 = vrot.slane %v701, 5
        %v957 = vrot.slane %v956, 4
        %v958 = vrot.slane %v703, 5
        %v959 = vsel %vm939, %v957, %v958
        %v960 = vrot.slane %v704, 5
        %v961 = vrot.slane %v960, 4
        %v962 = vrot.slane %v706, 5
        %v963 = vsel %vm939, %v961, %v962
        %v964 = vrot.slane %v705, 5
        %v965 = vrot.slane %v964, 4
        %v966 = vrot.slane %v707, 5
        %v967 = vsel %vm939, %v965, %v966
        %v968 = vrot.slane %v708, 5
        %v969 = vrot.slane %v968, 4
        %v970 = vrot.slane %v710, 5
        %v971 = vsel %vm939, %v969, %v970
        %v972 = vrot.slane %v709, 5
        %v973 = vrot.slane %v972, 4
        %v974 = vrot.slane %v711, 5
        %v975 = vsel %vm939, %v973, %v974
        %v976 = vrot.slane %v712, 5
        %v977 = vrot.slane %v976, 4
        %v978 = vrot.slane %v714, 5
        %v979 = vsel %vm939, %v977, %v978
        %v980 = vrot.slane %v713, 5
        %v981 = vrot.slane %v980, 4
        %v982 = vrot.slane %v715, 5
        %v983 = vsel %vm939, %v981, %v982
        %v984 = vrot.slane %v716, 5
        %v985 = vrot.slane %v984, 4
        %v986 = vrot.slane %v718, 5
        %v987 = vsel %vm939, %v985, %v986
        %v988 = vrot.slane %v717, 5
        %v989 = vrot.slane %v988, 4
        %v990 = vrot.slane %v719, 5
        %v991 = vsel %vm939, %v989, %v990
        %v992 = vrot.slane %v720, 5
        %v993 = vrot.slane %v992, 4
        %v994 = vrot.slane %v722, 5
        %v995 = vsel %vm939, %v993, %v994
        %v996 = vrot.slane %v721, 5
        %v997 = vrot.slane %v996, 4
        %v998 = vrot.slane %v723, 5
        %v999 = vsel %vm939, %v997, %v998
        %v1004 = vunpack.c.l.b16 %v603
        %v1005 = vunpack.c.l.b16 %v604
        %v1006 = vunpack.c.l.b16 %v605
        %v1007 = vunpack.c.l.b16 %v606
        %v1008 = vunpack.c.h.b16 %v603
        %v1009 = vunpack.c.h.b16 %v604
        %v1010 = vunpack.c.h.b16 %v605
        %v1011 = vunpack.c.h.b16 %v606
        %v1012 = vpack.c.b16 %v1005, %v1004
        %v1013 = vpack.c.b16 %v1007, %v1006
        %v1014 = vpack.c.b16 %v1009, %v1008
        %v1015 = vpack.c.b16 %v1011, %v1010
        %v1017 = vshrl.u32 %v1012, 16
        %v1019 = vrot.slane %v1017, 4
        %v1020 = vshll.u32 %v1012, 16
        %v1022 = vrot.slane %v1020, 5
        %v1023 = vor.u32 %v1019, %v1022
        %v1024 = vrot.slane %v1023, 4
        %v1026 = vshll.u32 %v1014, 16
        %v1028 = vrot.slane %v1026, 5
        %v1029 = vsel %vm726, %v1024, %v1028
        %v1031 = vshrl.u32 %v1013, 16
        %v1033 = vrot.slane %v1031, 4
        %v1034 = vshll.u32 %v1013, 16
        %v1036 = vrot.slane %v1034, 5
        %v1037 = vor.u32 %v1033, %v1036
        %v1038 = vrot.slane %v1037, 4
        %v1040 = vshll.u32 %v1015, 16
        %v1042 = vrot.slane %v1040, 5
        %v1043 = vsel %vm726, %v1038, %v1042
        %v1044 = vrot.slane %v1012, 5
        %v1045 = vrot.slane %v1044, 4
        %v1046 = vrot.slane %v1014, 5
        %v1047 = vsel %vm939, %v1045, %v1046
        %v1048 = vrot.slane %v1013, 5
        %v1049 = vrot.slane %v1048, 4
        %v1050 = vrot.slane %v1015, 5
        %v1051 = vsel %vm939, %v1049, %v1050
        %v1052 = vpack.c.b16 %v637, %v636
        %v1053 = vpack.c.b16 %v638, %v636
        %v1054 = vpack.c.b16 %v639, %v636
        %v1055 = vpack.c.b16 %v640, %v636
        %v1056 = vpack.c.b16 %v645, %v641
        %v1057 = vpack.c.b16 %v646, %v642
        %v1058 = vpack.c.b16 %v647, %v643
        %v1059 = vpack.c.b16 %v648, %v644
        %v1060 = vpack.c.b16 %v653, %v649
        %v1061 = vpack.c.b16 %v654, %v650
        %v1062 = vpack.c.b16 %v655, %v651
        %v1063 = vpack.c.b16 %v656, %v652
        %v1064 = vpack.c.b16 %v661, %v657
        %v1065 = vpack.c.b16 %v662, %v658
        %v1066 = vpack.c.b16 %v663, %v659
        %v1067 = vpack.c.b16 %v664, %v660
        %v1084 = vunpack.c.l.b16 %v740
        %v1085 = vunpack.c.h.b16 %v740
        %v1086 = vunpack.c.l.b16 %v754
        %v1087 = vunpack.c.h.b16 %v754
        %v1088 = vunpack.c.l.b16 %v768
        %v1089 = vunpack.c.h.b16 %v768
        %v1090 = vunpack.c.l.b16 %v782
        %v1091 = vunpack.c.h.b16 %v782
        %v1092 = vunpack.c.l.b16 %v796
        %v1093 = vunpack.c.h.b16 %v796
        %v1094 = vunpack.c.l.b16 %v810
        %v1095 = vunpack.c.h.b16 %v810
        %v1096 = vunpack.c.l.b16 %v824
        %v1097 = vunpack.c.h.b16 %v824
        %v1098 = vunpack.c.l.b16 %v838
        %v1099 = vunpack.c.h.b16 %v838
        %v1100 = vunpack.c.l.b16 %v852
        %v1101 = vunpack.c.h.b16 %v852
        %v1102 = vunpack.c.l.b16 %v866
        %v1103 = vunpack.c.h.b16 %v866
        %v1104 = vunpack.c.l.b16 %v880
        %v1105 = vunpack.c.h.b16 %v880
        %v1106 = vunpack.c.l.b16 %v894
        %v1107 = vunpack.c.h.b16 %v894
        %v1108 = vunpack.c.l.b16 %v908
        %v1109 = vunpack.c.h.b16 %v908
        %v1110 = vunpack.c.l.b16 %v922
        %v1111 = vunpack.c.h.b16 %v922
        %v1112 = vunpack.c.l.b16 %v936
        %v1113 = vunpack.c.h.b16 %v936
        %v1114 = vpack.c.b16 %v1086, %v1084
        %v1115 = vpack.c.b16 %v1087, %v1085
        %v1116 = vpack.c.b16 %v1088, %v1084
        %v1117 = vpack.c.b16 %v1089, %v1085
        %v1118 = vpack.c.b16 %v1094, %v1090
        %v1119 = vpack.c.b16 %v1095, %v1091
        %v1120 = vpack.c.b16 %v1096, %v1092
        %v1121 = vpack.c.b16 %v1097, %v1093
        %v1122 = vpack.c.b16 %v1102, %v1098
        %v1123 = vpack.c.b16 %v1103, %v1099
        %v1124 = vpack.c.b16 %v1104, %v1100
        %v1125 = vpack.c.b16 %v1105, %v1101
        %v1126 = vpack.c.b16 %v1110, %v1106
        %v1127 = vpack.c.b16 %v1111, %v1107
        %v1128 = vpack.c.b16 %v1112, %v1108
        %v1129 = vpack.c.b16 %v1113, %v1109
        %v1146 = vunpack.c.l.b16 %v943
        %v1147 = vunpack.c.h.b16 %v943
        %v1148 = vunpack.c.l.b16 %v947
        %v1149 = vunpack.c.h.b16 %v947
        %v1150 = vunpack.c.l.b16 %v951
        %v1151 = vunpack.c.h.b16 %v951
        %v1152 = vunpack.c.l.b16 %v955
        %v1153 = vunpack.c.h.b16 %v955
        %v1154 = vunpack.c.l.b16 %v959
        %v1155 = vunpack.c.h.b16 %v959
        %v1156 = vunpack.c.l.b16 %v963
        %v1157 = vunpack.c.h.b16 %v963
        %v1158 = vunpack.c.l.b16 %v967
        %v1159 = vunpack.c.h.b16 %v967
        %v1160 = vunpack.c.l.b16 %v971
        %v1161 = vunpack.c.h.b16 %v971
        %v1162 = vunpack.c.l.b16 %v975
        %v1163 = vunpack.c.h.b16 %v975
        %v1164 = vunpack.c.l.b16 %v979
        %v1165 = vunpack.c.h.b16 %v979
        %v1166 = vunpack.c.l.b16 %v983
        %v1167 = vunpack.c.h.b16 %v983
        %v1168 = vunpack.c.l.b16 %v987
        %v1169 = vunpack.c.h.b16 %v987
        %v1170 = vunpack.c.l.b16 %v991
        %v1171 = vunpack.c.h.b16 %v991
        %v1172 = vunpack.c.l.b16 %v995
        %v1173 = vunpack.c.h.b16 %v995
        %v1174 = vunpack.c.l.b16 %v999
        %v1175 = vunpack.c.h.b16 %v999
        %v1176 = vpack.c.b16 %v1148, %v1146
        %v1177 = vpack.c.b16 %v1149, %v1147
        %v1178 = vpack.c.b16 %v1150, %v1146
        %v1179 = vpack.c.b16 %v1151, %v1147
        %v1180 = vpack.c.b16 %v1156, %v1152
        %v1181 = vpack.c.b16 %v1157, %v1153
        %v1182 = vpack.c.b16 %v1158, %v1154
        %v1183 = vpack.c.b16 %v1159, %v1155
        %v1184 = vpack.c.b16 %v1164, %v1160
        %v1185 = vpack.c.b16 %v1165, %v1161
        %v1186 = vpack.c.b16 %v1166, %v1162
        %v1187 = vpack.c.b16 %v1167, %v1163
        %v1188 = vpack.c.b16 %v1172, %v1168
        %v1189 = vpack.c.b16 %v1173, %v1169
        %v1190 = vpack.c.b16 %v1174, %v1170
        %v1191 = vpack.c.b16 %v1175, %v1171
        %v1208 = vpack.c.b16 %v641, %v637
        %v1209 = vpack.c.b16 %v642, %v638
        %v1210 = vpack.c.b16 %v643, %v639
        %v1211 = vpack.c.b16 %v644, %v640
        %v1212 = vpack.c.b16 %v649, %v645
        %v1213 = vpack.c.b16 %v650, %v646
        %v1214 = vpack.c.b16 %v651, %v647
        %v1215 = vpack.c.b16 %v652, %v648
        %v1216 = vpack.c.b16 %v657, %v653
        %v1217 = vpack.c.b16 %v658, %v654
        %v1218 = vpack.c.b16 %v659, %v655
        %v1219 = vpack.c.b16 %v660, %v656
        %v1220 = vpack.c.b16 %v1004, %v661
        %v1221 = vpack.c.b16 %v1005, %v662
        %v1222 = vpack.c.b16 %v1006, %v663
        %v1223 = vpack.c.b16 %v1007, %v664
        %v1240 = vunpack.c.l.b16 %v1029
        %v1241 = vunpack.c.h.b16 %v1029
        %v1242 = vunpack.c.l.b16 %v1043
        %v1243 = vunpack.c.h.b16 %v1043
        %v1244 = vpack.c.b16 %v1090, %v1086
        %v1245 = vpack.c.b16 %v1091, %v1087
        %v1246 = vpack.c.b16 %v1092, %v1088
        %v1247 = vpack.c.b16 %v1093, %v1089
        %v1248 = vpack.c.b16 %v1098, %v1094
        %v1249 = vpack.c.b16 %v1099, %v1095
        %v1250 = vpack.c.b16 %v1100, %v1096
        %v1251 = vpack.c.b16 %v1101, %v1097
        %v1252 = vpack.c.b16 %v1106, %v1102
        %v1253 = vpack.c.b16 %v1107, %v1103
        %v1254 = vpack.c.b16 %v1108, %v1104
        %v1255 = vpack.c.b16 %v1109, %v1105
        %v1256 = vpack.c.b16 %v1240, %v1110
        %v1257 = vpack.c.b16 %v1241, %v1111
        %v1258 = vpack.c.b16 %v1242, %v1112
        %v1259 = vpack.c.b16 %v1243, %v1113
        %v1276 = vunpack.c.l.b16 %v1047
        %v1277 = vunpack.c.h.b16 %v1047
        %v1278 = vunpack.c.l.b16 %v1051
        %v1279 = vunpack.c.h.b16 %v1051
        %v1280 = vpack.c.b16 %v1152, %v1148
        %v1281 = vpack.c.b16 %v1153, %v1149
        %v1282 = vpack.c.b16 %v1154, %v1150
        %v1283 = vpack.c.b16 %v1155, %v1151
        %v1284 = vpack.c.b16 %v1160, %v1156
        %v1285 = vpack.c.b16 %v1161, %v1157
        %v1286 = vpack.c.b16 %v1162, %v1158
        %v1287 = vpack.c.b16 %v1163, %v1159
        %v1288 = vpack.c.b16 %v1168, %v1164
        %v1289 = vpack.c.b16 %v1169, %v1165
        %v1290 = vpack.c.b16 %v1170, %v1166
        %v1291 = vpack.c.b16 %v1171, %v1167
        %v1292 = vpack.c.b16 %v1276, %v1172
        %v1293 = vpack.c.b16 %v1277, %v1173
        %v1294 = vpack.c.b16 %v1278, %v1174
        %v1295 = vpack.c.b16 %v1279, %v1175
        %v1312 = vpack.c.b16 %v636, %v1004
        %v1313 = vpack.c.b16 %v636, %v1005
        %v1314 = vpack.c.b16 %v636, %v1006
        %v1315 = vpack.c.b16 %v636, %v1007
        %v1320 = vpack.c.b16 %v1084, %v1240
        %v1321 = vpack.c.b16 %v1085, %v1241
        %v1322 = vpack.c.b16 %v1084, %v1242
        %v1323 = vpack.c.b16 %v1085, %v1243
        %v1328 = vpack.c.b16 %v1146, %v1276
        %v1329 = vpack.c.b16 %v1147, %v1277
        %v1330 = vpack.c.b16 %v1146, %v1278
        %v1331 = vpack.c.b16 %v1147, %v1279
        %v1336 = vld [vmem:[#allocation5] sm:$0xf]
        %v1337 = vld [vmem:[#allocation5 + $0x4] sm:$0xf]
        %v1338 = vld [vmem:[#allocation5 + $0x8] sm:$0xf]
        %v1339 = vld [vmem:[#allocation5 + $0xc] sm:$0xf]
        %v1340 = vld [vmem:[#allocation5 + $0x10] sm:$0xf]
        %v1341 = vld [vmem:[#allocation5 + $0x14] sm:$0xf]
        %v1342 = vld [vmem:[#allocation5 + $0x18] sm:$0xf]
        %v1343 = vld [vmem:[#allocation5 + $0x1c] sm:$0xf]
        %v1344 = vld [vmem:[#allocation5 + $0x20] sm:$0xf]
        %v1345 = vld [vmem:[#allocation5 + $0x24] sm:$0xf]
        %v1346 = vld [vmem:[#allocation5 + $0x28] sm:$0xf]
        %v1347 = vld [vmem:[#allocation5 + $0x2c] sm:$0xf]
        %v1348 = vld [vmem:[#allocation5 + $0x30] sm:$0xf]
        %v1349 = vld [vmem:[#allocation5 + $0x34] sm:$0xf]
        %v1350 = vld [vmem:[#allocation5 + $0x38] sm:$0xf]
        %v1351 = vld [vmem:[#allocation5 + $0x3c] sm:$0xf]
        %v1352 = vld [vmem:[#allocation5 + $0x40] sm:$0xf]
        %v1353 = vld [vmem:[#allocation5 + $0x44] sm:$0xf]
        %v1354 = vld [vmem:[#allocation5 + $0x48] sm:$0xf]
        %v1355 = vld [vmem:[#allocation5 + $0x4c] sm:$0xf]
        %v1356 = vld [vmem:[#allocation5 + $0x50] sm:$0xf]
        %v1357 = vld [vmem:[#allocation5 + $0x54] sm:$0xf]
        %v1358 = vld [vmem:[#allocation5 + $0x58] sm:$0xf]
        %v1359 = vld [vmem:[#allocation5 + $0x5c] sm:$0xf]
        %v1360 = vld [vmem:[#allocation5 + $0x60] sm:$0xf]
        %v1361 = vld [vmem:[#allocation5 + $0x64] sm:$0xf]
        %v1362 = vld [vmem:[#allocation5 + $0x68] sm:$0xf]
        %v1363 = vld [vmem:[#allocation5 + $0x6c] sm:$0xf]
        %v1364 = vld [vmem:[#allocation5 + $0x70] sm:$0xf]
        %v1365 = vld [vmem:[#allocation5 + $0x74] sm:$0xf]
        %v1366 = vld [vmem:[#allocation5 + $0x78] sm:$0xf]
        %v1367 = vld [vmem:[#allocation5 + $0x7c] sm:$0xf]
        %v1368 = vld [vmem:[#allocation5 + $0x80] sm:$0xf]
        %v1369 = vld [vmem:[#allocation5 + $0x84] sm:$0xf]
        %v1370 = vld [vmem:[#allocation5 + $0x88] sm:$0xf]
        %v1371 = vld [vmem:[#allocation5 + $0x8c] sm:$0xf]
        %v1372 = vld [vmem:[#allocation5 + $0x90] sm:$0xf]
        %v1373 = vld [vmem:[#allocation5 + $0x94] sm:$0xf]
        %v1374 = vld [vmem:[#allocation5 + $0x98] sm:$0xf]
        %v1375 = vld [vmem:[#allocation5 + $0x9c] sm:$0xf]
        %v1376 = vld [vmem:[#allocation5 + $0xa0] sm:$0xf]
        %v1377 = vld [vmem:[#allocation5 + $0xa4] sm:$0xf]
        %v1378 = vld [vmem:[#allocation5 + $0xa8] sm:$0xf]
        %v1379 = vld [vmem:[#allocation5 + $0xac] sm:$0xf]
        %v1380 = vld [vmem:[#allocation5 + $0xb0] sm:$0xf]
        %v1381 = vld [vmem:[#allocation5 + $0xb4] sm:$0xf]
        %v1382 = vld [vmem:[#allocation5 + $0xb8] sm:$0xf]
        %v1383 = vld [vmem:[#allocation5 + $0xbc] sm:$0xf]
        %v1384 = vld [vmem:[#allocation5 + $0xc0] sm:$0xf]
        %v1385 = vld [vmem:[#allocation5 + $0xc4] sm:$0xf]
        %v1386 = vld [vmem:[#allocation5 + $0xc8] sm:$0xf]
        %v1387 = vld [vmem:[#allocation5 + $0xcc] sm:$0xf]
        %v1388 = vld [vmem:[#allocation5 + $0xd0] sm:$0xf]
        %v1389 = vld [vmem:[#allocation5 + $0xd4] sm:$0xf]
        %v1390 = vld [vmem:[#allocation5 + $0xd8] sm:$0xf]
        %v1391 = vld [vmem:[#allocation5 + $0xdc] sm:$0xf]
        %v1392 = vld [vmem:[#allocation5 + $0xe0] sm:$0xf]
        %v1393 = vld [vmem:[#allocation5 + $0xe4] sm:$0xf]
        %v1394 = vld [vmem:[#allocation5 + $0xe8] sm:$0xf]
        %v1395 = vld [vmem:[#allocation5 + $0xec] sm:$0xf]
        %v1396 = vld [vmem:[#allocation5 + $0xf0] sm:$0xf]
        %v1397 = vld [vmem:[#allocation5 + $0xf4] sm:$0xf]
        %v1398 = vld [vmem:[#allocation5 + $0xf8] sm:$0xf]
        %v1399 = vld [vmem:[#allocation5 + $0xfc] sm:$0xf]
        %v1400 = vld [vmem:[#allocation5 + $0x100] sm:$0xf]
        %v1401 = vld [vmem:[#allocation5 + $0x104] sm:$0xf]
        %v1402 = vld [vmem:[#allocation5 + $0x108] sm:$0xf]
        %v1403 = vld [vmem:[#allocation5 + $0x10c] sm:$0xf]
        %v1404 = vld [vmem:[#allocation5 + $0x110] sm:$0xf]
        %v1405 = vld [vmem:[#allocation5 + $0x114] sm:$0xf]
        %v1406 = vld [vmem:[#allocation5 + $0x118] sm:$0xf]
        %v1407 = vld [vmem:[#allocation5 + $0x11c] sm:$0xf]
        %v1408 = vld [vmem:[#allocation5 + $0x120] sm:$0xf]
        %v1409 = vld [vmem:[#allocation5 + $0x124] sm:$0xf]
        %v1410 = vld [vmem:[#allocation5 + $0x128] sm:$0xf]
        %v1411 = vld [vmem:[#allocation5 + $0x12c] sm:$0xf]
        %v1412 = vld [vmem:[#allocation5 + $0x130] sm:$0xf]
        %v1413 = vld [vmem:[#allocation5 + $0x134] sm:$0xf]
        %v1414 = vld [vmem:[#allocation5 + $0x138] sm:$0xf]
        %v1415 = vld [vmem:[#allocation5 + $0x13c] sm:$0xf]
        %v1416 = vld [vmem:[#allocation5 + $0x140] sm:$0xf]
        %v1417 = vld [vmem:[#allocation5 + $0x144] sm:$0xf]
        %v1418 = vld [vmem:[#allocation5 + $0x148] sm:$0xf]
        %v1419 = vld [vmem:[#allocation5 + $0x14c] sm:$0xf]
        %v1420 = vld [vmem:[#allocation5 + $0x150] sm:$0xf]
        %v1421 = vld [vmem:[#allocation5 + $0x154] sm:$0xf]
        %v1422 = vld [vmem:[#allocation5 + $0x158] sm:$0xf]
        %v1423 = vld [vmem:[#allocation5 + $0x15c] sm:$0xf]
        %v1424 = vld [vmem:[#allocation5 + $0x160] sm:$0xf]
        %v1425 = vld [vmem:[#allocation5 + $0x164] sm:$0xf]
        %v1426 = vld [vmem:[#allocation5 + $0x168] sm:$0xf]
        %v1427 = vld [vmem:[#allocation5 + $0x16c] sm:$0xf]
        %v1428 = vld [vmem:[#allocation5 + $0x170] sm:$0xf]
        %v1429 = vld [vmem:[#allocation5 + $0x174] sm:$0xf]
        %v1430 = vld [vmem:[#allocation5 + $0x178] sm:$0xf]
        %v1431 = vld [vmem:[#allocation5 + $0x17c] sm:$0xf]
        %v1432 = vld [vmem:[#allocation5 + $0x180] sm:$0xf]
        %v1433 = vld [vmem:[#allocation5 + $0x184] sm:$0xf]
        %v1434 = vld [vmem:[#allocation5 + $0x188] sm:$0xf]
        %v1435 = vld [vmem:[#allocation5 + $0x18c] sm:$0xf]
        %v1436 = vld [vmem:[#allocation5 + $0x190] sm:$0xf]
        %v1437 = vld [vmem:[#allocation5 + $0x194] sm:$0xf]
        %v1438 = vld [vmem:[#allocation5 + $0x198] sm:$0xf]
        %v1439 = vld [vmem:[#allocation5 + $0x19c] sm:$0xf]
        %v1440 = vld [vmem:[#allocation5 + $0x1a0] sm:$0xf]
        %v1441 = vld [vmem:[#allocation5 + $0x1a4] sm:$0xf]
        %v1442 = vld [vmem:[#allocation5 + $0x1a8] sm:$0xf]
        %v1443 = vld [vmem:[#allocation5 + $0x1ac] sm:$0xf]
        %v1444 = vld [vmem:[#allocation5 + $0x1b0] sm:$0xf]
        %v1445 = vld [vmem:[#allocation5 + $0x1b4] sm:$0xf]
        %v1446 = vld [vmem:[#allocation5 + $0x1b8] sm:$0xf]
        %v1447 = vld [vmem:[#allocation5 + $0x1bc] sm:$0xf]
        %v1448 = vld [vmem:[#allocation5 + $0x1c0] sm:$0xf]
        %v1449 = vld [vmem:[#allocation5 + $0x1c4] sm:$0xf]
        %v1450 = vld [vmem:[#allocation5 + $0x1c8] sm:$0xf]
        %v1451 = vld [vmem:[#allocation5 + $0x1cc] sm:$0xf]
        %v1452 = vld [vmem:[#allocation5 + $0x1d0] sm:$0xf]
        %v1453 = vld [vmem:[#allocation5 + $0x1d4] sm:$0xf]
        %v1454 = vld [vmem:[#allocation5 + $0x1d8] sm:$0xf]
        %v1455 = vld [vmem:[#allocation5 + $0x1dc] sm:$0xf]
        %v1456 = vld [vmem:[#allocation5 + $0x1e0] sm:$0xf]
        %v1457 = vld [vmem:[#allocation5 + $0x1e4] sm:$0xf]
        %v1458 = vld [vmem:[#allocation5 + $0x1e8] sm:$0xf]
        %v1459 = vld [vmem:[#allocation5 + $0x1ec] sm:$0xf]
        %v1460 = vld [vmem:[#allocation5 + $0x1f0] sm:$0xf]
        %v1461 = vld [vmem:[#allocation5 + $0x1f4] sm:$0xf]
        %v1462 = vld [vmem:[#allocation5 + $0x1f8] sm:$0xf]
        %v1463 = vld [vmem:[#allocation5 + $0x1fc] sm:$0xf]
        %v1464 = vld [vmem:[#allocation5 + $0x200] sm:$0xf]
        %v1465 = vld [vmem:[#allocation5 + $0x204] sm:$0xf]
        %v1466 = vld [vmem:[#allocation5 + $0x208] sm:$0xf]
        %v1467 = vld [vmem:[#allocation5 + $0x20c] sm:$0xf]
        %v1468 = vld [vmem:[#allocation5 + $0x210] sm:$0xf]
        %v1469 = vld [vmem:[#allocation5 + $0x214] sm:$0xf]
        %v1470 = vld [vmem:[#allocation5 + $0x218] sm:$0xf]
        %v1471 = vld [vmem:[#allocation5 + $0x21c] sm:$0xf]
        %v1472 = vld [vmem:[#allocation5 + $0x220] sm:$0xf]
        %v1473 = vld [vmem:[#allocation5 + $0x224] sm:$0xf]
        %v1474 = vld [vmem:[#allocation5 + $0x228] sm:$0xf]
        %v1475 = vld [vmem:[#allocation5 + $0x22c] sm:$0xf]
        %v1476 = vld [vmem:[#allocation5 + $0x230] sm:$0xf]
        %v1477 = vld [vmem:[#allocation5 + $0x234] sm:$0xf]
        %v1478 = vld [vmem:[#allocation5 + $0x238] sm:$0xf]
        %v1479 = vld [vmem:[#allocation5 + $0x23c] sm:$0xf]
        %v1480 = vld [vmem:[#allocation5 + $0x240] sm:$0xf]
        %v1481 = vld [vmem:[#allocation5 + $0x244] sm:$0xf]
        %v1482 = vld [vmem:[#allocation5 + $0x248] sm:$0xf]
        %v1483 = vld [vmem:[#allocation5 + $0x24c] sm:$0xf]
        %v1484 = vld [vmem:[#allocation5 + $0x250] sm:$0xf]
        %v1485 = vld [vmem:[#allocation5 + $0x254] sm:$0xf]
        %v1486 = vld [vmem:[#allocation5 + $0x258] sm:$0xf]
        %v1487 = vld [vmem:[#allocation5 + $0x25c] sm:$0xf]
        %v1488 = vld [vmem:[#allocation5 + $0x260] sm:$0xf]
        %v1489 = vld [vmem:[#allocation5 + $0x264] sm:$0xf]
        %v1490 = vld [vmem:[#allocation5 + $0x268] sm:$0xf]
        %v1491 = vld [vmem:[#allocation5 + $0x26c] sm:$0xf]
        %v1492 = vld [vmem:[#allocation5 + $0x270] sm:$0xf]
        %v1493 = vld [vmem:[#allocation5 + $0x274] sm:$0xf]
        %v1494 = vld [vmem:[#allocation5 + $0x278] sm:$0xf]
        %v1495 = vld [vmem:[#allocation5 + $0x27c] sm:$0xf]
        %v1496 = vld [vmem:[#allocation5 + $0x280] sm:$0xf]
        %v1497 = vld [vmem:[#allocation5 + $0x284] sm:$0xf]
        %v1498 = vld [vmem:[#allocation5 + $0x288] sm:$0xf]
        %v1499 = vld [vmem:[#allocation5 + $0x28c] sm:$0xf]
        %v1500 = vld [vmem:[#allocation5 + $0x290] sm:$0xf]
        %v1501 = vld [vmem:[#allocation5 + $0x294] sm:$0xf]
        %v1502 = vld [vmem:[#allocation5 + $0x298] sm:$0xf]
        %v1503 = vld [vmem:[#allocation5 + $0x29c] sm:$0xf]
        %v1504 = vld [vmem:[#allocation5 + $0x2a0] sm:$0xf]
        %v1505 = vld [vmem:[#allocation5 + $0x2a4] sm:$0xf]
        %v1506 = vld [vmem:[#allocation5 + $0x2a8] sm:$0xf]
        %v1507 = vld [vmem:[#allocation5 + $0x2ac] sm:$0xf]
        %v1508 = vld [vmem:[#allocation5 + $0x2b0] sm:$0xf]
        %v1509 = vld [vmem:[#allocation5 + $0x2b4] sm:$0xf]
        %v1510 = vld [vmem:[#allocation5 + $0x2b8] sm:$0xf]
        %v1511 = vld [vmem:[#allocation5 + $0x2bc] sm:$0xf]
        %v1512 = vld [vmem:[#allocation5 + $0x2c0] sm:$0xf]
        %v1513 = vld [vmem:[#allocation5 + $0x2c4] sm:$0xf]
        %v1514 = vld [vmem:[#allocation5 + $0x2c8] sm:$0xf]
        %v1515 = vld [vmem:[#allocation5 + $0x2cc] sm:$0xf]
        %v1516 = vld [vmem:[#allocation5 + $0x2d0] sm:$0xf]
        %v1517 = vld [vmem:[#allocation5 + $0x2d4] sm:$0xf]
        %v1518 = vld [vmem:[#allocation5 + $0x2d8] sm:$0xf]
        %v1519 = vld [vmem:[#allocation5 + $0x2dc] sm:$0xf]
        %v1520 = vld [vmem:[#allocation5 + $0x2e0] sm:$0xf]
        %v1521 = vld [vmem:[#allocation5 + $0x2e4] sm:$0xf]
        %v1522 = vld [vmem:[#allocation5 + $0x2e8] sm:$0xf]
        %v1523 = vld [vmem:[#allocation5 + $0x2ec] sm:$0xf]
        %v1524 = vld [vmem:[#allocation5 + $0x2f0] sm:$0xf]
        %v1525 = vld [vmem:[#allocation5 + $0x2f4] sm:$0xf]
        %v1526 = vld [vmem:[#allocation5 + $0x2f8] sm:$0xf]
        %v1527 = vld [vmem:[#allocation5 + $0x2fc] sm:$0xf]
        %v1528 = vld [vmem:[#allocation5 + $0x300] sm:$0xf]
        %v1529 = vld [vmem:[#allocation5 + $0x304] sm:$0xf]
        %v1530 = vld [vmem:[#allocation5 + $0x308] sm:$0xf]
        %v1531 = vld [vmem:[#allocation5 + $0x30c] sm:$0xf]
        %v1532 = vld [vmem:[#allocation5 + $0x310] sm:$0xf]
        %v1533 = vld [vmem:[#allocation5 + $0x314] sm:$0xf]
        %v1534 = vld [vmem:[#allocation5 + $0x318] sm:$0xf]
        %v1535 = vld [vmem:[#allocation5 + $0x31c] sm:$0xf]
        %v1536 = vld [vmem:[#allocation5 + $0x320] sm:$0xf]
        %v1537 = vld [vmem:[#allocation5 + $0x324] sm:$0xf]
        %v1538 = vld [vmem:[#allocation5 + $0x328] sm:$0xf]
        %v1539 = vld [vmem:[#allocation5 + $0x32c] sm:$0xf]
        %v1540 = vld [vmem:[#allocation5 + $0x330] sm:$0xf]
        %v1541 = vld [vmem:[#allocation5 + $0x334] sm:$0xf]
        %v1542 = vld [vmem:[#allocation5 + $0x338] sm:$0xf]
        %v1543 = vld [vmem:[#allocation5 + $0x33c] sm:$0xf]
        %v1544 = vld [vmem:[#allocation5 + $0x340] sm:$0xf]
        %v1545 = vld [vmem:[#allocation5 + $0x344] sm:$0xf]
        %v1546 = vld [vmem:[#allocation5 + $0x348] sm:$0xf]
        %v1547 = vld [vmem:[#allocation5 + $0x34c] sm:$0xf]
        %v1548 = vld [vmem:[#allocation5 + $0x350] sm:$0xf]
        %v1549 = vld [vmem:[#allocation5 + $0x354] sm:$0xf]
        %v1550 = vld [vmem:[#allocation5 + $0x358] sm:$0xf]
        %v1551 = vld [vmem:[#allocation5 + $0x35c] sm:$0xf]
        %v1552 = vld [vmem:[#allocation5 + $0x360] sm:$0xf]
        %v1553 = vld [vmem:[#allocation5 + $0x364] sm:$0xf]
        %v1554 = vld [vmem:[#allocation5 + $0x368] sm:$0xf]
        %v1555 = vld [vmem:[#allocation5 + $0x36c] sm:$0xf]
        %v1556 = vld [vmem:[#allocation5 + $0x370] sm:$0xf]
        %v1557 = vld [vmem:[#allocation5 + $0x374] sm:$0xf]
        %v1558 = vld [vmem:[#allocation5 + $0x378] sm:$0xf]
        %v1559 = vld [vmem:[#allocation5 + $0x37c] sm:$0xf]
        %v1560 = vld [vmem:[#allocation5 + $0x380] sm:$0xf]
        %v1561 = vld [vmem:[#allocation5 + $0x384] sm:$0xf]
        %v1562 = vld [vmem:[#allocation5 + $0x388] sm:$0xf]
        %v1563 = vld [vmem:[#allocation5 + $0x38c] sm:$0xf]
        %v1564 = vld [vmem:[#allocation5 + $0x390] sm:$0xf]
        %v1565 = vld [vmem:[#allocation5 + $0x394] sm:$0xf]
        %v1566 = vld [vmem:[#allocation5 + $0x398] sm:$0xf]
        %v1567 = vld [vmem:[#allocation5 + $0x39c] sm:$0xf]
        %v1568 = vld [vmem:[#allocation5 + $0x3a0] sm:$0xf]
        %v1569 = vld [vmem:[#allocation5 + $0x3a4] sm:$0xf]
        %v1570 = vld [vmem:[#allocation5 + $0x3a8] sm:$0xf]
        %v1571 = vld [vmem:[#allocation5 + $0x3ac] sm:$0xf]
        %v1572 = vld [vmem:[#allocation5 + $0x3b0] sm:$0xf]
        %v1573 = vld [vmem:[#allocation5 + $0x3b4] sm:$0xf]
        %v1574 = vld [vmem:[#allocation5 + $0x3b8] sm:$0xf]
        %v1575 = vld [vmem:[#allocation5 + $0x3bc] sm:$0xf]
        %v1576 = vld [vmem:[#allocation5 + $0x3c0] sm:$0xf]
        %v1577 = vld [vmem:[#allocation5 + $0x3c4] sm:$0xf]
        %v1578 = vld [vmem:[#allocation5 + $0x3c8] sm:$0xf]
        %v1579 = vld [vmem:[#allocation5 + $0x3cc] sm:$0xf]
        %v1580 = vld [vmem:[#allocation5 + $0x3d0] sm:$0xf]
        %v1581 = vld [vmem:[#allocation5 + $0x3d4] sm:$0xf]
        %v1582 = vld [vmem:[#allocation5 + $0x3d8] sm:$0xf]
        %v1583 = vld [vmem:[#allocation5 + $0x3dc] sm:$0xf]
        %v1584 = vld [vmem:[#allocation5 + $0x3e0] sm:$0xf]
        %v1585 = vld [vmem:[#allocation5 + $0x3e4] sm:$0xf]
        %v1586 = vld [vmem:[#allocation5 + $0x3e8] sm:$0xf]
        %v1587 = vld [vmem:[#allocation5 + $0x3ec] sm:$0xf]
        %v1588 = vld [vmem:[#allocation5 + $0x3f0] sm:$0xf]
        %v1589 = vld [vmem:[#allocation5 + $0x3f4] sm:$0xf]
        %v1590 = vld [vmem:[#allocation5 + $0x3f8] sm:$0xf]
        %v1591 = vld [vmem:[#allocation5 + $0x3fc] sm:$0xf]
        %v1592 = vld [vmem:[#allocation5 + $0x400] sm:$0xf]
        %v1593 = vld [vmem:[#allocation5 + $0x404] sm:$0xf]
        %v1594 = vld [vmem:[#allocation5 + $0x408] sm:$0xf]
        %v1595 = vld [vmem:[#allocation5 + $0x40c] sm:$0xf]
        %v1596 = vld [vmem:[#allocation5 + $0x410] sm:$0xf]
        %v1597 = vld [vmem:[#allocation5 + $0x414] sm:$0xf]
        %v1598 = vld [vmem:[#allocation5 + $0x418] sm:$0xf]
        %v1599 = vld [vmem:[#allocation5 + $0x41c] sm:$0xf]
        %v1600 = vld [vmem:[#allocation5 + $0x420] sm:$0xf]
        %v1601 = vld [vmem:[#allocation5 + $0x424] sm:$0xf]
        %v1602 = vld [vmem:[#allocation5 + $0x428] sm:$0xf]
        %v1603 = vld [vmem:[#allocation5 + $0x42c] sm:$0xf]
        %v1604 = vld [vmem:[#allocation5 + $0x430] sm:$0xf]
        %v1605 = vld [vmem:[#allocation5 + $0x434] sm:$0xf]
        %v1606 = vld [vmem:[#allocation5 + $0x438] sm:$0xf]
        %v1607 = vld [vmem:[#allocation5 + $0x43c] sm:$0xf]
        %v1608 = vld [vmem:[#allocation5 + $0x440] sm:$0xf]
        %v1609 = vld [vmem:[#allocation5 + $0x444] sm:$0xf]
        %v1610 = vld [vmem:[#allocation5 + $0x448] sm:$0xf]
        %v1611 = vld [vmem:[#allocation5 + $0x44c] sm:$0xf]
        %v1612 = vld [vmem:[#allocation5 + $0x450] sm:$0xf]
        %v1613 = vld [vmem:[#allocation5 + $0x454] sm:$0xf]
        %v1614 = vld [vmem:[#allocation5 + $0x458] sm:$0xf]
        %v1615 = vld [vmem:[#allocation5 + $0x45c] sm:$0xf]
        %v1616 = vld [vmem:[#allocation5 + $0x460] sm:$0xf]
        %v1617 = vld [vmem:[#allocation5 + $0x464] sm:$0xf]
        %v1618 = vld [vmem:[#allocation5 + $0x468] sm:$0xf]
        %v1619 = vld [vmem:[#allocation5 + $0x46c] sm:$0xf]
        %v1620 = vld [vmem:[#allocation5 + $0x470] sm:$0xf]
        %v1621 = vld [vmem:[#allocation5 + $0x474] sm:$0xf]
        %v1622 = vld [vmem:[#allocation5 + $0x478] sm:$0xf]
        %v1623 = vld [vmem:[#allocation5 + $0x47c] sm:$0xf]
        %v1624 = vld [vmem:[#allocation5 + $0x480] sm:$0xf]
        %v1625 = vld [vmem:[#allocation5 + $0x484] sm:$0xf]
        %v1626 = vld [vmem:[#allocation5 + $0x488] sm:$0xf]
        %v1627 = vld [vmem:[#allocation5 + $0x48c] sm:$0xf]
        %v1628 = vld [vmem:[#allocation5 + $0x490] sm:$0xf]
        %v1629 = vld [vmem:[#allocation5 + $0x494] sm:$0xf]
        %v1630 = vld [vmem:[#allocation5 + $0x498] sm:$0xf]
        %v1631 = vld [vmem:[#allocation5 + $0x49c] sm:$0xf]
        %v1632 = vld [vmem:[#allocation5 + $0x4a0] sm:$0xf]
        %v1633 = vld [vmem:[#allocation5 + $0x4a4] sm:$0xf]
        %v1634 = vld [vmem:[#allocation5 + $0x4a8] sm:$0xf]
        %v1635 = vld [vmem:[#allocation5 + $0x4ac] sm:$0xf]
        %v1636 = vld [vmem:[#allocation5 + $0x4b0] sm:$0xf]
        %v1637 = vld [vmem:[#allocation5 + $0x4b4] sm:$0xf]
        %v1638 = vld [vmem:[#allocation5 + $0x4b8] sm:$0xf]
        %v1639 = vld [vmem:[#allocation5 + $0x4bc] sm:$0xf]
        %v1640 = vld [vmem:[#allocation5 + $0x4c0] sm:$0xf]
        %v1641 = vld [vmem:[#allocation5 + $0x4c4] sm:$0xf]
        %v1642 = vld [vmem:[#allocation5 + $0x4c8] sm:$0xf]
        %v1643 = vld [vmem:[#allocation5 + $0x4cc] sm:$0xf]
        %v1644 = vld [vmem:[#allocation5 + $0x4d0] sm:$0xf]
        %v1645 = vld [vmem:[#allocation5 + $0x4d4] sm:$0xf]
        %v1646 = vld [vmem:[#allocation5 + $0x4d8] sm:$0xf]
        %v1647 = vld [vmem:[#allocation5 + $0x4dc] sm:$0xf]
        %v1648 = vld [vmem:[#allocation5 + $0x4e0] sm:$0xf]
        %v1649 = vld [vmem:[#allocation5 + $0x4e4] sm:$0xf]
        %v1650 = vld [vmem:[#allocation5 + $0x4e8] sm:$0xf]
        %v1651 = vld [vmem:[#allocation5 + $0x4ec] sm:$0xf]
        %v1652 = vld [vmem:[#allocation5 + $0x4f0] sm:$0xf]
        %v1653 = vld [vmem:[#allocation5 + $0x4f4] sm:$0xf]
        %v1654 = vld [vmem:[#allocation5 + $0x4f8] sm:$0xf]
        %v1655 = vld [vmem:[#allocation5 + $0x4fc] sm:$0xf]
        %v1656 = vld [vmem:[#allocation5 + $0x500] sm:$0xf]
        %v1657 = vld [vmem:[#allocation5 + $0x504] sm:$0xf]
        %v1658 = vld [vmem:[#allocation5 + $0x508] sm:$0xf]
        %v1659 = vld [vmem:[#allocation5 + $0x50c] sm:$0xf]
        %v1660 = vld [vmem:[#allocation5 + $0x510] sm:$0xf]
        %v1661 = vld [vmem:[#allocation5 + $0x514] sm:$0xf]
        %v1662 = vld [vmem:[#allocation5 + $0x518] sm:$0xf]
        %v1663 = vld [vmem:[#allocation5 + $0x51c] sm:$0xf]
        %v1664 = vld [vmem:[#allocation5 + $0x520] sm:$0xf]
        %v1665 = vld [vmem:[#allocation5 + $0x524] sm:$0xf]
        %v1666 = vld [vmem:[#allocation5 + $0x528] sm:$0xf]
        %v1667 = vld [vmem:[#allocation5 + $0x52c] sm:$0xf]
        %v1668 = vld [vmem:[#allocation5 + $0x530] sm:$0xf]
        %v1669 = vld [vmem:[#allocation5 + $0x534] sm:$0xf]
        %v1670 = vld [vmem:[#allocation5 + $0x538] sm:$0xf]
        %v1671 = vld [vmem:[#allocation5 + $0x53c] sm:$0xf]
        %v1672 = vld [vmem:[#allocation5 + $0x540] sm:$0xf]
        %v1673 = vld [vmem:[#allocation5 + $0x544] sm:$0xf]
        %v1674 = vld [vmem:[#allocation5 + $0x548] sm:$0xf]
        %v1675 = vld [vmem:[#allocation5 + $0x54c] sm:$0xf]
        %v1676 = vld [vmem:[#allocation5 + $0x550] sm:$0xf]
        %v1677 = vld [vmem:[#allocation5 + $0x554] sm:$0xf]
        %v1678 = vld [vmem:[#allocation5 + $0x558] sm:$0xf]
        %v1679 = vld [vmem:[#allocation5 + $0x55c] sm:$0xf]
        %v1680 = vld [vmem:[#allocation5 + $0x560] sm:$0xf]
        %v1681 = vld [vmem:[#allocation5 + $0x564] sm:$0xf]
        %v1682 = vld [vmem:[#allocation5 + $0x568] sm:$0xf]
        %v1683 = vld [vmem:[#allocation5 + $0x56c] sm:$0xf]
        %v1684 = vld [vmem:[#allocation5 + $0x570] sm:$0xf]
        %v1685 = vld [vmem:[#allocation5 + $0x574] sm:$0xf]
        %v1686 = vld [vmem:[#allocation5 + $0x578] sm:$0xf]
        %v1687 = vld [vmem:[#allocation5 + $0x57c] sm:$0xf]
        %v1688 = vld [vmem:[#allocation5 + $0x580] sm:$0xf]
        %v1689 = vld [vmem:[#allocation5 + $0x584] sm:$0xf]
        %v1690 = vld [vmem:[#allocation5 + $0x588] sm:$0xf]
        %v1691 = vld [vmem:[#allocation5 + $0x58c] sm:$0xf]
        %v1692 = vld [vmem:[#allocation5 + $0x590] sm:$0xf]
        %v1693 = vld [vmem:[#allocation5 + $0x594] sm:$0xf]
        %v1694 = vld [vmem:[#allocation5 + $0x598] sm:$0xf]
        %v1695 = vld [vmem:[#allocation5 + $0x59c] sm:$0xf]
        %v1696 = vld [vmem:[#allocation5 + $0x5a0] sm:$0xf]
        %v1697 = vld [vmem:[#allocation5 + $0x5a4] sm:$0xf]
        %v1698 = vld [vmem:[#allocation5 + $0x5a8] sm:$0xf]
        %v1699 = vld [vmem:[#allocation5 + $0x5ac] sm:$0xf]
        %v1700 = vld [vmem:[#allocation5 + $0x5b0] sm:$0xf]
        %v1701 = vld [vmem:[#allocation5 + $0x5b4] sm:$0xf]
        %v1702 = vld [vmem:[#allocation5 + $0x5b8] sm:$0xf]
        %v1703 = vld [vmem:[#allocation5 + $0x5bc] sm:$0xf]
        %v1704 = vld [vmem:[#allocation5 + $0x5c0] sm:$0xf]
        %v1705 = vld [vmem:[#allocation5 + $0x5c4] sm:$0xf]
        %v1706 = vld [vmem:[#allocation5 + $0x5c8] sm:$0xf]
        %v1707 = vld [vmem:[#allocation5 + $0x5cc] sm:$0xf]
        %v1708 = vld [vmem:[#allocation5 + $0x5d0] sm:$0xf]
        %v1709 = vld [vmem:[#allocation5 + $0x5d4] sm:$0xf]
        %v1710 = vld [vmem:[#allocation5 + $0x5d8] sm:$0xf]
        %v1711 = vld [vmem:[#allocation5 + $0x5dc] sm:$0xf]
        %v1712 = vld [vmem:[#allocation5 + $0x5e0] sm:$0xf]
        %v1713 = vld [vmem:[#allocation5 + $0x5e4] sm:$0xf]
        %v1714 = vld [vmem:[#allocation5 + $0x5e8] sm:$0xf]
        %v1715 = vld [vmem:[#allocation5 + $0x5ec] sm:$0xf]
        %v1716 = vld [vmem:[#allocation5 + $0x5f0] sm:$0xf]
        %v1717 = vld [vmem:[#allocation5 + $0x5f4] sm:$0xf]
        %v1718 = vld [vmem:[#allocation5 + $0x5f8] sm:$0xf]
        %v1719 = vld [vmem:[#allocation5 + $0x5fc] sm:$0xf]
        %v1720 = vld [vmem:[#allocation5 + $0x600] sm:$0xf]
        %v1721 = vld [vmem:[#allocation5 + $0x604] sm:$0xf]
        %v1722 = vld [vmem:[#allocation5 + $0x608] sm:$0xf]
        %v1723 = vld [vmem:[#allocation5 + $0x60c] sm:$0xf]
        %v1724 = vld [vmem:[#allocation5 + $0x610] sm:$0xf]
        %v1725 = vld [vmem:[#allocation5 + $0x614] sm:$0xf]
        %v1726 = vld [vmem:[#allocation5 + $0x618] sm:$0xf]
        %v1727 = vld [vmem:[#allocation5 + $0x61c] sm:$0xf]
        %v1728 = vld [vmem:[#allocation5 + $0x620] sm:$0xf]
        %v1729 = vld [vmem:[#allocation5 + $0x624] sm:$0xf]
        %v1730 = vld [vmem:[#allocation5 + $0x628] sm:$0xf]
        %v1731 = vld [vmem:[#allocation5 + $0x62c] sm:$0xf]
        %v1732 = vld [vmem:[#allocation5 + $0x630] sm:$0xf]
        %v1733 = vld [vmem:[#allocation5 + $0x634] sm:$0xf]
        %v1734 = vld [vmem:[#allocation5 + $0x638] sm:$0xf]
        %v1735 = vld [vmem:[#allocation5 + $0x63c] sm:$0xf]
        %v1736 = vld [vmem:[#allocation5 + $0x640] sm:$0xf]
        %v1737 = vld [vmem:[#allocation5 + $0x644] sm:$0xf]
        %v1738 = vld [vmem:[#allocation5 + $0x648] sm:$0xf]
        %v1739 = vld [vmem:[#allocation5 + $0x64c] sm:$0xf]
        %v1740 = vld [vmem:[#allocation5 + $0x650] sm:$0xf]
        %v1741 = vld [vmem:[#allocation5 + $0x654] sm:$0xf]
        %v1742 = vld [vmem:[#allocation5 + $0x658] sm:$0xf]
        %v1743 = vld [vmem:[#allocation5 + $0x65c] sm:$0xf]
        %v1744 = vld [vmem:[#allocation5 + $0x660] sm:$0xf]
        %v1745 = vld [vmem:[#allocation5 + $0x664] sm:$0xf]
        %v1746 = vld [vmem:[#allocation5 + $0x668] sm:$0xf]
        %v1747 = vld [vmem:[#allocation5 + $0x66c] sm:$0xf]
        %v1748 = vld [vmem:[#allocation5 + $0x670] sm:$0xf]
        %v1749 = vld [vmem:[#allocation5 + $0x674] sm:$0xf]
        %v1750 = vld [vmem:[#allocation5 + $0x678] sm:$0xf]
        %v1751 = vld [vmem:[#allocation5 + $0x67c] sm:$0xf]
        %v1752 = vld [vmem:[#allocation5 + $0x680] sm:$0xf]
        %v1753 = vld [vmem:[#allocation5 + $0x684] sm:$0xf]
        %v1754 = vld [vmem:[#allocation5 + $0x688] sm:$0xf]
        %v1755 = vld [vmem:[#allocation5 + $0x68c] sm:$0xf]
        %v1756 = vld [vmem:[#allocation5 + $0x690] sm:$0xf]
        %v1757 = vld [vmem:[#allocation5 + $0x694] sm:$0xf]
        %v1758 = vld [vmem:[#allocation5 + $0x698] sm:$0xf]
        %v1759 = vld [vmem:[#allocation5 + $0x69c] sm:$0xf]
        %v1760 = vld [vmem:[#allocation5 + $0x6a0] sm:$0xf]
        %v1761 = vld [vmem:[#allocation5 + $0x6a4] sm:$0xf]
        %v1762 = vld [vmem:[#allocation5 + $0x6a8] sm:$0xf]
        %v1763 = vld [vmem:[#allocation5 + $0x6ac] sm:$0xf]
        %v1764 = vld [vmem:[#allocation5 + $0x6b0] sm:$0xf]
        %v1765 = vld [vmem:[#allocation5 + $0x6b4] sm:$0xf]
        %v1766 = vld [vmem:[#allocation5 + $0x6b8] sm:$0xf]
        %v1767 = vld [vmem:[#allocation5 + $0x6bc] sm:$0xf]
        %v1768 = vld [vmem:[#allocation5 + $0x6c0] sm:$0xf]
        %v1769 = vld [vmem:[#allocation5 + $0x6c4] sm:$0xf]
        %v1770 = vld [vmem:[#allocation5 + $0x6c8] sm:$0xf]
        %v1771 = vld [vmem:[#allocation5 + $0x6cc] sm:$0xf]
        %v1772 = vld [vmem:[#allocation5 + $0x6d0] sm:$0xf]
        %v1773 = vld [vmem:[#allocation5 + $0x6d4] sm:$0xf]
        %v1774 = vld [vmem:[#allocation5 + $0x6d8] sm:$0xf]
        %v1775 = vld [vmem:[#allocation5 + $0x6dc] sm:$0xf]
        %v1776 = vld [vmem:[#allocation5 + $0x6e0] sm:$0xf]
        %v1777 = vld [vmem:[#allocation5 + $0x6e4] sm:$0xf]
        %v1778 = vld [vmem:[#allocation5 + $0x6e8] sm:$0xf]
        %v1779 = vld [vmem:[#allocation5 + $0x6ec] sm:$0xf]
        %v1780 = vld [vmem:[#allocation5 + $0x6f0] sm:$0xf]
        %v1781 = vld [vmem:[#allocation5 + $0x6f4] sm:$0xf]
        %v1782 = vld [vmem:[#allocation5 + $0x6f8] sm:$0xf]
        %v1783 = vld [vmem:[#allocation5 + $0x6fc] sm:$0xf]
        %v1784 = vld [vmem:[#allocation5 + $0x700] sm:$0xf]
        %v1785 = vld [vmem:[#allocation5 + $0x704] sm:$0xf]
        %v1786 = vld [vmem:[#allocation5 + $0x708] sm:$0xf]
        %v1787 = vld [vmem:[#allocation5 + $0x70c] sm:$0xf]
        %v1788 = vld [vmem:[#allocation5 + $0x710] sm:$0xf]
        %v1789 = vld [vmem:[#allocation5 + $0x714] sm:$0xf]
        %v1790 = vld [vmem:[#allocation5 + $0x718] sm:$0xf]
        %v1791 = vld [vmem:[#allocation5 + $0x71c] sm:$0xf]
        %v1792 = vld [vmem:[#allocation5 + $0x720] sm:$0xf]
        %v1793 = vld [vmem:[#allocation5 + $0x724] sm:$0xf]
        %v1794 = vld [vmem:[#allocation5 + $0x728] sm:$0xf]
        %v1795 = vld [vmem:[#allocation5 + $0x72c] sm:$0xf]
        %v1796 = vld [vmem:[#allocation5 + $0x730] sm:$0xf]
        %v1797 = vld [vmem:[#allocation5 + $0x734] sm:$0xf]
        %v1798 = vld [vmem:[#allocation5 + $0x738] sm:$0xf]
        %v1799 = vld [vmem:[#allocation5 + $0x73c] sm:$0xf]
        %v1800 = vld [vmem:[#allocation5 + $0x740] sm:$0xf]
        %v1801 = vld [vmem:[#allocation5 + $0x744] sm:$0xf]
        %v1802 = vld [vmem:[#allocation5 + $0x748] sm:$0xf]
        %v1803 = vld [vmem:[#allocation5 + $0x74c] sm:$0xf]
        %v1804 = vld [vmem:[#allocation5 + $0x750] sm:$0xf]
        %v1805 = vld [vmem:[#allocation5 + $0x754] sm:$0xf]
        %v1806 = vld [vmem:[#allocation5 + $0x758] sm:$0xf]
        %v1807 = vld [vmem:[#allocation5 + $0x75c] sm:$0xf]
        %v1808 = vld [vmem:[#allocation5 + $0x760] sm:$0xf]
        %v1809 = vld [vmem:[#allocation5 + $0x764] sm:$0xf]
        %v1810 = vld [vmem:[#allocation5 + $0x768] sm:$0xf]
        %v1811 = vld [vmem:[#allocation5 + $0x76c] sm:$0xf]
        %v1812 = vld [vmem:[#allocation5 + $0x770] sm:$0xf]
        %v1813 = vld [vmem:[#allocation5 + $0x774] sm:$0xf]
        %v1814 = vld [vmem:[#allocation5 + $0x778] sm:$0xf]
        %v1815 = vld [vmem:[#allocation5 + $0x77c] sm:$0xf]
        %v1816 = vld [vmem:[#allocation5 + $0x780] sm:$0xf]
        %v1817 = vld [vmem:[#allocation5 + $0x784] sm:$0xf]
        %v1818 = vld [vmem:[#allocation5 + $0x788] sm:$0xf]
        %v1819 = vld [vmem:[#allocation5 + $0x78c] sm:$0xf]
        %v1820 = vld [vmem:[#allocation5 + $0x790] sm:$0xf]
        %v1821 = vld [vmem:[#allocation5 + $0x794] sm:$0xf]
        %v1822 = vld [vmem:[#allocation5 + $0x798] sm:$0xf]
        %v1823 = vld [vmem:[#allocation5 + $0x79c] sm:$0xf]
        %v1824 = vld [vmem:[#allocation5 + $0x7a0] sm:$0xf]
        %v1825 = vld [vmem:[#allocation5 + $0x7a4] sm:$0xf]
        %v1826 = vld [vmem:[#allocation5 + $0x7a8] sm:$0xf]
        %v1827 = vld [vmem:[#allocation5 + $0x7ac] sm:$0xf]
        %v1828 = vld [vmem:[#allocation5 + $0x7b0] sm:$0xf]
        %v1829 = vld [vmem:[#allocation5 + $0x7b4] sm:$0xf]
        %v1830 = vld [vmem:[#allocation5 + $0x7b8] sm:$0xf]
        %v1831 = vld [vmem:[#allocation5 + $0x7bc] sm:$0xf]
        %v1832 = vld [vmem:[#allocation5 + $0x7c0] sm:$0xf]
        %v1833 = vld [vmem:[#allocation5 + $0x7c4] sm:$0xf]
        %v1834 = vld [vmem:[#allocation5 + $0x7c8] sm:$0xf]
        %v1835 = vld [vmem:[#allocation5 + $0x7cc] sm:$0xf]
        %v1836 = vld [vmem:[#allocation5 + $0x7d0] sm:$0xf]
        %v1837 = vld [vmem:[#allocation5 + $0x7d4] sm:$0xf]
        %v1838 = vld [vmem:[#allocation5 + $0x7d8] sm:$0xf]
        %v1839 = vld [vmem:[#allocation5 + $0x7dc] sm:$0xf]
        %v1840 = vld [vmem:[#allocation5 + $0x7e0] sm:$0xf]
        %v1841 = vld [vmem:[#allocation5 + $0x7e4] sm:$0xf]
        %v1842 = vld [vmem:[#allocation5 + $0x7e8] sm:$0xf]
        %v1843 = vld [vmem:[#allocation5 + $0x7ec] sm:$0xf]
        %v1844 = vld [vmem:[#allocation5 + $0x7f0] sm:$0xf]
        %v1845 = vld [vmem:[#allocation5 + $0x7f4] sm:$0xf]
        %v1846 = vld [vmem:[#allocation5 + $0x7f8] sm:$0xf]
        %v1847 = vld [vmem:[#allocation5 + $0x7fc] sm:$0xf]
        %v1848 = vld [vmem:[#allocation5 + $0x800] sm:$0xf]
        %v1849 = vld [vmem:[#allocation5 + $0x804] sm:$0xf]
        %v1850 = vld [vmem:[#allocation5 + $0x808] sm:$0xf]
        %v1851 = vld [vmem:[#allocation5 + $0x80c] sm:$0xf]
        %v1852 = vld [vmem:[#allocation5 + $0x810] sm:$0xf]
        %v1853 = vld [vmem:[#allocation5 + $0x814] sm:$0xf]
        %v1854 = vld [vmem:[#allocation5 + $0x818] sm:$0xf]
        %v1855 = vld [vmem:[#allocation5 + $0x81c] sm:$0xf]
        %v1856 = vld [vmem:[#allocation5 + $0x820] sm:$0xf]
        %v1857 = vld [vmem:[#allocation5 + $0x824] sm:$0xf]
        %v1858 = vld [vmem:[#allocation5 + $0x828] sm:$0xf]
        %v1859 = vld [vmem:[#allocation5 + $0x82c] sm:$0xf]
        %v1860 = vld [vmem:[#allocation5 + $0x830] sm:$0xf]
        %v1861 = vld [vmem:[#allocation5 + $0x834] sm:$0xf]
        %v1862 = vld [vmem:[#allocation5 + $0x838] sm:$0xf]
        %v1863 = vld [vmem:[#allocation5 + $0x83c] sm:$0xf]
        %v1864 = vld [vmem:[#allocation5 + $0x840] sm:$0xf]
        %v1865 = vld [vmem:[#allocation5 + $0x844] sm:$0xf]
        %v1866 = vld [vmem:[#allocation5 + $0x848] sm:$0xf]
        %v1867 = vld [vmem:[#allocation5 + $0x84c] sm:$0xf]
        %v1868 = vld [vmem:[#allocation5 + $0x850] sm:$0xf]
        %v1869 = vld [vmem:[#allocation5 + $0x854] sm:$0xf]
        %v1870 = vld [vmem:[#allocation5 + $0x858] sm:$0xf]
        %v1871 = vld [vmem:[#allocation5 + $0x85c] sm:$0xf]
        %v1872 = vld [vmem:[#allocation5 + $0x860] sm:$0xf]
        %v1873 = vld [vmem:[#allocation5 + $0x864] sm:$0xf]
        %v1874 = vld [vmem:[#allocation5 + $0x868] sm:$0xf]
        %v1875 = vld [vmem:[#allocation5 + $0x86c] sm:$0xf]
        %v1876 = vld [vmem:[#allocation5 + $0x870] sm:$0xf]
        %v1877 = vld [vmem:[#allocation5 + $0x874] sm:$0xf]
        %v1878 = vld [vmem:[#allocation5 + $0x878] sm:$0xf]
        %v1879 = vld [vmem:[#allocation5 + $0x87c] sm:$0xf]
        %v1880 = vld [vmem:[#allocation5 + $0x880] sm:$0xf]
        %v1881 = vld [vmem:[#allocation5 + $0x884] sm:$0xf]
        %v1882 = vld [vmem:[#allocation5 + $0x888] sm:$0xf]
        %v1883 = vld [vmem:[#allocation5 + $0x88c] sm:$0xf]
        %v1884 = vld [vmem:[#allocation5 + $0x890] sm:$0xf]
        %v1885 = vld [vmem:[#allocation5 + $0x894] sm:$0xf]
        %v1886 = vld [vmem:[#allocation5 + $0x898] sm:$0xf]
        %v1887 = vld [vmem:[#allocation5 + $0x89c] sm:$0xf]
        %v1888 = vld [vmem:[#allocation5 + $0x8a0] sm:$0xf]
        %v1889 = vld [vmem:[#allocation5 + $0x8a4] sm:$0xf]
        %v1890 = vld [vmem:[#allocation5 + $0x8a8] sm:$0xf]
        %v1891 = vld [vmem:[#allocation5 + $0x8ac] sm:$0xf]
        %v1892 = vld [vmem:[#allocation5 + $0x8b0] sm:$0xf]
        %v1893 = vld [vmem:[#allocation5 + $0x8b4] sm:$0xf]
        %v1894 = vld [vmem:[#allocation5 + $0x8b8] sm:$0xf]
        %v1895 = vld [vmem:[#allocation5 + $0x8bc] sm:$0xf]
        %v1896 = vld [vmem:[#allocation5 + $0x8c0] sm:$0xf]
        %v1897 = vld [vmem:[#allocation5 + $0x8c4] sm:$0xf]
        %v1898 = vld [vmem:[#allocation5 + $0x8c8] sm:$0xf]
        %v1899 = vld [vmem:[#allocation5 + $0x8cc] sm:$0xf]
        %v1900 = vld [vmem:[#allocation5 + $0x8d0] sm:$0xf]
        %v1901 = vld [vmem:[#allocation5 + $0x8d4] sm:$0xf]
        %v1902 = vld [vmem:[#allocation5 + $0x8d8] sm:$0xf]
        %v1903 = vld [vmem:[#allocation5 + $0x8dc] sm:$0xf]
        %v1904 = vld [vmem:[#allocation5 + $0x8e0] sm:$0xf]
        %v1905 = vld [vmem:[#allocation5 + $0x8e4] sm:$0xf]
        %v1906 = vld [vmem:[#allocation5 + $0x8e8] sm:$0xf]
        %v1907 = vld [vmem:[#allocation5 + $0x8ec] sm:$0xf]
        %v1908 = vld [vmem:[#allocation5 + $0x8f0] sm:$0xf]
        %v1909 = vld [vmem:[#allocation5 + $0x8f4] sm:$0xf]
        %v1910 = vld [vmem:[#allocation5 + $0x8f8] sm:$0xf]
        %v1911 = vld [vmem:[#allocation5 + $0x8fc] sm:$0xf]
        %v1912 = vld [vmem:[#allocation7] sm:$0x1]
        %v1914 = vlaneseq
        %v1915 = vshrl.u32 %v1914, 7
        %v1916 = vsub.s32 0, %v1915
        %v1917 = vrot.slane %v1912, %v1916
        %v2495 = vunpack.c.l.b16 %v1336
        %v2496 = vunpack.c.l.b16 %v1337
        %v2497 = vunpack.c.l.b16 %v1338
        %v2498 = vunpack.c.l.b16 %v1339
        %v2499 = vunpack.c.l.b16 %v1340
        %v2500 = vunpack.c.l.b16 %v1341
        %v2501 = vunpack.c.l.b16 %v1342
        %v2502 = vunpack.c.l.b16 %v1343
        %v2503 = vunpack.c.l.b16 %v1344
        %v2504 = vunpack.c.l.b16 %v1345
        %v2505 = vunpack.c.l.b16 %v1346
        %v2506 = vunpack.c.l.b16 %v1347
        %v2507 = vunpack.c.l.b16 %v1348
        %v2508 = vunpack.c.l.b16 %v1349
        %v2509 = vunpack.c.l.b16 %v1350
        %v2510 = vunpack.c.l.b16 %v1351
        %v2511 = vunpack.c.l.b16 %v1352
        %v2512 = vunpack.c.l.b16 %v1353
        %v2513 = vunpack.c.l.b16 %v1354
        %v2514 = vunpack.c.l.b16 %v1355
        %v2515 = vunpack.c.l.b16 %v1356
        %v2516 = vunpack.c.l.b16 %v1357
        %v2517 = vunpack.c.l.b16 %v1358
        %v2518 = vunpack.c.l.b16 %v1359
        %v2519 = vunpack.c.l.b16 %v1360
        %v2520 = vunpack.c.l.b16 %v1361
        %v2521 = vunpack.c.l.b16 %v1362
        %v2522 = vunpack.c.l.b16 %v1363
        %v2523 = vunpack.c.l.b16 %v1364
        %v2524 = vunpack.c.l.b16 %v1365
        %v2525 = vunpack.c.l.b16 %v1366
        %v2526 = vunpack.c.l.b16 %v1367
        %v2527 = vunpack.c.l.b16 %v1368
        %v2528 = vunpack.c.l.b16 %v1369
        %v2529 = vunpack.c.l.b16 %v1370
        %v2530 = vunpack.c.l.b16 %v1371
        %v2531 = vunpack.c.l.b16 %v1372
        %v2532 = vunpack.c.l.b16 %v1373
        %v2533 = vunpack.c.l.b16 %v1374
        %v2534 = vunpack.c.l.b16 %v1375
        %v2535 = vunpack.c.l.b16 %v1376
        %v2536 = vunpack.c.l.b16 %v1377
        %v2537 = vunpack.c.l.b16 %v1378
        %v2538 = vunpack.c.l.b16 %v1379
        %v2539 = vunpack.c.l.b16 %v1380
        %v2540 = vunpack.c.l.b16 %v1381
        %v2541 = vunpack.c.l.b16 %v1382
        %v2542 = vunpack.c.l.b16 %v1383
        %v2543 = vunpack.c.l.b16 %v1384
        %v2544 = vunpack.c.l.b16 %v1385
        %v2545 = vunpack.c.l.b16 %v1386
        %v2546 = vunpack.c.l.b16 %v1387
        %v2547 = vunpack.c.l.b16 %v1388
        %v2548 = vunpack.c.l.b16 %v1389
        %v2549 = vunpack.c.l.b16 %v1390
        %v2550 = vunpack.c.l.b16 %v1391
        %v2551 = vunpack.c.l.b16 %v1392
        %v2552 = vunpack.c.l.b16 %v1393
        %v2553 = vunpack.c.l.b16 %v1394
        %v2554 = vunpack.c.l.b16 %v1395
        %v2555 = vunpack.c.l.b16 %v1396
        %v2556 = vunpack.c.l.b16 %v1397
        %v2557 = vunpack.c.l.b16 %v1398
        %v2558 = vunpack.c.l.b16 %v1399
        %v2559 = vunpack.c.l.b16 %v1400
        %v2560 = vunpack.c.l.b16 %v1401
        %v2561 = vunpack.c.l.b16 %v1402
        %v2562 = vunpack.c.l.b16 %v1403
        %v2563 = vunpack.c.l.b16 %v1404
        %v2564 = vunpack.c.l.b16 %v1405
        %v2565 = vunpack.c.l.b16 %v1406
        %v2566 = vunpack.c.l.b16 %v1407
        %v2567 = vunpack.c.l.b16 %v1408
        %v2568 = vunpack.c.l.b16 %v1409
        %v2569 = vunpack.c.l.b16 %v1410
        %v2570 = vunpack.c.l.b16 %v1411
        %v2571 = vunpack.c.l.b16 %v1412
        %v2572 = vunpack.c.l.b16 %v1413
        %v2573 = vunpack.c.l.b16 %v1414
        %v2574 = vunpack.c.l.b16 %v1415
        %v2575 = vunpack.c.l.b16 %v1416
        %v2576 = vunpack.c.l.b16 %v1417
        %v2577 = vunpack.c.l.b16 %v1418
        %v2578 = vunpack.c.l.b16 %v1419
        %v2579 = vunpack.c.l.b16 %v1420
        %v2580 = vunpack.c.l.b16 %v1421
        %v2581 = vunpack.c.l.b16 %v1422
        %v2582 = vunpack.c.l.b16 %v1423
        %v2583 = vunpack.c.l.b16 %v1424
        %v2584 = vunpack.c.l.b16 %v1425
        %v2585 = vunpack.c.l.b16 %v1426
        %v2586 = vunpack.c.l.b16 %v1427
        %v2587 = vunpack.c.l.b16 %v1428
        %v2588 = vunpack.c.l.b16 %v1429
        %v2589 = vunpack.c.l.b16 %v1430
        %v2590 = vunpack.c.l.b16 %v1431
        %v2591 = vunpack.c.l.b16 %v1432
        %v2592 = vunpack.c.l.b16 %v1433
        %v2593 = vunpack.c.l.b16 %v1434
        %v2594 = vunpack.c.l.b16 %v1435
        %v2595 = vunpack.c.l.b16 %v1436
        %v2596 = vunpack.c.l.b16 %v1437
        %v2597 = vunpack.c.l.b16 %v1438
        %v2598 = vunpack.c.l.b16 %v1439
        %v2599 = vunpack.c.l.b16 %v1440
        %v2600 = vunpack.c.l.b16 %v1441
        %v2601 = vunpack.c.l.b16 %v1442
        %v2602 = vunpack.c.l.b16 %v1443
        %v2603 = vunpack.c.l.b16 %v1444
        %v2604 = vunpack.c.l.b16 %v1445
        %v2605 = vunpack.c.l.b16 %v1446
        %v2606 = vunpack.c.l.b16 %v1447
        %v2607 = vunpack.c.l.b16 %v1448
        %v2608 = vunpack.c.l.b16 %v1449
        %v2609 = vunpack.c.l.b16 %v1450
        %v2610 = vunpack.c.l.b16 %v1451
        %v2611 = vunpack.c.l.b16 %v1452
        %v2612 = vunpack.c.l.b16 %v1453
        %v2613 = vunpack.c.l.b16 %v1454
        %v2614 = vunpack.c.l.b16 %v1455
        %v2615 = vunpack.c.l.b16 %v1456
        %v2616 = vunpack.c.l.b16 %v1457
        %v2617 = vunpack.c.l.b16 %v1458
        %v2618 = vunpack.c.l.b16 %v1459
        %v2619 = vunpack.c.l.b16 %v1460
        %v2620 = vunpack.c.l.b16 %v1461
        %v2621 = vunpack.c.l.b16 %v1462
        %v2622 = vunpack.c.l.b16 %v1463
        %v2623 = vunpack.c.l.b16 %v1464
        %v2624 = vunpack.c.l.b16 %v1465
        %v2625 = vunpack.c.l.b16 %v1466
        %v2626 = vunpack.c.l.b16 %v1467
        %v2627 = vunpack.c.l.b16 %v1468
        %v2628 = vunpack.c.l.b16 %v1469
        %v2629 = vunpack.c.l.b16 %v1470
        %v2630 = vunpack.c.l.b16 %v1471
        %v2631 = vunpack.c.l.b16 %v1472
        %v2632 = vunpack.c.l.b16 %v1473
        %v2633 = vunpack.c.l.b16 %v1474
        %v2634 = vunpack.c.l.b16 %v1475
        %v2635 = vunpack.c.l.b16 %v1476
        %v2636 = vunpack.c.l.b16 %v1477
        %v2637 = vunpack.c.l.b16 %v1478
        %v2638 = vunpack.c.l.b16 %v1479
        %v2639 = vunpack.c.l.b16 %v1480
        %v2640 = vunpack.c.l.b16 %v1481
        %v2641 = vunpack.c.l.b16 %v1482
        %v2642 = vunpack.c.l.b16 %v1483
        %v2643 = vunpack.c.l.b16 %v1484
        %v2644 = vunpack.c.l.b16 %v1485
        %v2645 = vunpack.c.l.b16 %v1486
        %v2646 = vunpack.c.l.b16 %v1487
        %v2647 = vunpack.c.l.b16 %v1488
        %v2648 = vunpack.c.l.b16 %v1489
        %v2649 = vunpack.c.l.b16 %v1490
        %v2650 = vunpack.c.l.b16 %v1491
        %v2651 = vunpack.c.l.b16 %v1492
        %v2652 = vunpack.c.l.b16 %v1493
        %v2653 = vunpack.c.l.b16 %v1494
        %v2654 = vunpack.c.l.b16 %v1495
        %v2655 = vunpack.c.l.b16 %v1496
        %v2656 = vunpack.c.l.b16 %v1497
        %v2657 = vunpack.c.l.b16 %v1498
        %v2658 = vunpack.c.l.b16 %v1499
        %v2659 = vunpack.c.l.b16 %v1500
        %v2660 = vunpack.c.l.b16 %v1501
        %v2661 = vunpack.c.l.b16 %v1502
        %v2662 = vunpack.c.l.b16 %v1503
        %v2663 = vunpack.c.l.b16 %v1504
        %v2664 = vunpack.c.l.b16 %v1505
        %v2665 = vunpack.c.l.b16 %v1506
        %v2666 = vunpack.c.l.b16 %v1507
        %v2667 = vunpack.c.l.b16 %v1508
        %v2668 = vunpack.c.l.b16 %v1509
        %v2669 = vunpack.c.l.b16 %v1510
        %v2670 = vunpack.c.l.b16 %v1511
        %v2671 = vunpack.c.l.b16 %v1512
        %v2672 = vunpack.c.l.b16 %v1513
        %v2673 = vunpack.c.l.b16 %v1514
        %v2674 = vunpack.c.l.b16 %v1515
        %v2675 = vunpack.c.l.b16 %v1516
        %v2676 = vunpack.c.l.b16 %v1517
        %v2677 = vunpack.c.l.b16 %v1518
        %v2678 = vunpack.c.l.b16 %v1519
        %v2679 = vunpack.c.l.b16 %v1520
        %v2680 = vunpack.c.l.b16 %v1521
        %v2681 = vunpack.c.l.b16 %v1522
        %v2682 = vunpack.c.l.b16 %v1523
        %v2683 = vunpack.c.l.b16 %v1524
        %v2684 = vunpack.c.l.b16 %v1525
        %v2685 = vunpack.c.l.b16 %v1526
        %v2686 = vunpack.c.l.b16 %v1527
        %v2687 = vunpack.c.l.b16 %v1528
        %v2688 = vunpack.c.l.b16 %v1529
        %v2689 = vunpack.c.l.b16 %v1530
        %v2690 = vunpack.c.l.b16 %v1531
        %v2691 = vunpack.c.l.b16 %v1532
        %v2692 = vunpack.c.l.b16 %v1533
        %v2693 = vunpack.c.l.b16 %v1534
        %v2694 = vunpack.c.l.b16 %v1535
        %v2695 = vunpack.c.l.b16 %v1536
        %v2696 = vunpack.c.l.b16 %v1537
        %v2697 = vunpack.c.l.b16 %v1538
        %v2698 = vunpack.c.l.b16 %v1539
        %v2699 = vunpack.c.l.b16 %v1540
        %v2700 = vunpack.c.l.b16 %v1541
        %v2701 = vunpack.c.l.b16 %v1542
        %v2702 = vunpack.c.l.b16 %v1543
        %v2703 = vunpack.c.l.b16 %v1544
        %v2704 = vunpack.c.l.b16 %v1545
        %v2705 = vunpack.c.l.b16 %v1546
        %v2706 = vunpack.c.l.b16 %v1547
        %v2707 = vunpack.c.l.b16 %v1548
        %v2708 = vunpack.c.l.b16 %v1549
        %v2709 = vunpack.c.l.b16 %v1550
        %v2710 = vunpack.c.l.b16 %v1551
        %v2711 = vunpack.c.l.b16 %v1552
        %v2712 = vunpack.c.l.b16 %v1553
        %v2713 = vunpack.c.l.b16 %v1554
        %v2714 = vunpack.c.l.b16 %v1555
        %v2715 = vunpack.c.l.b16 %v1556
        %v2716 = vunpack.c.l.b16 %v1557
        %v2717 = vunpack.c.l.b16 %v1558
        %v2718 = vunpack.c.l.b16 %v1559
        %v2719 = vunpack.c.l.b16 %v1560
        %v2720 = vunpack.c.l.b16 %v1561
        %v2721 = vunpack.c.l.b16 %v1562
        %v2722 = vunpack.c.l.b16 %v1563
        %v2723 = vunpack.c.l.b16 %v1564
        %v2724 = vunpack.c.l.b16 %v1565
        %v2725 = vunpack.c.l.b16 %v1566
        %v2726 = vunpack.c.l.b16 %v1567
        %v2727 = vunpack.c.l.b16 %v1568
        %v2728 = vunpack.c.l.b16 %v1569
        %v2729 = vunpack.c.l.b16 %v1570
        %v2730 = vunpack.c.l.b16 %v1571
        %v2731 = vunpack.c.l.b16 %v1572
        %v2732 = vunpack.c.l.b16 %v1573
        %v2733 = vunpack.c.l.b16 %v1574
        %v2734 = vunpack.c.l.b16 %v1575
        %v2735 = vunpack.c.l.b16 %v1576
        %v2736 = vunpack.c.l.b16 %v1577
        %v2737 = vunpack.c.l.b16 %v1578
        %v2738 = vunpack.c.l.b16 %v1579
        %v2739 = vunpack.c.l.b16 %v1580
        %v2740 = vunpack.c.l.b16 %v1581
        %v2741 = vunpack.c.l.b16 %v1582
        %v2742 = vunpack.c.l.b16 %v1583
        %v2743 = vunpack.c.l.b16 %v1584
        %v2744 = vunpack.c.l.b16 %v1585
        %v2745 = vunpack.c.l.b16 %v1586
        %v2746 = vunpack.c.l.b16 %v1587
        %v2747 = vunpack.c.l.b16 %v1588
        %v2748 = vunpack.c.l.b16 %v1589
        %v2749 = vunpack.c.l.b16 %v1590
        %v2750 = vunpack.c.l.b16 %v1591
        %v2751 = vunpack.c.l.b16 %v1592
        %v2752 = vunpack.c.l.b16 %v1593
        %v2753 = vunpack.c.l.b16 %v1594
        %v2754 = vunpack.c.l.b16 %v1595
        %v2755 = vunpack.c.l.b16 %v1596
        %v2756 = vunpack.c.l.b16 %v1597
        %v2757 = vunpack.c.l.b16 %v1598
        %v2758 = vunpack.c.l.b16 %v1599
        %v2759 = vunpack.c.l.b16 %v1600
        %v2760 = vunpack.c.l.b16 %v1601
        %v2761 = vunpack.c.l.b16 %v1602
        %v2762 = vunpack.c.l.b16 %v1603
        %v2763 = vunpack.c.l.b16 %v1604
        %v2764 = vunpack.c.l.b16 %v1605
        %v2765 = vunpack.c.l.b16 %v1606
        %v2766 = vunpack.c.l.b16 %v1607
        %v2767 = vunpack.c.l.b16 %v1608
        %v2768 = vunpack.c.l.b16 %v1609
        %v2769 = vunpack.c.l.b16 %v1610
        %v2770 = vunpack.c.l.b16 %v1611
        %v2771 = vunpack.c.l.b16 %v1612
        %v2772 = vunpack.c.l.b16 %v1613
        %v2773 = vunpack.c.l.b16 %v1614
        %v2774 = vunpack.c.l.b16 %v1615
        %v2775 = vunpack.c.l.b16 %v1616
        %v2776 = vunpack.c.l.b16 %v1617
        %v2777 = vunpack.c.l.b16 %v1618
        %v2778 = vunpack.c.l.b16 %v1619
        %v2779 = vunpack.c.l.b16 %v1620
        %v2780 = vunpack.c.l.b16 %v1621
        %v2781 = vunpack.c.l.b16 %v1622
        %v2782 = vunpack.c.l.b16 %v1623
        %v2783 = vunpack.c.l.b16 %v1624
        %v2784 = vunpack.c.l.b16 %v1625
        %v2785 = vunpack.c.l.b16 %v1626
        %v2786 = vunpack.c.l.b16 %v1627
        %v2787 = vunpack.c.l.b16 %v1628
        %v2788 = vunpack.c.l.b16 %v1629
        %v2789 = vunpack.c.l.b16 %v1630
        %v2790 = vunpack.c.l.b16 %v1631
        %v2791 = vunpack.c.l.b16 %v1632
        %v2792 = vunpack.c.l.b16 %v1633
        %v2793 = vunpack.c.l.b16 %v1634
        %v2794 = vunpack.c.l.b16 %v1635
        %v2795 = vunpack.c.l.b16 %v1636
        %v2796 = vunpack.c.l.b16 %v1637
        %v2797 = vunpack.c.l.b16 %v1638
        %v2798 = vunpack.c.l.b16 %v1639
        %v2799 = vunpack.c.l.b16 %v1640
        %v2800 = vunpack.c.l.b16 %v1641
        %v2801 = vunpack.c.l.b16 %v1642
        %v2802 = vunpack.c.l.b16 %v1643
        %v2803 = vunpack.c.l.b16 %v1644
        %v2804 = vunpack.c.l.b16 %v1645
        %v2805 = vunpack.c.l.b16 %v1646
        %v2806 = vunpack.c.l.b16 %v1647
        %v2807 = vunpack.c.l.b16 %v1648
        %v2808 = vunpack.c.l.b16 %v1649
        %v2809 = vunpack.c.l.b16 %v1650
        %v2810 = vunpack.c.l.b16 %v1651
        %v2811 = vunpack.c.l.b16 %v1652
        %v2812 = vunpack.c.l.b16 %v1653
        %v2813 = vunpack.c.l.b16 %v1654
        %v2814 = vunpack.c.l.b16 %v1655
        %v2815 = vunpack.c.l.b16 %v1656
        %v2816 = vunpack.c.l.b16 %v1657
        %v2817 = vunpack.c.l.b16 %v1658
        %v2818 = vunpack.c.l.b16 %v1659
        %v2819 = vunpack.c.l.b16 %v1660
        %v2820 = vunpack.c.l.b16 %v1661
        %v2821 = vunpack.c.l.b16 %v1662
        %v2822 = vunpack.c.l.b16 %v1663
        %v2823 = vunpack.c.l.b16 %v1664
        %v2824 = vunpack.c.l.b16 %v1665
        %v2825 = vunpack.c.l.b16 %v1666
        %v2826 = vunpack.c.l.b16 %v1667
        %v2827 = vunpack.c.l.b16 %v1668
        %v2828 = vunpack.c.l.b16 %v1669
        %v2829 = vunpack.c.l.b16 %v1670
        %v2830 = vunpack.c.l.b16 %v1671
        %v2831 = vunpack.c.l.b16 %v1672
        %v2832 = vunpack.c.l.b16 %v1673
        %v2833 = vunpack.c.l.b16 %v1674
        %v2834 = vunpack.c.l.b16 %v1675
        %v2835 = vunpack.c.l.b16 %v1676
        %v2836 = vunpack.c.l.b16 %v1677
        %v2837 = vunpack.c.l.b16 %v1678
        %v2838 = vunpack.c.l.b16 %v1679
        %v2839 = vunpack.c.l.b16 %v1680
        %v2840 = vunpack.c.l.b16 %v1681
        %v2841 = vunpack.c.l.b16 %v1682
        %v2842 = vunpack.c.l.b16 %v1683
        %v2843 = vunpack.c.l.b16 %v1684
        %v2844 = vunpack.c.l.b16 %v1685
        %v2845 = vunpack.c.l.b16 %v1686
        %v2846 = vunpack.c.l.b16 %v1687
        %v2847 = vunpack.c.l.b16 %v1688
        %v2848 = vunpack.c.l.b16 %v1689
        %v2849 = vunpack.c.l.b16 %v1690
        %v2850 = vunpack.c.l.b16 %v1691
        %v2851 = vunpack.c.l.b16 %v1692
        %v2852 = vunpack.c.l.b16 %v1693
        %v2853 = vunpack.c.l.b16 %v1694
        %v2854 = vunpack.c.l.b16 %v1695
        %v2855 = vunpack.c.l.b16 %v1696
        %v2856 = vunpack.c.l.b16 %v1697
        %v2857 = vunpack.c.l.b16 %v1698
        %v2858 = vunpack.c.l.b16 %v1699
        %v2859 = vunpack.c.l.b16 %v1700
        %v2860 = vunpack.c.l.b16 %v1701
        %v2861 = vunpack.c.l.b16 %v1702
        %v2862 = vunpack.c.l.b16 %v1703
        %v2863 = vunpack.c.l.b16 %v1704
        %v2864 = vunpack.c.l.b16 %v1705
        %v2865 = vunpack.c.l.b16 %v1706
        %v2866 = vunpack.c.l.b16 %v1707
        %v2867 = vunpack.c.l.b16 %v1708
        %v2868 = vunpack.c.l.b16 %v1709
        %v2869 = vunpack.c.l.b16 %v1710
        %v2870 = vunpack.c.l.b16 %v1711
        %v2871 = vunpack.c.l.b16 %v1712
        %v2872 = vunpack.c.l.b16 %v1713
        %v2873 = vunpack.c.l.b16 %v1714
        %v2874 = vunpack.c.l.b16 %v1715
        %v2875 = vunpack.c.l.b16 %v1716
        %v2876 = vunpack.c.l.b16 %v1717
        %v2877 = vunpack.c.l.b16 %v1718
        %v2878 = vunpack.c.l.b16 %v1719
        %v2879 = vunpack.c.l.b16 %v1720
        %v2880 = vunpack.c.l.b16 %v1721
        %v2881 = vunpack.c.l.b16 %v1722
        %v2882 = vunpack.c.l.b16 %v1723
        %v2883 = vunpack.c.l.b16 %v1724
        %v2884 = vunpack.c.l.b16 %v1725
        %v2885 = vunpack.c.l.b16 %v1726
        %v2886 = vunpack.c.l.b16 %v1727
        %v2887 = vunpack.c.l.b16 %v1728
        %v2888 = vunpack.c.l.b16 %v1729
        %v2889 = vunpack.c.l.b16 %v1730
        %v2890 = vunpack.c.l.b16 %v1731
        %v2891 = vunpack.c.l.b16 %v1732
        %v2892 = vunpack.c.l.b16 %v1733
        %v2893 = vunpack.c.l.b16 %v1734
        %v2894 = vunpack.c.l.b16 %v1735
        %v2895 = vunpack.c.l.b16 %v1736
        %v2896 = vunpack.c.l.b16 %v1737
        %v2897 = vunpack.c.l.b16 %v1738
        %v2898 = vunpack.c.l.b16 %v1739
        %v2899 = vunpack.c.l.b16 %v1740
        %v2900 = vunpack.c.l.b16 %v1741
        %v2901 = vunpack.c.l.b16 %v1742
        %v2902 = vunpack.c.l.b16 %v1743
        %v2903 = vunpack.c.l.b16 %v1744
        %v2904 = vunpack.c.l.b16 %v1745
        %v2905 = vunpack.c.l.b16 %v1746
        %v2906 = vunpack.c.l.b16 %v1747
        %v2907 = vunpack.c.l.b16 %v1748
        %v2908 = vunpack.c.l.b16 %v1749
        %v2909 = vunpack.c.l.b16 %v1750
        %v2910 = vunpack.c.l.b16 %v1751
        %v2911 = vunpack.c.l.b16 %v1752
        %v2912 = vunpack.c.l.b16 %v1753
        %v2913 = vunpack.c.l.b16 %v1754
        %v2914 = vunpack.c.l.b16 %v1755
        %v2915 = vunpack.c.l.b16 %v1756
        %v2916 = vunpack.c.l.b16 %v1757
        %v2917 = vunpack.c.l.b16 %v1758
        %v2918 = vunpack.c.l.b16 %v1759
        %v2919 = vunpack.c.l.b16 %v1760
        %v2920 = vunpack.c.l.b16 %v1761
        %v2921 = vunpack.c.l.b16 %v1762
        %v2922 = vunpack.c.l.b16 %v1763
        %v2923 = vunpack.c.l.b16 %v1764
        %v2924 = vunpack.c.l.b16 %v1765
        %v2925 = vunpack.c.l.b16 %v1766
        %v2926 = vunpack.c.l.b16 %v1767
        %v2927 = vunpack.c.l.b16 %v1768
        %v2928 = vunpack.c.l.b16 %v1769
        %v2929 = vunpack.c.l.b16 %v1770
        %v2930 = vunpack.c.l.b16 %v1771
        %v2931 = vunpack.c.l.b16 %v1772
        %v2932 = vunpack.c.l.b16 %v1773
        %v2933 = vunpack.c.l.b16 %v1774
        %v2934 = vunpack.c.l.b16 %v1775
        %v2935 = vunpack.c.l.b16 %v1776
        %v2936 = vunpack.c.l.b16 %v1777
        %v2937 = vunpack.c.l.b16 %v1778
        %v2938 = vunpack.c.l.b16 %v1779
        %v2939 = vunpack.c.l.b16 %v1780
        %v2940 = vunpack.c.l.b16 %v1781
        %v2941 = vunpack.c.l.b16 %v1782
        %v2942 = vunpack.c.l.b16 %v1783
        %v2943 = vunpack.c.l.b16 %v1784
        %v2944 = vunpack.c.l.b16 %v1785
        %v2945 = vunpack.c.l.b16 %v1786
        %v2946 = vunpack.c.l.b16 %v1787
        %v2947 = vunpack.c.l.b16 %v1788
        %v2948 = vunpack.c.l.b16 %v1789
        %v2949 = vunpack.c.l.b16 %v1790
        %v2950 = vunpack.c.l.b16 %v1791
        %v2951 = vunpack.c.l.b16 %v1792
        %v2952 = vunpack.c.l.b16 %v1793
        %v2953 = vunpack.c.l.b16 %v1794
        %v2954 = vunpack.c.l.b16 %v1795
        %v2955 = vunpack.c.l.b16 %v1796
        %v2956 = vunpack.c.l.b16 %v1797
        %v2957 = vunpack.c.l.b16 %v1798
        %v2958 = vunpack.c.l.b16 %v1799
        %v2959 = vunpack.c.l.b16 %v1800
        %v2960 = vunpack.c.l.b16 %v1801
        %v2961 = vunpack.c.l.b16 %v1802
        %v2962 = vunpack.c.l.b16 %v1803
        %v2963 = vunpack.c.l.b16 %v1804
        %v2964 = vunpack.c.l.b16 %v1805
        %v2965 = vunpack.c.l.b16 %v1806
        %v2966 = vunpack.c.l.b16 %v1807
        %v2967 = vunpack.c.l.b16 %v1808
        %v2968 = vunpack.c.l.b16 %v1809
        %v2969 = vunpack.c.l.b16 %v1810
        %v2970 = vunpack.c.l.b16 %v1811
        %v2971 = vunpack.c.l.b16 %v1812
        %v2972 = vunpack.c.l.b16 %v1813
        %v2973 = vunpack.c.l.b16 %v1814
        %v2974 = vunpack.c.l.b16 %v1815
        %v2975 = vunpack.c.l.b16 %v1816
        %v2976 = vunpack.c.l.b16 %v1817
        %v2977 = vunpack.c.l.b16 %v1818
        %v2978 = vunpack.c.l.b16 %v1819
        %v2979 = vunpack.c.l.b16 %v1820
        %v2980 = vunpack.c.l.b16 %v1821
        %v2981 = vunpack.c.l.b16 %v1822
        %v2982 = vunpack.c.l.b16 %v1823
        %v2983 = vunpack.c.l.b16 %v1824
        %v2984 = vunpack.c.l.b16 %v1825
        %v2985 = vunpack.c.l.b16 %v1826
        %v2986 = vunpack.c.l.b16 %v1827
        %v2987 = vunpack.c.l.b16 %v1828
        %v2988 = vunpack.c.l.b16 %v1829
        %v2989 = vunpack.c.l.b16 %v1830
        %v2990 = vunpack.c.l.b16 %v1831
        %v2991 = vunpack.c.l.b16 %v1832
        %v2992 = vunpack.c.l.b16 %v1833
        %v2993 = vunpack.c.l.b16 %v1834
        %v2994 = vunpack.c.l.b16 %v1835
        %v2995 = vunpack.c.l.b16 %v1836
        %v2996 = vunpack.c.l.b16 %v1837
        %v2997 = vunpack.c.l.b16 %v1838
        %v2998 = vunpack.c.l.b16 %v1839
        %v2999 = vunpack.c.l.b16 %v1840
        %v3000 = vunpack.c.l.b16 %v1841
        %v3001 = vunpack.c.l.b16 %v1842
        %v3002 = vunpack.c.l.b16 %v1843
        %v3003 = vunpack.c.l.b16 %v1844
        %v3004 = vunpack.c.l.b16 %v1845
        %v3005 = vunpack.c.l.b16 %v1846
        %v3006 = vunpack.c.l.b16 %v1847
        %v3007 = vunpack.c.l.b16 %v1848
        %v3008 = vunpack.c.l.b16 %v1849
        %v3009 = vunpack.c.l.b16 %v1850
        %v3010 = vunpack.c.l.b16 %v1851
        %v3011 = vunpack.c.l.b16 %v1852
        %v3012 = vunpack.c.l.b16 %v1853
        %v3013 = vunpack.c.l.b16 %v1854
        %v3014 = vunpack.c.l.b16 %v1855
        %v3015 = vunpack.c.l.b16 %v1856
        %v3016 = vunpack.c.l.b16 %v1857
        %v3017 = vunpack.c.l.b16 %v1858
        %v3018 = vunpack.c.l.b16 %v1859
        %v3019 = vunpack.c.l.b16 %v1860
        %v3020 = vunpack.c.l.b16 %v1861
        %v3021 = vunpack.c.l.b16 %v1862
        %v3022 = vunpack.c.l.b16 %v1863
        %v3023 = vunpack.c.l.b16 %v1864
        %v3024 = vunpack.c.l.b16 %v1865
        %v3025 = vunpack.c.l.b16 %v1866
        %v3026 = vunpack.c.l.b16 %v1867
        %v3027 = vunpack.c.l.b16 %v1868
        %v3028 = vunpack.c.l.b16 %v1869
        %v3029 = vunpack.c.l.b16 %v1870
        %v3030 = vunpack.c.l.b16 %v1871
        %v3031 = vunpack.c.l.b16 %v1872
        %v3032 = vunpack.c.l.b16 %v1873
        %v3033 = vunpack.c.l.b16 %v1874
        %v3034 = vunpack.c.l.b16 %v1875
        %v3035 = vunpack.c.l.b16 %v1876
        %v3036 = vunpack.c.l.b16 %v1877
        %v3037 = vunpack.c.l.b16 %v1878
        %v3038 = vunpack.c.l.b16 %v1879
        %v3039 = vunpack.c.l.b16 %v1880
        %v3040 = vunpack.c.l.b16 %v1881
        %v3041 = vunpack.c.l.b16 %v1882
        %v3042 = vunpack.c.l.b16 %v1883
        %v3043 = vunpack.c.l.b16 %v1884
        %v3044 = vunpack.c.l.b16 %v1885
        %v3045 = vunpack.c.l.b16 %v1886
        %v3046 = vunpack.c.l.b16 %v1887
        %v3047 = vunpack.c.l.b16 %v1888
        %v3048 = vunpack.c.l.b16 %v1889
        %v3049 = vunpack.c.l.b16 %v1890
        %v3050 = vunpack.c.l.b16 %v1891
        %v3051 = vunpack.c.l.b16 %v1892
        %v3052 = vunpack.c.l.b16 %v1893
        %v3053 = vunpack.c.l.b16 %v1894
        %v3054 = vunpack.c.l.b16 %v1895
        %v3055 = vunpack.c.l.b16 %v1896
        %v3056 = vunpack.c.l.b16 %v1897
        %v3057 = vunpack.c.l.b16 %v1898
        %v3058 = vunpack.c.l.b16 %v1899
        %v3059 = vunpack.c.l.b16 %v1900
        %v3060 = vunpack.c.l.b16 %v1901
        %v3061 = vunpack.c.l.b16 %v1902
        %v3062 = vunpack.c.l.b16 %v1903
        %v3063 = vunpack.c.l.b16 %v1904
        %v3064 = vunpack.c.l.b16 %v1905
        %v3065 = vunpack.c.l.b16 %v1906
        %v3066 = vunpack.c.l.b16 %v1907
        %v3067 = vunpack.c.l.b16 %v1908
        %v3068 = vunpack.c.l.b16 %v1909
        %v3069 = vunpack.c.l.b16 %v1910
        %v3070 = vunpack.c.l.b16 %v1911
        %v3071 = vpack.c.b16 %v2496, %v2495
        %v3072 = vpack.c.b16 %v2498, %v2497
        %v3073 = vpack.c.b16 %v2500, %v2499
        %v3074 = vpack.c.b16 %v2502, %v2501
        %v3075 = vpack.c.b16 %v2504, %v2503
        %v3076 = vpack.c.b16 %v2506, %v2505
        %v3077 = vpack.c.b16 %v2508, %v2507
        %v3078 = vpack.c.b16 %v2510, %v2509
        %v3079 = vpack.c.b16 %v2512, %v2511
        %v3080 = vpack.c.b16 %v2514, %v2513
        %v3081 = vpack.c.b16 %v2516, %v2515
        %v3082 = vpack.c.b16 %v2518, %v2517
        %v3083 = vpack.c.b16 %v2520, %v2519
        %v3084 = vpack.c.b16 %v2522, %v2521
        %v3085 = vpack.c.b16 %v2524, %v2523
        %v3086 = vpack.c.b16 %v2526, %v2525
        %v3087 = vpack.c.b16 %v2528, %v2527
        %v3088 = vpack.c.b16 %v2530, %v2529
        %v3089 = vpack.c.b16 %v2532, %v2531
        %v3090 = vpack.c.b16 %v2534, %v2533
        %v3091 = vpack.c.b16 %v2536, %v2535
        %v3092 = vpack.c.b16 %v2538, %v2537
        %v3093 = vpack.c.b16 %v2540, %v2539
        %v3094 = vpack.c.b16 %v2542, %v2541
        %v3095 = vpack.c.b16 %v2544, %v2543
        %v3096 = vpack.c.b16 %v2546, %v2545
        %v3097 = vpack.c.b16 %v2548, %v2547
        %v3098 = vpack.c.b16 %v2550, %v2549
        %v3099 = vpack.c.b16 %v2552, %v2551
        %v3100 = vpack.c.b16 %v2554, %v2553
        %v3101 = vpack.c.b16 %v2556, %v2555
        %v3102 = vpack.c.b16 %v2558, %v2557
        %v3103 = vpack.c.b16 %v2560, %v2559
        %v3104 = vpack.c.b16 %v2562, %v2561
        %v3105 = vpack.c.b16 %v2564, %v2563
        %v3106 = vpack.c.b16 %v2566, %v2565
        %v3107 = vpack.c.b16 %v2568, %v2567
        %v3108 = vpack.c.b16 %v2570, %v2569
        %v3109 = vpack.c.b16 %v2572, %v2571
        %v3110 = vpack.c.b16 %v2574, %v2573
        %v3111 = vpack.c.b16 %v2576, %v2575
        %v3112 = vpack.c.b16 %v2578, %v2577
        %v3113 = vpack.c.b16 %v2580, %v2579
        %v3114 = vpack.c.b16 %v2582, %v2581
        %v3115 = vpack.c.b16 %v2584, %v2583
        %v3116 = vpack.c.b16 %v2586, %v2585
        %v3117 = vpack.c.b16 %v2588, %v2587
        %v3118 = vpack.c.b16 %v2590, %v2589
        %v3119 = vpack.c.b16 %v2592, %v2591
        %v3120 = vpack.c.b16 %v2594, %v2593
        %v3121 = vpack.c.b16 %v2596, %v2595
        %v3122 = vpack.c.b16 %v2598, %v2597
        %v3123 = vpack.c.b16 %v2600, %v2599
        %v3124 = vpack.c.b16 %v2602, %v2601
        %v3125 = vpack.c.b16 %v2604, %v2603
        %v3126 = vpack.c.b16 %v2606, %v2605
        %v3127 = vpack.c.b16 %v2608, %v2607
        %v3128 = vpack.c.b16 %v2610, %v2609
        %v3129 = vpack.c.b16 %v2612, %v2611
        %v3130 = vpack.c.b16 %v2614, %v2613
        %v3131 = vpack.c.b16 %v2616, %v2615
        %v3132 = vpack.c.b16 %v2618, %v2617
        %v3133 = vpack.c.b16 %v2620, %v2619
        %v3134 = vpack.c.b16 %v2622, %v2621
        %v3135 = vpack.c.b16 %v2624, %v2623
        %v3136 = vpack.c.b16 %v2626, %v2625
        %v3137 = vpack.c.b16 %v2628, %v2627
        %v3138 = vpack.c.b16 %v2630, %v2629
        %v3139 = vpack.c.b16 %v2632, %v2631
        %v3140 = vpack.c.b16 %v2634, %v2633
        %v3141 = vpack.c.b16 %v2636, %v2635
        %v3142 = vpack.c.b16 %v2638, %v2637
        %v3143 = vpack.c.b16 %v2640, %v2639
        %v3144 = vpack.c.b16 %v2642, %v2641
        %v3145 = vpack.c.b16 %v2644, %v2643
        %v3146 = vpack.c.b16 %v2646, %v2645
        %v3147 = vpack.c.b16 %v2648, %v2647
        %v3148 = vpack.c.b16 %v2650, %v2649
        %v3149 = vpack.c.b16 %v2652, %v2651
        %v3150 = vpack.c.b16 %v2654, %v2653
        %v3151 = vpack.c.b16 %v2656, %v2655
        %v3152 = vpack.c.b16 %v2658, %v2657
        %v3153 = vpack.c.b16 %v2660, %v2659
        %v3154 = vpack.c.b16 %v2662, %v2661
        %v3155 = vpack.c.b16 %v2664, %v2663
        %v3156 = vpack.c.b16 %v2666, %v2665
        %v3157 = vpack.c.b16 %v2668, %v2667
        %v3158 = vpack.c.b16 %v2670, %v2669
        %v3159 = vpack.c.b16 %v2672, %v2671
        %v3160 = vpack.c.b16 %v2674, %v2673
        %v3161 = vpack.c.b16 %v2676, %v2675
        %v3162 = vpack.c.b16 %v2678, %v2677
        %v3163 = vpack.c.b16 %v2680, %v2679
        %v3164 = vpack.c.b16 %v2682, %v2681
        %v3165 = vpack.c.b16 %v2684, %v2683
        %v3166 = vpack.c.b16 %v2686, %v2685
        %v3167 = vpack.c.b16 %v2688, %v2687
        %v3168 = vpack.c.b16 %v2690, %v2689
        %v3169 = vpack.c.b16 %v2692, %v2691
        %v3170 = vpack.c.b16 %v2694, %v2693
        %v3171 = vpack.c.b16 %v2696, %v2695
        %v3172 = vpack.c.b16 %v2698, %v2697
        %v3173 = vpack.c.b16 %v2700, %v2699
        %v3174 = vpack.c.b16 %v2702, %v2701
        %v3175 = vpack.c.b16 %v2704, %v2703
        %v3176 = vpack.c.b16 %v2706, %v2705
        %v3177 = vpack.c.b16 %v2708, %v2707
        %v3178 = vpack.c.b16 %v2710, %v2709
        %v3179 = vpack.c.b16 %v2712, %v2711
        %v3180 = vpack.c.b16 %v2714, %v2713
        %v3181 = vpack.c.b16 %v2716, %v2715
        %v3182 = vpack.c.b16 %v2718, %v2717
        %v3183 = vpack.c.b16 %v2720, %v2719
        %v3184 = vpack.c.b16 %v2722, %v2721
        %v3185 = vpack.c.b16 %v2724, %v2723
        %v3186 = vpack.c.b16 %v2726, %v2725
        %v3187 = vpack.c.b16 %v2728, %v2727
        %v3188 = vpack.c.b16 %v2730, %v2729
        %v3189 = vpack.c.b16 %v2732, %v2731
        %v3190 = vpack.c.b16 %v2734, %v2733
        %v3191 = vpack.c.b16 %v2736, %v2735
        %v3192 = vpack.c.b16 %v2738, %v2737
        %v3193 = vpack.c.b16 %v2740, %v2739
        %v3194 = vpack.c.b16 %v2742, %v2741
        %v3195 = vpack.c.b16 %v2744, %v2743
        %v3196 = vpack.c.b16 %v2746, %v2745
        %v3197 = vpack.c.b16 %v2748, %v2747
        %v3198 = vpack.c.b16 %v2750, %v2749
        %v3199 = vpack.c.b16 %v2752, %v2751
        %v3200 = vpack.c.b16 %v2754, %v2753
        %v3201 = vpack.c.b16 %v2756, %v2755
        %v3202 = vpack.c.b16 %v2758, %v2757
        %v3203 = vpack.c.b16 %v2760, %v2759
        %v3204 = vpack.c.b16 %v2762, %v2761
        %v3205 = vpack.c.b16 %v2764, %v2763
        %v3206 = vpack.c.b16 %v2766, %v2765
        %v3207 = vpack.c.b16 %v2768, %v2767
        %v3208 = vpack.c.b16 %v2770, %v2769
        %v3209 = vpack.c.b16 %v2772, %v2771
        %v3210 = vpack.c.b16 %v2774, %v2773
        %v3211 = vpack.c.b16 %v2776, %v2775
        %v3212 = vpack.c.b16 %v2778, %v2777
        %v3213 = vpack.c.b16 %v2780, %v2779
        %v3214 = vpack.c.b16 %v2782, %v2781
        %v3215 = vpack.c.b16 %v2784, %v2783
        %v3216 = vpack.c.b16 %v2786, %v2785
        %v3217 = vpack.c.b16 %v2788, %v2787
        %v3218 = vpack.c.b16 %v2790, %v2789
        %v3219 = vpack.c.b16 %v2792, %v2791
        %v3220 = vpack.c.b16 %v2794, %v2793
        %v3221 = vpack.c.b16 %v2796, %v2795
        %v3222 = vpack.c.b16 %v2798, %v2797
        %v3223 = vpack.c.b16 %v2800, %v2799
        %v3224 = vpack.c.b16 %v2802, %v2801
        %v3225 = vpack.c.b16 %v2804, %v2803
        %v3226 = vpack.c.b16 %v2806, %v2805
        %v3227 = vpack.c.b16 %v2808, %v2807
        %v3228 = vpack.c.b16 %v2810, %v2809
        %v3229 = vpack.c.b16 %v2812, %v2811
        %v3230 = vpack.c.b16 %v2814, %v2813
        %v3231 = vpack.c.b16 %v2816, %v2815
        %v3232 = vpack.c.b16 %v2818, %v2817
        %v3233 = vpack.c.b16 %v2820, %v2819
        %v3234 = vpack.c.b16 %v2822, %v2821
        %v3235 = vpack.c.b16 %v2824, %v2823
        %v3236 = vpack.c.b16 %v2826, %v2825
        %v3237 = vpack.c.b16 %v2828, %v2827
        %v3238 = vpack.c.b16 %v2830, %v2829
        %v3239 = vpack.c.b16 %v2832, %v2831
        %v3240 = vpack.c.b16 %v2834, %v2833
        %v3241 = vpack.c.b16 %v2836, %v2835
        %v3242 = vpack.c.b16 %v2838, %v2837
        %v3243 = vpack.c.b16 %v2840, %v2839
        %v3244 = vpack.c.b16 %v2842, %v2841
        %v3245 = vpack.c.b16 %v2844, %v2843
        %v3246 = vpack.c.b16 %v2846, %v2845
        %v3247 = vpack.c.b16 %v2848, %v2847
        %v3248 = vpack.c.b16 %v2850, %v2849
        %v3249 = vpack.c.b16 %v2852, %v2851
        %v3250 = vpack.c.b16 %v2854, %v2853
        %v3251 = vpack.c.b16 %v2856, %v2855
        %v3252 = vpack.c.b16 %v2858, %v2857
        %v3253 = vpack.c.b16 %v2860, %v2859
        %v3254 = vpack.c.b16 %v2862, %v2861
        %v3255 = vpack.c.b16 %v2864, %v2863
        %v3256 = vpack.c.b16 %v2866, %v2865
        %v3257 = vpack.c.b16 %v2868, %v2867
        %v3258 = vpack.c.b16 %v2870, %v2869
        %v3259 = vpack.c.b16 %v2872, %v2871
        %v3260 = vpack.c.b16 %v2874, %v2873
        %v3261 = vpack.c.b16 %v2876, %v2875
        %v3262 = vpack.c.b16 %v2878, %v2877
        %v3263 = vpack.c.b16 %v2880, %v2879
        %v3264 = vpack.c.b16 %v2882, %v2881
        %v3265 = vpack.c.b16 %v2884, %v2883
        %v3266 = vpack.c.b16 %v2886, %v2885
        %v3267 = vpack.c.b16 %v2888, %v2887
        %v3268 = vpack.c.b16 %v2890, %v2889
        %v3269 = vpack.c.b16 %v2892, %v2891
        %v3270 = vpack.c.b16 %v2894, %v2893
        %v3271 = vpack.c.b16 %v2896, %v2895
        %v3272 = vpack.c.b16 %v2898, %v2897
        %v3273 = vpack.c.b16 %v2900, %v2899
        %v3274 = vpack.c.b16 %v2902, %v2901
        %v3275 = vpack.c.b16 %v2904, %v2903
        %v3276 = vpack.c.b16 %v2906, %v2905
        %v3277 = vpack.c.b16 %v2908, %v2907
        %v3278 = vpack.c.b16 %v2910, %v2909
        %v3279 = vpack.c.b16 %v2912, %v2911
        %v3280 = vpack.c.b16 %v2914, %v2913
        %v3281 = vpack.c.b16 %v2916, %v2915
        %v3282 = vpack.c.b16 %v2918, %v2917
        %v3283 = vpack.c.b16 %v2920, %v2919
        %v3284 = vpack.c.b16 %v2922, %v2921
        %v3285 = vpack.c.b16 %v2924, %v2923
        %v3286 = vpack.c.b16 %v2926, %v2925
        %v3287 = vpack.c.b16 %v2928, %v2927
        %v3288 = vpack.c.b16 %v2930, %v2929
        %v3289 = vpack.c.b16 %v2932, %v2931
        %v3290 = vpack.c.b16 %v2934, %v2933
        %v3291 = vpack.c.b16 %v2936, %v2935
        %v3292 = vpack.c.b16 %v2938, %v2937
        %v3293 = vpack.c.b16 %v2940, %v2939
        %v3294 = vpack.c.b16 %v2942, %v2941
        %v3295 = vpack.c.b16 %v2944, %v2943
        %v3296 = vpack.c.b16 %v2946, %v2945
        %v3297 = vpack.c.b16 %v2948, %v2947
        %v3298 = vpack.c.b16 %v2950, %v2949
        %v3299 = vpack.c.b16 %v2952, %v2951
        %v3300 = vpack.c.b16 %v2954, %v2953
        %v3301 = vpack.c.b16 %v2956, %v2955
        %v3302 = vpack.c.b16 %v2958, %v2957
        %v3303 = vpack.c.b16 %v2960, %v2959
        %v3304 = vpack.c.b16 %v2962, %v2961
        %v3305 = vpack.c.b16 %v2964, %v2963
        %v3306 = vpack.c.b16 %v2966, %v2965
        %v3307 = vpack.c.b16 %v2968, %v2967
        %v3308 = vpack.c.b16 %v2970, %v2969
        %v3309 = vpack.c.b16 %v2972, %v2971
        %v3310 = vpack.c.b16 %v2974, %v2973
        %v3311 = vpack.c.b16 %v2976, %v2975
        %v3312 = vpack.c.b16 %v2978, %v2977
        %v3313 = vpack.c.b16 %v2980, %v2979
        %v3314 = vpack.c.b16 %v2982, %v2981
        %v3315 = vpack.c.b16 %v2984, %v2983
        %v3316 = vpack.c.b16 %v2986, %v2985
        %v3317 = vpack.c.b16 %v2988, %v2987
        %v3318 = vpack.c.b16 %v2990, %v2989
        %v3319 = vpack.c.b16 %v2992, %v2991
        %v3320 = vpack.c.b16 %v2994, %v2993
        %v3321 = vpack.c.b16 %v2996, %v2995
        %v3322 = vpack.c.b16 %v2998, %v2997
        %v3323 = vpack.c.b16 %v3000, %v2999
        %v3324 = vpack.c.b16 %v3002, %v3001
        %v3325 = vpack.c.b16 %v3004, %v3003
        %v3326 = vpack.c.b16 %v3006, %v3005
        %v3327 = vpack.c.b16 %v3008, %v3007
        %v3328 = vpack.c.b16 %v3010, %v3009
        %v3329 = vpack.c.b16 %v3012, %v3011
        %v3330 = vpack.c.b16 %v3014, %v3013
        %v3331 = vpack.c.b16 %v3016, %v3015
        %v3332 = vpack.c.b16 %v3018, %v3017
        %v3333 = vpack.c.b16 %v3020, %v3019
        %v3334 = vpack.c.b16 %v3022, %v3021
        %v3335 = vpack.c.b16 %v3024, %v3023
        %v3336 = vpack.c.b16 %v3026, %v3025
        %v3337 = vpack.c.b16 %v3028, %v3027
        %v3338 = vpack.c.b16 %v3030, %v3029
        %v3339 = vpack.c.b16 %v3032, %v3031
        %v3340 = vpack.c.b16 %v3034, %v3033
        %v3341 = vpack.c.b16 %v3036, %v3035
        %v3342 = vpack.c.b16 %v3038, %v3037
        %v3343 = vpack.c.b16 %v3040, %v3039
        %v3344 = vpack.c.b16 %v3042, %v3041
        %v3345 = vpack.c.b16 %v3044, %v3043
        %v3346 = vpack.c.b16 %v3046, %v3045
        %v3347 = vpack.c.b16 %v3048, %v3047
        %v3348 = vpack.c.b16 %v3050, %v3049
        %v3349 = vpack.c.b16 %v3052, %v3051
        %v3350 = vpack.c.b16 %v3054, %v3053
        %v3351 = vpack.c.b16 %v3056, %v3055
        %v3352 = vpack.c.b16 %v3058, %v3057
        %v3353 = vpack.c.b16 %v3060, %v3059
        %v3354 = vpack.c.b16 %v3062, %v3061
        %v3355 = vpack.c.b16 %v3064, %v3063
        %v3356 = vpack.c.b16 %v3066, %v3065
        %v3357 = vpack.c.b16 %v3068, %v3067
        %v3358 = vpack.c.b16 %v3070, %v3069
        %3647 = vmatprep.subr.bf16.mxu0 0
        %3648 = vmatpush1.bf16.msra.mxu0 %v3071
        %3649 = vmatprep.subr.bf16.mxu0 0
        %3650 = vmatpush1.bf16.msra.mxu0 %v3072
        %3651 = vmatprep.subr.bf16.mxu0 0
        %3652 = vmatpush1.bf16.msra.mxu0 %v3073
        %3653 = vmatprep.subr.bf16.mxu0 0
        %3654 = vmatpush1.bf16.msra.mxu0 %v3074
        %3655 = vmatprep.subr.bf16.mxu0 0
        %3656 = vmatpush1.bf16.msra.mxu0 %v3075
        %3657 = vmatprep.subr.bf16.mxu0 0
        %3658 = vmatpush1.bf16.msra.mxu0 %v3076
        %3659 = vmatprep.subr.bf16.mxu0 0
        %3660 = vmatpush1.bf16.msra.mxu0 %v3077
        %3661 = vmatprep.subr.bf16.mxu0 0
        %3662 = vmatpush1.bf16.msra.mxu0 %v3078
        %3663 = vmatprep.subr.bf16.mxu0 0
        %3664 = vmatpush1.bf16.msra.mxu0 %v3079
        %3665 = vmatprep.subr.bf16.mxu0 0
        %3666 = vmatpush1.bf16.msra.mxu0 %v3080
        %3667 = vmatprep.subr.bf16.mxu0 0
        %3668 = vmatpush1.bf16.msra.mxu0 %v3081
        %3669 = vmatprep.subr.bf16.mxu0 0
        %3670 = vmatpush1.bf16.msra.mxu0 %v3082
        %3671 = vmatprep.subr.bf16.mxu0 0
        %3672 = vmatpush1.bf16.msra.mxu0 %v3083
        %3673 = vmatprep.subr.bf16.mxu0 0
        %3674 = vmatpush1.bf16.msra.mxu0 %v3084
        %3675 = vmatprep.subr.bf16.mxu0 0
        %3676 = vmatpush1.bf16.msra.mxu0 %v3085
        %3677 = vmatprep.subr.bf16.mxu0 0
        %3678 = vmatpush1.bf16.msra.mxu0 %v3086
        %3679 = vmatprep.mubr.bf16.mxu0 %v1053
        %3680 = vmatmul.mubr.bf16.gmra.mrb[0].mxu0 %v1052
        %v3681 = vpop.f32.mrb[0].mxu0
        %v3682 = vadd.f32 %v1917, %v3681
        %v3683 = vpop.f32.mrb[0].mxu0
        %v3684 = vpop.f32.mrb[0].mxu0
        %v3685 = vadd.f32 %v1917, %v3684
        %v3686 = vpop.f32.mrb[0].mxu0
        %3687 = vmatprep.mubr.bf16.mxu0 %v1057
        %3688 = vmatmul.mubr.bf16.gmra.mrb[0].mxu0 %v1056
        %v3689 = vpop.f32.mrb[0].mxu0
        %v3690 = vadd.f32 %v1917, %v3689
        %v3691 = vpop.f32.mrb[0].mxu0
        %v3692 = vpop.f32.mrb[0].mxu0
        %v3693 = vadd.f32 %v1917, %v3692
        %v3694 = vpop.f32.mrb[0].mxu0
        %3695 = vmatprep.mubr.bf16.mxu0 %v1061
        %3696 = vmatmul.mubr.bf16.gmra.mrb[0].mxu0 %v1060
        %v3697 = vpop.f32.mrb[0].mxu0
        %v3698 = vadd.f32 %v1917, %v3697
        %v3699 = vpop.f32.mrb[0].mxu0
        %v3700 = vpop.f32.mrb[0].mxu0
        %v3701 = vadd.f32 %v1917, %v3700
        %v3702 = vpop.f32.mrb[0].mxu0
        %3703 = vmatprep.mubr.bf16.mxu0 %v1065
        %3704 = vmatmul.mubr.bf16.gmra.mrb[0].mxu0 %v1064
        %v3705 = vpop.f32.mrb[0].mxu0
        %v3706 = vadd.f32 %v1917, %v3705
        %v3707 = vpop.f32.mrb[0].mxu0
        %v3708 = vpop.f32.mrb[0].mxu0
        %v3709 = vadd.f32 %v1917, %v3708
        %v3710 = vpop.f32.mrb[0].mxu0
        %3711 = vdwg.mxu0
        %3712 = vmatprep.subr.bf16.mxu0 0
        %3713 = vmatpush1.bf16.msra.mxu0 %v3087
        %3714 = vmatprep.subr.bf16.mxu0 0
        %3715 = vmatpush1.bf16.msra.mxu0 %v3088
        %3716 = vmatprep.subr.bf16.mxu0 0
        %3717 = vmatpush1.bf16.msra.mxu0 %v3089
        %3718 = vmatprep.subr.bf16.mxu0 0
        %3719 = vmatpush1.bf16.msra.mxu0 %v3090
        %3720 = vmatprep.subr.bf16.mxu0 0
        %3721 = vmatpush1.bf16.msra.mxu0 %v3091
        %3722 = vmatprep.subr.bf16.mxu0 0
        %3723 = vmatpush1.bf16.msra.mxu0 %v3092
        %3724 = vmatprep.subr.bf16.mxu0 0
        %3725 = vmatpush1.bf16.msra.mxu0 %v3093
        %3726 = vmatprep.subr.bf16.mxu0 0
        %3727 = vmatpush1.bf16.msra.mxu0 %v3094
        %3728 = vmatprep.subr.bf16.mxu0 0
        %3729 = vmatpush1.bf16.msra.mxu0 %v3095
        %3730 = vmatprep.subr.bf16.mxu0 0
        %3731 = vmatpush1.bf16.msra.mxu0 %v3096
        %3732 = vmatprep.subr.bf16.mxu0 0
        %3733 = vmatpush1.bf16.msra.mxu0 %v3097
        %3734 = vmatprep.subr.bf16.mxu0 0
        %3735 = vmatpush1.bf16.msra.mxu0 %v3098
        %3736 = vmatprep.subr.bf16.mxu0 0
        %3737 = vmatpush1.bf16.msra.mxu0 %v3099
        %3738 = vmatprep.subr.bf16.mxu0 0
        %3739 = vmatpush1.bf16.msra.mxu0 %v3100
        %3740 = vmatprep.subr.bf16.mxu0 0
        %3741 = vmatpush1.bf16.msra.mxu0 %v3101
        %3742 = vmatprep.subr.bf16.mxu0 0
        %3743 = vmatpush1.bf16.msra.mxu0 %v3102
        %3744 = vmatprep.mubr.bf16.mxu0 %v1055
        %3745 = vmatmul.mubr.bf16.gmra.mrb[0].mxu0 %v1054
        %v3746 = vpop.f32.mrb[0].mxu0
        %v3747 = vadd.f32 %v3682, %v3746
        %v3748 = vpop.f32.mrb[0].mxu0
        %v3749 = vpop.f32.mrb[0].mxu0
        %v3750 = vadd.f32 %v3685, %v3749
        %v3751 = vpop.f32.mrb[0].mxu0
        %3752 = vmatprep.mubr.bf16.mxu0 %v1059
        %3753 = vmatmul.mubr.bf16.gmra.mrb[0].mxu0 %v1058
        %v3754 = vpop.f32.mrb[0].mxu0
        %v3755 = vadd.f32 %v3690, %v3754
        %v3756 = vpop.f32.mrb[0].mxu0
        %v3757 = vpop.f32.mrb[0].mxu0
        %v3758 = vadd.f32 %v3693, %v3757
        %v3759 = vpop.f32.mrb[0].mxu0
        %3760 = vmatprep.mubr.bf16.mxu0 %v1063
        %3761 = vmatmul.mubr.bf16.gmra.mrb[0].mxu0 %v1062
        %v3762 = vpop.f32.mrb[0].mxu0
        %v3763 = vadd.f32 %v3698, %v3762
        %v3764 = vpop.f32.mrb[0].mxu0
        %v3765 = vpop.f32.mrb[0].mxu0
        %v3766 = vadd.f32 %v3701, %v3765
        %v3767 = vpop.f32.mrb[0].mxu0
        %3768 = vmatprep.mubr.bf16.mxu0 %v1067
        %3769 = vmatmul.mubr.bf16.gmra.mrb[0].mxu0 %v1066
        %v3770 = vpop.f32.mrb[0].mxu0
        %v3771 = vadd.f32 %v3706, %v3770
        %v3772 = vpop.f32.mrb[0].mxu0
        %v3773 = vpop.f32.mrb[0].mxu0
        %v3774 = vadd.f32 %v3709, %v3773
        %v3775 = vpop.f32.mrb[0].mxu0
        %3776 = vdwg.mxu0
        %3777 = vmatprep.subr.bf16.mxu0 0
        %3778 = vmatpush1.bf16.msra.mxu0 %v3103
        %3779 = vmatprep.subr.bf16.mxu0 0
        %3780 = vmatpush1.bf16.msra.mxu0 %v3104
        %3781 = vmatprep.subr.bf16.mxu0 0
        %3782 = vmatpush1.bf16.msra.mxu0 %v3105
        %3783 = vmatprep.subr.bf16.mxu0 0
        %3784 = vmatpush1.bf16.msra.mxu0 %v3106
        %3785 = vmatprep.subr.bf16.mxu0 0
        %3786 = vmatpush1.bf16.msra.mxu0 %v3107
        %3787 = vmatprep.subr.bf16.mxu0 0
        %3788 = vmatpush1.bf16.msra.mxu0 %v3108
        %3789 = vmatprep.subr.bf16.mxu0 0
        %3790 = vmatpush1.bf16.msra.mxu0 %v3109
        %3791 = vmatprep.subr.bf16.mxu0 0
        %3792 = vmatpush1.bf16.msra.mxu0 %v3110
        %3793 = vmatprep.subr.bf16.mxu0 0
        %3794 = vmatpush1.bf16.msra.mxu0 %v3111
        %3795 = vmatprep.subr.bf16.mxu0 0
        %3796 = vmatpush1.bf16.msra.mxu0 %v3112
        %3797 = vmatprep.subr.bf16.mxu0 0
        %3798 = vmatpush1.bf16.msra.mxu0 %v3113
        %3799 = vmatprep.subr.bf16.mxu0 0
        %3800 = vmatpush1.bf16.msra.mxu0 %v3114
        %3801 = vmatprep.subr.bf16.mxu0 0
        %3802 = vmatpush1.bf16.msra.mxu0 %v3115
        %3803 = vmatprep.subr.bf16.mxu0 0
        %3804 = vmatpush1.bf16.msra.mxu0 %v3116
        %3805 = vmatprep.subr.bf16.mxu0 0
        %3806 = vmatpush1.bf16.msra.mxu0 %v3117
        %3807 = vmatprep.subr.bf16.mxu0 0
        %3808 = vmatpush1.bf16.msra.mxu0 %v3118
        %3809 = vmatprep.mubr.bf16.mxu0 %v1115
        %3810 = vmatmul.mubr.bf16.gmra.mrb[0].mxu0 %v1114
        %v3811 = vpop.f32.mrb[0].mxu0
        %v3812 = vadd.f32 %v3747, %v3811
        %v3813 = vpop.f32.mrb[0].mxu0
        %v3814 = vpop.f32.mrb[0].mxu0
        %v3815 = vadd.f32 %v3750, %v3814
        %v3816 = vpop.f32.mrb[0].mxu0
        %3817 = vmatprep.mubr.bf16.mxu0 %v1119
        %3818 = vmatmul.mubr.bf16.gmra.mrb[0].mxu0 %v1118
        %v3819 = vpop.f32.mrb[0].mxu0
        %v3820 = vadd.f32 %v3755, %v3819
        %v3821 = vpop.f32.mrb[0].mxu0
        %v3822 = vpop.f32.mrb[0].mxu0
        %v3823 = vadd.f32 %v3758, %v3822
        %v3824 = vpop.f32.mrb[0].mxu0
        %3825 = vmatprep.mubr.bf16.mxu0 %v1123
        %3826 = vmatmul.mubr.bf16.gmra.mrb[0].mxu0 %v1122
        %v3827 = vpop.f32.mrb[0].mxu0
        %v3828 = vadd.f32 %v3763, %v3827
        %v3829 = vpop.f32.mrb[0].mxu0
        %v3830 = vpop.f32.mrb[0].mxu0
        %v3831 = vadd.f32 %v3766, %v3830
        %v3832 = vpop.f32.mrb[0].mxu0
        %3833 = vmatprep.mubr.bf16.mxu0 %v1127
        %3834 = vmatmul.mubr.bf16.gmra.mrb[0].mxu0 %v1126
        %v3835 = vpop.f32.mrb[0].mxu0
        %v3836 = vadd.f32 %v3771, %v3835
        %v3837 = vpop.f32.mrb[0].mxu0
        %v3838 = vpop.f32.mrb[0].mxu0
        %v3839 = vadd.f32 %v3774, %v3838
        %v3840 = vpop.f32.mrb[0].mxu0
        %3841 = vdwg.mxu0
        %3842 = vmatprep.subr.bf16.mxu0 0
        %3843 = vmatpush1.bf16.msra.mxu0 %v3119
        %3844 = vmatprep.subr.bf16.mxu0 0
        %3845 = vmatpush1.bf16.msra.mxu0 %v3120
        %3846 = vmatprep.subr.bf16.mxu0 0
        %3847 = vmatpush1.bf16.msra.mxu0 %v3121
        %3848 = vmatprep.subr.bf16.mxu0 0
        %3849 = vmatpush1.bf16.msra.mxu0 %v3122
        %3850 = vmatprep.subr.bf16.mxu0 0
        %3851 = vmatpush1.bf16.msra.mxu0 %v3123
        %3852 = vmatprep.subr.bf16.mxu0 0
        %3853 = vmatpush1.bf16.msra.mxu0 %v3124
        %3854 = vmatprep.subr.bf16.mxu0 0
        %3855 = vmatpush1.bf16.msra.mxu0 %v3125
        %3856 = vmatprep.subr.bf16.mxu0 0
        %3857 = vmatpush1.bf16.msra.mxu0 %v3126
        %3858 = vmatprep.subr.bf16.mxu0 0
        %3859 = vmatpush1.bf16.msra.mxu0 %v3127
        %3860 = vmatprep.subr.bf16.mxu0 0
        %3861 = vmatpush1.bf16.msra.mxu0 %v3128
        %3862 = vmatprep.subr.bf16.mxu0 0
        %3863 = vmatpush1.bf16.msra.mxu0 %v3129
        %3864 = vmatprep.subr.bf16.mxu0 0
        %3865 = vmatpush1.bf16.msra.mxu0 %v3130
        %3866 = vmatprep.subr.bf16.mxu0 0
        %3867 = vmatpush1.bf16.msra.mxu0 %v3131
        %3868 = vmatprep.subr.bf16.mxu0 0
        %3869 = vmatpush1.bf16.msra.mxu0 %v3132
        %3870 = vmatprep.subr.bf16.mxu0 0
        %3871 = vmatpush1.bf16.msra.mxu0 %v3133
        %3872 = vmatprep.subr.bf16.mxu0 0
        %3873 = vmatpush1.bf16.msra.mxu0 %v3134
        %3874 = vmatprep.mubr.bf16.mxu0 %v1117
        %3875 = vmatmul.mubr.bf16.gmra.mrb[0].mxu0 %v1116
        %v3876 = vpop.f32.mrb[0].mxu0
        %v3877 = vadd.f32 %v3812, %v3876
        %v3878 = vpop.f32.mrb[0].mxu0
        %v3879 = vpop.f32.mrb[0].mxu0
        %v3880 = vadd.f32 %v3815, %v3879
        %v3881 = vpop.f32.mrb[0].mxu0
        %3882 = vmatprep.mubr.bf16.mxu0 %v1121
        %3883 = vmatmul.mubr.bf16.gmra.mrb[0].mxu0 %v1120
        %v3884 = vpop.f32.mrb[0].mxu0
        %v3885 = vadd.f32 %v3820, %v3884
        %v3886 = vpop.f32.mrb[0].mxu0
        %v3887 = vpop.f32.mrb[0].mxu0
        %v3888 = vadd.f32 %v3823, %v3887
        %v3889 = vpop.f32.mrb[0].mxu0
        %3890 = vmatprep.mubr.bf16.mxu0 %v1125
        %3891 = vmatmul.mubr.bf16.gmra.mrb[0].mxu0 %v1124
        %v3892 = vpop.f32.mrb[0].mxu0
        %v3893 = vadd.f32 %v3828, %v3892
        %v3894 = vpop.f32.mrb[0].mxu0
        %v3895 = vpop.f32.mrb[0].mxu0
        %v3896 = vadd.f32 %v3831, %v3895
        %v3897 = vpop.f32.mrb[0].mxu0
        %3898 = vmatprep.mubr.bf16.mxu0 %v1129
        %3899 = vmatmul.mubr.bf16.gmra.mrb[0].mxu0 %v1128
        %v3900 = vpop.f32.mrb[0].mxu0
        %v3901 = vadd.f32 %v3836, %v3900
        %v3902 = vpop.f32.mrb[0].mxu0
        %v3903 = vpop.f32.mrb[0].mxu0
        %v3904 = vadd.f32 %v3839, %v3903
        %v3905 = vpop.f32.mrb[0].mxu0
        %3906 = vdwg.mxu0
        %3907 = vmatprep.subr.bf16.mxu0 0
        %3908 = vmatpush1.bf16.msra.mxu0 %v3135
        %3909 = vmatprep.subr.bf16.mxu0 0
        %3910 = vmatpush1.bf16.msra.mxu0 %v3136
        %3911 = vmatprep.subr.bf16.mxu0 0
        %3912 = vmatpush1.bf16.msra.mxu0 %v3137
        %3913 = vmatprep.subr.bf16.mxu0 0
        %3914 = vmatpush1.bf16.msra.mxu0 %v3138
        %3915 = vmatprep.subr.bf16.mxu0 0
        %3916 = vmatpush1.bf16.msra.mxu0 %v3139
        %3917 = vmatprep.subr.bf16.mxu0 0
        %3918 = vmatpush1.bf16.msra.mxu0 %v3140
        %3919 = vmatprep.subr.bf16.mxu0 0
        %3920 = vmatpush1.bf16.msra.mxu0 %v3141
        %3921 = vmatprep.subr.bf16.mxu0 0
        %3922 = vmatpush1.bf16.msra.mxu0 %v3142
        %3923 = vmatprep.subr.bf16.mxu0 0
        %3924 = vmatpush1.bf16.msra.mxu0 %v3143
        %3925 = vmatprep.subr.bf16.mxu0 0
        %3926 = vmatpush1.bf16.msra.mxu0 %v3144
        %3927 = vmatprep.subr.bf16.mxu0 0
        %3928 = vmatpush1.bf16.msra.mxu0 %v3145
        %3929 = vmatprep.subr.bf16.mxu0 0
        %3930 = vmatpush1.bf16.msra.mxu0 %v3146
        %3931 = vmatprep.subr.bf16.mxu0 0
        %3932 = vmatpush1.bf16.msra.mxu0 %v3147
        %3933 = vmatprep.subr.bf16.mxu0 0
        %3934 = vmatpush1.bf16.msra.mxu0 %v3148
        %3935 = vmatprep.subr.bf16.mxu0 0
        %3936 = vmatpush1.bf16.msra.mxu0 %v3149
        %3937 = vmatprep.subr.bf16.mxu0 0
        %3938 = vmatpush1.bf16.msra.mxu0 %v3150
        %3939 = vmatprep.mubr.bf16.mxu0 %v1177
        %3940 = vmatmul.mubr.bf16.gmra.mrb[0].mxu0 %v1176
        %v3941 = vpop.f32.mrb[0].mxu0
        %v3942 = vadd.f32 %v3877, %v3941
        %v3943 = vpop.f32.mrb[0].mxu0
        %v3944 = vpop.f32.mrb[0].mxu0
        %v3945 = vadd.f32 %v3880, %v3944
        %v3946 = vpop.f32.mrb[0].mxu0
        %3947 = vmatprep.mubr.bf16.mxu0 %v1181
        %3948 = vmatmul.mubr.bf16.gmra.mrb[0].mxu0 %v1180
        %v3949 = vpop.f32.mrb[0].mxu0
        %v3950 = vadd.f32 %v3885, %v3949
        %v3951 = vpop.f32.mrb[0].mxu0
        %v3952 = vpop.f32.mrb[0].mxu0
        %v3953 = vadd.f32 %v3888, %v3952
        %v3954 = vpop.f32.mrb[0].mxu0
        %3955 = vmatprep.mubr.bf16.mxu0 %v1185
        %3956 = vmatmul.mubr.bf16.gmra.mrb[0].mxu0 %v1184
        %v3957 = vpop.f32.mrb[0].mxu0
        %v3958 = vadd.f32 %v3893, %v3957
        %v3959 = vpop.f32.mrb[0].mxu0
        %v3960 = vpop.f32.mrb[0].mxu0
        %v3961 = vadd.f32 %v3896, %v3960
        %v3962 = vpop.f32.mrb[0].mxu0
        %3963 = vmatprep.mubr.bf16.mxu0 %v1189
        %3964 = vmatmul.mubr.bf16.gmra.mrb[0].mxu0 %v1188
        %v3965 = vpop.f32.mrb[0].mxu0
        %v3966 = vadd.f32 %v3901, %v3965
        %v3967 = vpop.f32.mrb[0].mxu0
        %v3968 = vpop.f32.mrb[0].mxu0
        %v3969 = vadd.f32 %v3904, %v3968
        %v3970 = vpop.f32.mrb[0].mxu0
        %3971 = vdwg.mxu0
        %3972 = vmatprep.subr.bf16.mxu0 0
        %3973 = vmatpush1.bf16.msra.mxu0 %v3151
        %3974 = vmatprep.subr.bf16.mxu0 0
        %3975 = vmatpush1.bf16.msra.mxu0 %v3152
        %3976 = vmatprep.subr.bf16.mxu0 0
        %3977 = vmatpush1.bf16.msra.mxu0 %v3153
        %3978 = vmatprep.subr.bf16.mxu0 0
        %3979 = vmatpush1.bf16.msra.mxu0 %v3154
        %3980 = vmatprep.subr.bf16.mxu0 0
        %3981 = vmatpush1.bf16.msra.mxu0 %v3155
        %3982 = vmatprep.subr.bf16.mxu0 0
        %3983 = vmatpush1.bf16.msra.mxu0 %v3156
        %3984 = vmatprep.subr.bf16.mxu0 0
        %3985 = vmatpush1.bf16.msra.mxu0 %v3157
        %3986 = vmatprep.subr.bf16.mxu0 0
        %3987 = vmatpush1.bf16.msra.mxu0 %v3158
        %3988 = vmatprep.subr.bf16.mxu0 0
        %3989 = vmatpush1.bf16.msra.mxu0 %v3159
        %3990 = vmatprep.subr.bf16.mxu0 0
        %3991 = vmatpush1.bf16.msra.mxu0 %v3160
        %3992 = vmatprep.subr.bf16.mxu0 0
        %3993 = vmatpush1.bf16.msra.mxu0 %v3161
        %3994 = vmatprep.subr.bf16.mxu0 0
        %3995 = vmatpush1.bf16.msra.mxu0 %v3162
        %3996 = vmatprep.subr.bf16.mxu0 0
        %3997 = vmatpush1.bf16.msra.mxu0 %v3163
        %3998 = vmatprep.subr.bf16.mxu0 0
        %3999 = vmatpush1.bf16.msra.mxu0 %v3164
        %4000 = vmatprep.subr.bf16.mxu0 0
        %4001 = vmatpush1.bf16.msra.mxu0 %v3165
        %4002 = vmatprep.subr.bf16.mxu0 0
        %4003 = vmatpush1.bf16.msra.mxu0 %v3166
        %4004 = vmatprep.mubr.bf16.mxu0 %v1179
        %4005 = vmatmul.mubr.bf16.gmra.mrb[0].mxu0 %v1178
        %v4006 = vpop.f32.mrb[0].mxu0
        %v4007 = vadd.f32 %v3942, %v4006
        %v4008 = vpop.f32.mrb[0].mxu0
        %v4009 = vpop.f32.mrb[0].mxu0
        %v4010 = vadd.f32 %v3945, %v4009
        %v4011 = vpop.f32.mrb[0].mxu0
        %4012 = vmatprep.mubr.bf16.mxu0 %v1183
        %4013 = vmatmul.mubr.bf16.gmra.mrb[0].mxu0 %v1182
        %v4014 = vpop.f32.mrb[0].mxu0
        %v4015 = vadd.f32 %v3950, %v4014
        %v4016 = vpop.f32.mrb[0].mxu0
        %v4017 = vpop.f32.mrb[0].mxu0
        %v4018 = vadd.f32 %v3953, %v4017
        %v4019 = vpop.f32.mrb[0].mxu0
        %4020 = vmatprep.mubr.bf16.mxu0 %v1187
        %4021 = vmatmul.mubr.bf16.gmra.mrb[0].mxu0 %v1186
        %v4022 = vpop.f32.mrb[0].mxu0
        %v4023 = vadd.f32 %v3958, %v4022
        %v4024 = vpop.f32.mrb[0].mxu0
        %v4025 = vpop.f32.mrb[0].mxu0
        %v4026 = vadd.f32 %v3961, %v4025
        %v4027 = vpop.f32.mrb[0].mxu0
        %4028 = vmatprep.mubr.bf16.mxu0 %v1191
        %4029 = vmatmul.mubr.bf16.gmra.mrb[0].mxu0 %v1190
        %v4030 = vpop.f32.mrb[0].mxu0
        %v4031 = vadd.f32 %v3966, %v4030
        %v4032 = vpop.f32.mrb[0].mxu0
        %v4033 = vpop.f32.mrb[0].mxu0
        %v4034 = vadd.f32 %v3969, %v4033
        %v4035 = vpop.f32.mrb[0].mxu0
        %4036 = vdwg.mxu0
        %4037 = vmatprep.subr.bf16.mxu0 0
        %4038 = vmatpush1.bf16.msra.mxu0 %v3167
        %4039 = vmatprep.subr.bf16.mxu0 0
        %4040 = vmatpush1.bf16.msra.mxu0 %v3168
        %4041 = vmatprep.subr.bf16.mxu0 0
        %4042 = vmatpush1.bf16.msra.mxu0 %v3169
        %4043 = vmatprep.subr.bf16.mxu0 0
        %4044 = vmatpush1.bf16.msra.mxu0 %v3170
        %4045 = vmatprep.subr.bf16.mxu0 0
        %4046 = vmatpush1.bf16.msra.mxu0 %v3171
        %4047 = vmatprep.subr.bf16.mxu0 0
        %4048 = vmatpush1.bf16.msra.mxu0 %v3172
        %4049 = vmatprep.subr.bf16.mxu0 0
        %4050 = vmatpush1.bf16.msra.mxu0 %v3173
        %4051 = vmatprep.subr.bf16.mxu0 0
        %4052 = vmatpush1.bf16.msra.mxu0 %v3174
        %4053 = vmatprep.subr.bf16.mxu0 0
        %4054 = vmatpush1.bf16.msra.mxu0 %v3175
        %4055 = vmatprep.subr.bf16.mxu0 0
        %4056 = vmatpush1.bf16.msra.mxu0 %v3176
        %4057 = vmatprep.subr.bf16.mxu0 0
        %4058 = vmatpush1.bf16.msra.mxu0 %v3177
        %4059 = vmatprep.subr.bf16.mxu0 0
        %4060 = vmatpush1.bf16.msra.mxu0 %v3178
        %4061 = vmatprep.subr.bf16.mxu0 0
        %4062 = vmatpush1.bf16.msra.mxu0 %v3179
        %4063 = vmatprep.subr.bf16.mxu0 0
        %4064 = vmatpush1.bf16.msra.mxu0 %v3180
        %4065 = vmatprep.subr.bf16.mxu0 0
        %4066 = vmatpush1.bf16.msra.mxu0 %v3181
        %4067 = vmatprep.subr.bf16.mxu0 0
        %4068 = vmatpush1.bf16.msra.mxu0 %v3182
        %4069 = vmatprep.mubr.bf16.mxu0 %v1209
        %4070 = vmatmul.mubr.bf16.gmra.mrb[0].mxu0 %v1208
        %v4071 = vpop.f32.mrb[0].mxu0
        %v4072 = vadd.f32 %v4007, %v4071
        %v4073 = vpop.f32.mrb[0].mxu0
        %v4074 = vpop.f32.mrb[0].mxu0
        %v4075 = vadd.f32 %v4010, %v4074
        %v4076 = vpop.f32.mrb[0].mxu0
        %4077 = vmatprep.mubr.bf16.mxu0 %v1213
        %4078 = vmatmul.mubr.bf16.gmra.mrb[0].mxu0 %v1212
        %v4079 = vpop.f32.mrb[0].mxu0
        %v4080 = vadd.f32 %v4015, %v4079
        %v4081 = vpop.f32.mrb[0].mxu0
        %v4082 = vpop.f32.mrb[0].mxu0
        %v4083 = vadd.f32 %v4018, %v4082
        %v4084 = vpop.f32.mrb[0].mxu0
        %4085 = vmatprep.mubr.bf16.mxu0 %v1217
        %4086 = vmatmul.mubr.bf16.gmra.mrb[0].mxu0 %v1216
        %v4087 = vpop.f32.mrb[0].mxu0
        %v4088 = vadd.f32 %v4023, %v4087
        %v4089 = vpop.f32.mrb[0].mxu0
        %v4090 = vpop.f32.mrb[0].mxu0
        %v4091 = vadd.f32 %v4026, %v4090
        %v4092 = vpop.f32.mrb[0].mxu0
        %4093 = vmatprep.mubr.bf16.mxu0 %v1221
        %4094 = vmatmul.mubr.bf16.gmra.mrb[0].mxu0 %v1220
        %v4095 = vpop.f32.mrb[0].mxu0
        %v4096 = vadd.f32 %v4031, %v4095
        %v4097 = vpop.f32.mrb[0].mxu0
        %v4098 = vpop.f32.mrb[0].mxu0
        %v4099 = vadd.f32 %v4034, %v4098
        %v4100 = vpop.f32.mrb[0].mxu0
        %4101 = vdwg.mxu0
        %4102 = vmatprep.subr.bf16.mxu0 0
        %4103 = vmatpush1.bf16.msra.mxu0 %v3183
        %4104 = vmatprep.subr.bf16.mxu0 0
        %4105 = vmatpush1.bf16.msra.mxu0 %v3184
        %4106 = vmatprep.subr.bf16.mxu0 0
        %4107 = vmatpush1.bf16.msra.mxu0 %v3185
        %4108 = vmatprep.subr.bf16.mxu0 0
        %4109 = vmatpush1.bf16.msra.mxu0 %v3186
        %4110 = vmatprep.subr.bf16.mxu0 0
        %4111 = vmatpush1.bf16.msra.mxu0 %v3187
        %4112 = vmatprep.subr.bf16.mxu0 0
        %4113 = vmatpush1.bf16.msra.mxu0 %v3188
        %4114 = vmatprep.subr.bf16.mxu0 0
        %4115 = vmatpush1.bf16.msra.mxu0 %v3189
        %4116 = vmatprep.subr.bf16.mxu0 0
        %4117 = vmatpush1.bf16.msra.mxu0 %v3190
        %4118 = vmatprep.subr.bf16.mxu0 0
        %4119 = vmatpush1.bf16.msra.mxu0 %v3191
        %4120 = vmatprep.subr.bf16.mxu0 0
        %4121 = vmatpush1.bf16.msra.mxu0 %v3192
        %4122 = vmatprep.subr.bf16.mxu0 0
        %4123 = vmatpush1.bf16.msra.mxu0 %v3193
        %4124 = vmatprep.subr.bf16.mxu0 0
        %4125 = vmatpush1.bf16.msra.mxu0 %v3194
        %4126 = vmatprep.subr.bf16.mxu0 0
        %4127 = vmatpush1.bf16.msra.mxu0 %v3195
        %4128 = vmatprep.subr.bf16.mxu0 0
        %4129 = vmatpush1.bf16.msra.mxu0 %v3196
        %4130 = vmatprep.subr.bf16.mxu0 0
        %4131 = vmatpush1.bf16.msra.mxu0 %v3197
        %4132 = vmatprep.subr.bf16.mxu0 0
        %4133 = vmatpush1.bf16.msra.mxu0 %v3198
        %4134 = vmatprep.mubr.bf16.mxu0 %v1211
        %4135 = vmatmul.mubr.bf16.gmra.mrb[0].mxu0 %v1210
        %v4136 = vpop.f32.mrb[0].mxu0
        %v4137 = vadd.f32 %v4072, %v4136
        %v4138 = vpop.f32.mrb[0].mxu0
        %v4139 = vpop.f32.mrb[0].mxu0
        %v4140 = vadd.f32 %v4075, %v4139
        %v4141 = vpop.f32.mrb[0].mxu0
        %4142 = vmatprep.mubr.bf16.mxu0 %v1215
        %4143 = vmatmul.mubr.bf16.gmra.mrb[0].mxu0 %v1214
        %v4144 = vpop.f32.mrb[0].mxu0
        %v4145 = vadd.f32 %v4080, %v4144
        %v4146 = vpop.f32.mrb[0].mxu0
        %v4147 = vpop.f32.mrb[0].mxu0
        %v4148 = vadd.f32 %v4083, %v4147
        %v4149 = vpop.f32.mrb[0].mxu0
        %4150 = vmatprep.mubr.bf16.mxu0 %v1219
        %4151 = vmatmul.mubr.bf16.gmra.mrb[0].mxu0 %v1218
        %v4152 = vpop.f32.mrb[0].mxu0
        %v4153 = vadd.f32 %v4088, %v4152
        %v4154 = vpop.f32.mrb[0].mxu0
        %v4155 = vpop.f32.mrb[0].mxu0
        %v4156 = vadd.f32 %v4091, %v4155
        %v4157 = vpop.f32.mrb[0].mxu0
        %4158 = vmatprep.mubr.bf16.mxu0 %v1223
        %4159 = vmatmul.mubr.bf16.gmra.mrb[0].mxu0 %v1222
        %v4160 = vpop.f32.mrb[0].mxu0
        %v4161 = vadd.f32 %v4096, %v4160
        %v4162 = vpop.f32.mrb[0].mxu0
        %v4163 = vpop.f32.mrb[0].mxu0
        %v4164 = vadd.f32 %v4099, %v4163
        %v4165 = vpop.f32.mrb[0].mxu0
        %4166 = vdwg.mxu0
        %4167 = vmatprep.subr.bf16.mxu0 0
        %4168 = vmatpush1.bf16.msra.mxu0 %v3199
        %4169 = vmatprep.subr.bf16.mxu0 0
        %4170 = vmatpush1.bf16.msra.mxu0 %v3200
        %4171 = vmatprep.subr.bf16.mxu0 0
        %4172 = vmatpush1.bf16.msra.mxu0 %v3201
        %4173 = vmatprep.subr.bf16.mxu0 0
        %4174 = vmatpush1.bf16.msra.mxu0 %v3202
        %4175 = vmatprep.subr.bf16.mxu0 0
        %4176 = vmatpush1.bf16.msra.mxu0 %v3203
        %4177 = vmatprep.subr.bf16.mxu0 0
        %4178 = vmatpush1.bf16.msra.mxu0 %v3204
        %4179 = vmatprep.subr.bf16.mxu0 0
        %4180 = vmatpush1.bf16.msra.mxu0 %v3205
        %4181 = vmatprep.subr.bf16.mxu0 0
        %4182 = vmatpush1.bf16.msra.mxu0 %v3206
        %4183 = vmatprep.subr.bf16.mxu0 0
        %4184 = vmatpush1.bf16.msra.mxu0 %v3207
        %4185 = vmatprep.subr.bf16.mxu0 0
        %4186 = vmatpush1.bf16.msra.mxu0 %v3208
        %4187 = vmatprep.subr.bf16.mxu0 0
        %4188 = vmatpush1.bf16.msra.mxu0 %v3209
        %4189 = vmatprep.subr.bf16.mxu0 0
        %4190 = vmatpush1.bf16.msra.mxu0 %v3210
        %4191 = vmatprep.subr.bf16.mxu0 0
        %4192 = vmatpush1.bf16.msra.mxu0 %v3211
        %4193 = vmatprep.subr.bf16.mxu0 0
        %4194 = vmatpush1.bf16.msra.mxu0 %v3212
        %4195 = vmatprep.subr.bf16.mxu0 0
        %4196 = vmatpush1.bf16.msra.mxu0 %v3213
        %4197 = vmatprep.subr.bf16.mxu0 0
        %4198 = vmatpush1.bf16.msra.mxu0 %v3214
        %4199 = vmatprep.mubr.bf16.mxu0 %v1245
        %4200 = vmatmul.mubr.bf16.gmra.mrb[0].mxu0 %v1244
        %v4201 = vpop.f32.mrb[0].mxu0
        %v4202 = vadd.f32 %v4137, %v4201
        %v4203 = vpop.f32.mrb[0].mxu0
        %v4204 = vpop.f32.mrb[0].mxu0
        %v4205 = vadd.f32 %v4140, %v4204
        %v4206 = vpop.f32.mrb[0].mxu0
        %4207 = vmatprep.mubr.bf16.mxu0 %v1249
        %4208 = vmatmul.mubr.bf16.gmra.mrb[0].mxu0 %v1248
        %v4209 = vpop.f32.mrb[0].mxu0
        %v4210 = vadd.f32 %v4145, %v4209
        %v4211 = vpop.f32.mrb[0].mxu0
        %v4212 = vpop.f32.mrb[0].mxu0
        %v4213 = vadd.f32 %v4148, %v4212
        %v4214 = vpop.f32.mrb[0].mxu0
        %4215 = vmatprep.mubr.bf16.mxu0 %v1253
        %4216 = vmatmul.mubr.bf16.gmra.mrb[0].mxu0 %v1252
        %v4217 = vpop.f32.mrb[0].mxu0
        %v4218 = vadd.f32 %v4153, %v4217
        %v4219 = vpop.f32.mrb[0].mxu0
        %v4220 = vpop.f32.mrb[0].mxu0
        %v4221 = vadd.f32 %v4156, %v4220
        %v4222 = vpop.f32.mrb[0].mxu0
        %4223 = vmatprep.mubr.bf16.mxu0 %v1257
        %4224 = vmatmul.mubr.bf16.gmra.mrb[0].mxu0 %v1256
        %v4225 = vpop.f32.mrb[0].mxu0
        %v4226 = vadd.f32 %v4161, %v4225
        %v4227 = vpop.f32.mrb[0].mxu0
        %v4228 = vpop.f32.mrb[0].mxu0
        %v4229 = vadd.f32 %v4164, %v4228
        %v4230 = vpop.f32.mrb[0].mxu0
        %4231 = vdwg.mxu0
        %4232 = vmatprep.subr.bf16.mxu0 0
        %4233 = vmatpush1.bf16.msra.mxu0 %v3215
        %4234 = vmatprep.subr.bf16.mxu0 0
        %4235 = vmatpush1.bf16.msra.mxu0 %v3216
        %4236 = vmatprep.subr.bf16.mxu0 0
        %4237 = vmatpush1.bf16.msra.mxu0 %v3217
        %4238 = vmatprep.subr.bf16.mxu0 0
        %4239 = vmatpush1.bf16.msra.mxu0 %v3218
        %4240 = vmatprep.subr.bf16.mxu0 0
        %4241 = vmatpush1.bf16.msra.mxu0 %v3219
        %4242 = vmatprep.subr.bf16.mxu0 0
        %4243 = vmatpush1.bf16.msra.mxu0 %v3220
        %4244 = vmatprep.subr.bf16.mxu0 0
        %4245 = vmatpush1.bf16.msra.mxu0 %v3221
        %4246 = vmatprep.subr.bf16.mxu0 0
        %4247 = vmatpush1.bf16.msra.mxu0 %v3222
        %4248 = vmatprep.subr.bf16.mxu0 0
        %4249 = vmatpush1.bf16.msra.mxu0 %v3223
        %4250 = vmatprep.subr.bf16.mxu0 0
        %4251 = vmatpush1.bf16.msra.mxu0 %v3224
        %4252 = vmatprep.subr.bf16.mxu0 0
        %4253 = vmatpush1.bf16.msra.mxu0 %v3225
        %4254 = vmatprep.subr.bf16.mxu0 0
        %4255 = vmatpush1.bf16.msra.mxu0 %v3226
        %4256 = vmatprep.subr.bf16.mxu0 0
        %4257 = vmatpush1.bf16.msra.mxu0 %v3227
        %4258 = vmatprep.subr.bf16.mxu0 0
        %4259 = vmatpush1.bf16.msra.mxu0 %v3228
        %4260 = vmatprep.subr.bf16.mxu0 0
        %4261 = vmatpush1.bf16.msra.mxu0 %v3229
        %4262 = vmatprep.subr.bf16.mxu0 0
        %4263 = vmatpush1.bf16.msra.mxu0 %v3230
        %4264 = vmatprep.mubr.bf16.mxu0 %v1247
        %4265 = vmatmul.mubr.bf16.gmra.mrb[0].mxu0 %v1246
        %v4266 = vpop.f32.mrb[0].mxu0
        %v4267 = vadd.f32 %v4202, %v4266
        %v4268 = vpop.f32.mrb[0].mxu0
        %v4269 = vpop.f32.mrb[0].mxu0
        %v4270 = vadd.f32 %v4205, %v4269
        %v4271 = vpop.f32.mrb[0].mxu0
        %4272 = vmatprep.mubr.bf16.mxu0 %v1251
        %4273 = vmatmul.mubr.bf16.gmra.mrb[0].mxu0 %v1250
        %v4274 = vpop.f32.mrb[0].mxu0
        %v4275 = vadd.f32 %v4210, %v4274
        %v4276 = vpop.f32.mrb[0].mxu0
        %v4277 = vpop.f32.mrb[0].mxu0
        %v4278 = vadd.f32 %v4213, %v4277
        %v4279 = vpop.f32.mrb[0].mxu0
        %4280 = vmatprep.mubr.bf16.mxu0 %v1255
        %4281 = vmatmul.mubr.bf16.gmra.mrb[0].mxu0 %v1254
        %v4282 = vpop.f32.mrb[0].mxu0
        %v4283 = vadd.f32 %v4218, %v4282
        %v4284 = vpop.f32.mrb[0].mxu0
        %v4285 = vpop.f32.mrb[0].mxu0
        %v4286 = vadd.f32 %v4221, %v4285
        %v4287 = vpop.f32.mrb[0].mxu0
        %4288 = vmatprep.mubr.bf16.mxu0 %v1259
        %4289 = vmatmul.mubr.bf16.gmra.mrb[0].mxu0 %v1258
        %v4290 = vpop.f32.mrb[0].mxu0
        %v4291 = vadd.f32 %v4226, %v4290
        %v4292 = vpop.f32.mrb[0].mxu0
        %v4293 = vpop.f32.mrb[0].mxu0
        %v4294 = vadd.f32 %v4229, %v4293
        %v4295 = vpop.f32.mrb[0].mxu0
        %4296 = vdwg.mxu0
        %4297 = vmatprep.subr.bf16.mxu0 0
        %4298 = vmatpush1.bf16.msra.mxu0 %v3231
        %4299 = vmatprep.subr.bf16.mxu0 0
        %4300 = vmatpush1.bf16.msra.mxu0 %v3232
        %4301 = vmatprep.subr.bf16.mxu0 0
        %4302 = vmatpush1.bf16.msra.mxu0 %v3233
        %4303 = vmatprep.subr.bf16.mxu0 0
        %4304 = vmatpush1.bf16.msra.mxu0 %v3234
        %4305 = vmatprep.subr.bf16.mxu0 0
        %4306 = vmatpush1.bf16.msra.mxu0 %v3235
        %4307 = vmatprep.subr.bf16.mxu0 0
        %4308 = vmatpush1.bf16.msra.mxu0 %v3236
        %4309 = vmatprep.subr.bf16.mxu0 0
        %4310 = vmatpush1.bf16.msra.mxu0 %v3237
        %4311 = vmatprep.subr.bf16.mxu0 0
        %4312 = vmatpush1.bf16.msra.mxu0 %v3238
        %4313 = vmatprep.subr.bf16.mxu0 0
        %4314 = vmatpush1.bf16.msra.mxu0 %v3239
        %4315 = vmatprep.subr.bf16.mxu0 0
        %4316 = vmatpush1.bf16.msra.mxu0 %v3240
        %4317 = vmatprep.subr.bf16.mxu0 0
        %4318 = vmatpush1.bf16.msra.mxu0 %v3241
        %4319 = vmatprep.subr.bf16.mxu0 0
        %4320 = vmatpush1.bf16.msra.mxu0 %v3242
        %4321 = vmatprep.subr.bf16.mxu0 0
        %4322 = vmatpush1.bf16.msra.mxu0 %v3243
        %4323 = vmatprep.subr.bf16.mxu0 0
        %4324 = vmatpush1.bf16.msra.mxu0 %v3244
        %4325 = vmatprep.subr.bf16.mxu0 0
        %4326 = vmatpush1.bf16.msra.mxu0 %v3245
        %4327 = vmatprep.subr.bf16.mxu0 0
        %4328 = vmatpush1.bf16.msra.mxu0 %v3246
        %4329 = vmatprep.mubr.bf16.mxu0 %v1281
        %4330 = vmatmul.mubr.bf16.gmra.mrb[0].mxu0 %v1280
        %v4331 = vpop.f32.mrb[0].mxu0
        %v4332 = vadd.f32 %v4267, %v4331
        %v4333 = vpop.f32.mrb[0].mxu0
        %v4334 = vpop.f32.mrb[0].mxu0
        %v4335 = vadd.f32 %v4270, %v4334
        %v4336 = vpop.f32.mrb[0].mxu0
        %4337 = vmatprep.mubr.bf16.mxu0 %v1285
        %4338 = vmatmul.mubr.bf16.gmra.mrb[0].mxu0 %v1284
        %v4339 = vpop.f32.mrb[0].mxu0
        %v4340 = vadd.f32 %v4275, %v4339
        %v4341 = vpop.f32.mrb[0].mxu0
        %v4342 = vpop.f32.mrb[0].mxu0
        %v4343 = vadd.f32 %v4278, %v4342
        %v4344 = vpop.f32.mrb[0].mxu0
        %4345 = vmatprep.mubr.bf16.mxu0 %v1289
        %4346 = vmatmul.mubr.bf16.gmra.mrb[0].mxu0 %v1288
        %v4347 = vpop.f32.mrb[0].mxu0
        %v4348 = vadd.f32 %v4283, %v4347
        %v4349 = vpop.f32.mrb[0].mxu0
        %v4350 = vpop.f32.mrb[0].mxu0
        %v4351 = vadd.f32 %v4286, %v4350
        %v4352 = vpop.f32.mrb[0].mxu0
        %4353 = vmatprep.mubr.bf16.mxu0 %v1293
        %4354 = vmatmul.mubr.bf16.gmra.mrb[0].mxu0 %v1292
        %v4355 = vpop.f32.mrb[0].mxu0
        %v4356 = vadd.f32 %v4291, %v4355
        %v4357 = vpop.f32.mrb[0].mxu0
        %v4358 = vpop.f32.mrb[0].mxu0
        %v4359 = vadd.f32 %v4294, %v4358
        %v4360 = vpop.f32.mrb[0].mxu0
        %4361 = vdwg.mxu0
        %4362 = vmatprep.subr.bf16.mxu0 0
        %4363 = vmatpush1.bf16.msra.mxu0 %v3247
        %4364 = vmatprep.subr.bf16.mxu0 0
        %4365 = vmatpush1.bf16.msra.mxu0 %v3248
        %4366 = vmatprep.subr.bf16.mxu0 0
        %4367 = vmatpush1.bf16.msra.mxu0 %v3249
        %4368 = vmatprep.subr.bf16.mxu0 0
        %4369 = vmatpush1.bf16.msra.mxu0 %v3250
        %4370 = vmatprep.subr.bf16.mxu0 0
        %4371 = vmatpush1.bf16.msra.mxu0 %v3251
        %4372 = vmatprep.subr.bf16.mxu0 0
        %4373 = vmatpush1.bf16.msra.mxu0 %v3252
        %4374 = vmatprep.subr.bf16.mxu0 0
        %4375 = vmatpush1.bf16.msra.mxu0 %v3253
        %4376 = vmatprep.subr.bf16.mxu0 0
        %4377 = vmatpush1.bf16.msra.mxu0 %v3254
        %4378 = vmatprep.subr.bf16.mxu0 0
        %4379 = vmatpush1.bf16.msra.mxu0 %v3255
        %4380 = vmatprep.subr.bf16.mxu0 0
        %4381 = vmatpush1.bf16.msra.mxu0 %v3256
        %4382 = vmatprep.subr.bf16.mxu0 0
        %4383 = vmatpush1.bf16.msra.mxu0 %v3257
        %4384 = vmatprep.subr.bf16.mxu0 0
        %4385 = vmatpush1.bf16.msra.mxu0 %v3258
        %4386 = vmatprep.subr.bf16.mxu0 0
        %4387 = vmatpush1.bf16.msra.mxu0 %v3259
        %4388 = vmatprep.subr.bf16.mxu0 0
        %4389 = vmatpush1.bf16.msra.mxu0 %v3260
        %4390 = vmatprep.subr.bf16.mxu0 0
        %4391 = vmatpush1.bf16.msra.mxu0 %v3261
        %4392 = vmatprep.subr.bf16.mxu0 0
        %4393 = vmatpush1.bf16.msra.mxu0 %v3262
        %4394 = vmatprep.mubr.bf16.mxu0 %v1283
        %4395 = vmatmul.mubr.bf16.gmra.mrb[0].mxu0 %v1282
        %v4396 = vpop.f32.mrb[0].mxu0
        %v4397 = vadd.f32 %v4332, %v4396
        %v4398 = vpop.f32.mrb[0].mxu0
        %v4399 = vpop.f32.mrb[0].mxu0
        %v4400 = vadd.f32 %v4335, %v4399
        %v4401 = vpop.f32.mrb[0].mxu0
        %4402 = vmatprep.mubr.bf16.mxu0 %v1287
        %4403 = vmatmul.mubr.bf16.gmra.mrb[0].mxu0 %v1286
        %v4404 = vpop.f32.mrb[0].mxu0
        %v4405 = vadd.f32 %v4340, %v4404
        %v4406 = vpop.f32.mrb[0].mxu0
        %v4407 = vpop.f32.mrb[0].mxu0
        %v4408 = vadd.f32 %v4343, %v4407
        %v4409 = vpop.f32.mrb[0].mxu0
        %4410 = vmatprep.mubr.bf16.mxu0 %v1291
        %4411 = vmatmul.mubr.bf16.gmra.mrb[0].mxu0 %v1290
        %v4412 = vpop.f32.mrb[0].mxu0
        %v4413 = vadd.f32 %v4348, %v4412
        %v4414 = vpop.f32.mrb[0].mxu0
        %v4415 = vpop.f32.mrb[0].mxu0
        %v4416 = vadd.f32 %v4351, %v4415
        %v4417 = vpop.f32.mrb[0].mxu0
        %4418 = vmatprep.mubr.bf16.mxu0 %v1295
        %4419 = vmatmul.mubr.bf16.gmra.mrb[0].mxu0 %v1294
        %v4420 = vpop.f32.mrb[0].mxu0
        %v4421 = vadd.f32 %v4356, %v4420
        %v4422 = vpop.f32.mrb[0].mxu0
        %v4423 = vpop.f32.mrb[0].mxu0
        %v4424 = vadd.f32 %v4359, %v4423
        %v4425 = vpop.f32.mrb[0].mxu0
        %4426 = vdwg.mxu0
        %4427 = vmatprep.subr.bf16.mxu0 0
        %4428 = vmatpush1.bf16.msra.mxu0 %v3263
        %4429 = vmatprep.subr.bf16.mxu0 0
        %4430 = vmatpush1.bf16.msra.mxu0 %v3264
        %4431 = vmatprep.subr.bf16.mxu0 0
        %4432 = vmatpush1.bf16.msra.mxu0 %v3265
        %4433 = vmatprep.subr.bf16.mxu0 0
        %4434 = vmatpush1.bf16.msra.mxu0 %v3266
        %4435 = vmatprep.subr.bf16.mxu0 0
        %4436 = vmatpush1.bf16.msra.mxu0 %v3267
        %4437 = vmatprep.subr.bf16.mxu0 0
        %4438 = vmatpush1.bf16.msra.mxu0 %v3268
        %4439 = vmatprep.subr.bf16.mxu0 0
        %4440 = vmatpush1.bf16.msra.mxu0 %v3269
        %4441 = vmatprep.subr.bf16.mxu0 0
        %4442 = vmatpush1.bf16.msra.mxu0 %v3270
        %4443 = vmatprep.subr.bf16.mxu0 0
        %4444 = vmatpush1.bf16.msra.mxu0 %v3271
        %4445 = vmatprep.subr.bf16.mxu0 0
        %4446 = vmatpush1.bf16.msra.mxu0 %v3272
        %4447 = vmatprep.subr.bf16.mxu0 0
        %4448 = vmatpush1.bf16.msra.mxu0 %v3273
        %4449 = vmatprep.subr.bf16.mxu0 0
        %4450 = vmatpush1.bf16.msra.mxu0 %v3274
        %4451 = vmatprep.subr.bf16.mxu0 0
        %4452 = vmatpush1.bf16.msra.mxu0 %v3275
        %4453 = vmatprep.subr.bf16.mxu0 0
        %4454 = vmatpush1.bf16.msra.mxu0 %v3276
        %4455 = vmatprep.subr.bf16.mxu0 0
        %4456 = vmatpush1.bf16.msra.mxu0 %v3277
        %4457 = vmatprep.subr.bf16.mxu0 0
        %4458 = vmatpush1.bf16.msra.mxu0 %v3278
        %4459 = vmatprep.mubr.bf16.mxu0 %v1057
        %4460 = vmatmul.mubr.bf16.gmra.mrb[0].mxu0 %v1056
        %v4461 = vpop.f32.mrb[0].mxu0
        %v4462 = vadd.f32 %v4397, %v4461
        %v4463 = vpop.f32.mrb[0].mxu0
        %v4464 = vpop.f32.mrb[0].mxu0
        %v4465 = vadd.f32 %v4400, %v4464
        %v4466 = vpop.f32.mrb[0].mxu0
        %4467 = vmatprep.mubr.bf16.mxu0 %v1061
        %4468 = vmatmul.mubr.bf16.gmra.mrb[0].mxu0 %v1060
        %v4469 = vpop.f32.mrb[0].mxu0
        %v4470 = vadd.f32 %v4405, %v4469
        %v4471 = vpop.f32.mrb[0].mxu0
        %v4472 = vpop.f32.mrb[0].mxu0
        %v4473 = vadd.f32 %v4408, %v4472
        %v4474 = vpop.f32.mrb[0].mxu0
        %4475 = vmatprep.mubr.bf16.mxu0 %v1065
        %4476 = vmatmul.mubr.bf16.gmra.mrb[0].mxu0 %v1064
        %v4477 = vpop.f32.mrb[0].mxu0
        %v4478 = vadd.f32 %v4413, %v4477
        %v4479 = vpop.f32.mrb[0].mxu0
        %v4480 = vpop.f32.mrb[0].mxu0
        %v4481 = vadd.f32 %v4416, %v4480
        %v4482 = vpop.f32.mrb[0].mxu0
        %4483 = vmatprep.mubr.bf16.mxu0 %v1313
        %4484 = vmatmul.mubr.bf16.gmra.mrb[0].mxu0 %v1312
        %v4485 = vpop.f32.mrb[0].mxu0
        %v4486 = vadd.f32 %v4421, %v4485
        %v4487 = vpop.f32.mrb[0].mxu0
        %v4488 = vpop.f32.mrb[0].mxu0
        %v4489 = vadd.f32 %v4424, %v4488
        %v4490 = vpop.f32.mrb[0].mxu0
        %4491 = vdwg.mxu0
        %4492 = vmatprep.subr.bf16.mxu0 0
        %4493 = vmatpush1.bf16.msra.mxu0 %v3279
        %4494 = vmatprep.subr.bf16.mxu0 0
        %4495 = vmatpush1.bf16.msra.mxu0 %v3280
        %4496 = vmatprep.subr.bf16.mxu0 0
        %4497 = vmatpush1.bf16.msra.mxu0 %v3281
        %4498 = vmatprep.subr.bf16.mxu0 0
        %4499 = vmatpush1.bf16.msra.mxu0 %v3282
        %4500 = vmatprep.subr.bf16.mxu0 0
        %4501 = vmatpush1.bf16.msra.mxu0 %v3283
        %4502 = vmatprep.subr.bf16.mxu0 0
        %4503 = vmatpush1.bf16.msra.mxu0 %v3284
        %4504 = vmatprep.subr.bf16.mxu0 0
        %4505 = vmatpush1.bf16.msra.mxu0 %v3285
        %4506 = vmatprep.subr.bf16.mxu0 0
        %4507 = vmatpush1.bf16.msra.mxu0 %v3286
        %4508 = vmatprep.subr.bf16.mxu0 0
        %4509 = vmatpush1.bf16.msra.mxu0 %v3287
        %4510 = vmatprep.subr.bf16.mxu0 0
        %4511 = vmatpush1.bf16.msra.mxu0 %v3288
        %4512 = vmatprep.subr.bf16.mxu0 0
        %4513 = vmatpush1.bf16.msra.mxu0 %v3289
        %4514 = vmatprep.subr.bf16.mxu0 0
        %4515 = vmatpush1.bf16.msra.mxu0 %v3290
        %4516 = vmatprep.subr.bf16.mxu0 0
        %4517 = vmatpush1.bf16.msra.mxu0 %v3291
        %4518 = vmatprep.subr.bf16.mxu0 0
        %4519 = vmatpush1.bf16.msra.mxu0 %v3292
        %4520 = vmatprep.subr.bf16.mxu0 0
        %4521 = vmatpush1.bf16.msra.mxu0 %v3293
        %4522 = vmatprep.subr.bf16.mxu0 0
        %4523 = vmatpush1.bf16.msra.mxu0 %v3294
        %4524 = vmatprep.mubr.bf16.mxu0 %v1059
        %4525 = vmatmul.mubr.bf16.gmra.mrb[0].mxu0 %v1058
        %v4526 = vpop.f32.mrb[0].mxu0
        %v4527 = vadd.f32 %v4462, %v4526
        %v4528 = vpop.f32.mrb[0].mxu0
        %v4529 = vpop.f32.mrb[0].mxu0
        %v4530 = vadd.f32 %v4465, %v4529
        %v4531 = vpop.f32.mrb[0].mxu0
        %4532 = vmatprep.mubr.bf16.mxu0 %v1063
        %4533 = vmatmul.mubr.bf16.gmra.mrb[0].mxu0 %v1062
        %v4534 = vpop.f32.mrb[0].mxu0
        %v4535 = vadd.f32 %v4470, %v4534
        %v4536 = vpop.f32.mrb[0].mxu0
        %v4537 = vpop.f32.mrb[0].mxu0
        %v4538 = vadd.f32 %v4473, %v4537
        %v4539 = vpop.f32.mrb[0].mxu0
        %4540 = vmatprep.mubr.bf16.mxu0 %v1067
        %4541 = vmatmul.mubr.bf16.gmra.mrb[0].mxu0 %v1066
        %v4542 = vpop.f32.mrb[0].mxu0
        %v4543 = vadd.f32 %v4478, %v4542
        %v4544 = vpop.f32.mrb[0].mxu0
        %v4545 = vpop.f32.mrb[0].mxu0
        %v4546 = vadd.f32 %v4481, %v4545
        %v4547 = vpop.f32.mrb[0].mxu0
        %4548 = vmatprep.mubr.bf16.mxu0 %v1315
        %4549 = vmatmul.mubr.bf16.gmra.mrb[0].mxu0 %v1314
        %v4550 = vpop.f32.mrb[0].mxu0
        %v4551 = vadd.f32 %v4486, %v4550
        %v4552 = vpop.f32.mrb[0].mxu0
        %v4553 = vpop.f32.mrb[0].mxu0
        %v4554 = vadd.f32 %v4489, %v4553
        %v4555 = vpop.f32.mrb[0].mxu0
        %4556 = vdwg.mxu0
        %4557 = vmatprep.subr.bf16.mxu0 0
        %4558 = vmatpush1.bf16.msra.mxu0 %v3295
        %4559 = vmatprep.subr.bf16.mxu0 0
        %4560 = vmatpush1.bf16.msra.mxu0 %v3296
        %4561 = vmatprep.subr.bf16.mxu0 0
        %4562 = vmatpush1.bf16.msra.mxu0 %v3297
        %4563 = vmatprep.subr.bf16.mxu0 0
        %4564 = vmatpush1.bf16.msra.mxu0 %v3298
        %4565 = vmatprep.subr.bf16.mxu0 0
        %4566 = vmatpush1.bf16.msra.mxu0 %v3299
        %4567 = vmatprep.subr.bf16.mxu0 0
        %4568 = vmatpush1.bf16.msra.mxu0 %v3300
        %4569 = vmatprep.subr.bf16.mxu0 0
        %4570 = vmatpush1.bf16.msra.mxu0 %v3301
        %4571 = vmatprep.subr.bf16.mxu0 0
        %4572 = vmatpush1.bf16.msra.mxu0 %v3302
        %4573 = vmatprep.subr.bf16.mxu0 0
        %4574 = vmatpush1.bf16.msra.mxu0 %v3303
        %4575 = vmatprep.subr.bf16.mxu0 0
        %4576 = vmatpush1.bf16.msra.mxu0 %v3304
        %4577 = vmatprep.subr.bf16.mxu0 0
        %4578 = vmatpush1.bf16.msra.mxu0 %v3305
        %4579 = vmatprep.subr.bf16.mxu0 0
        %4580 = vmatpush1.bf16.msra.mxu0 %v3306
        %4581 = vmatprep.subr.bf16.mxu0 0
        %4582 = vmatpush1.bf16.msra.mxu0 %v3307
        %4583 = vmatprep.subr.bf16.mxu0 0
        %4584 = vmatpush1.bf16.msra.mxu0 %v3308
        %4585 = vmatprep.subr.bf16.mxu0 0
        %4586 = vmatpush1.bf16.msra.mxu0 %v3309
        %4587 = vmatprep.subr.bf16.mxu0 0
        %4588 = vmatpush1.bf16.msra.mxu0 %v3310
        %4589 = vmatprep.mubr.bf16.mxu0 %v1119
        %4590 = vmatmul.mubr.bf16.gmra.mrb[0].mxu0 %v1118
        %v4591 = vpop.f32.mrb[0].mxu0
        %v4592 = vadd.f32 %v4527, %v4591
        %v4593 = vpop.f32.mrb[0].mxu0
        %v4594 = vpop.f32.mrb[0].mxu0
        %v4595 = vadd.f32 %v4530, %v4594
        %v4596 = vpop.f32.mrb[0].mxu0
        %4597 = vmatprep.mubr.bf16.mxu0 %v1123
        %4598 = vmatmul.mubr.bf16.gmra.mrb[0].mxu0 %v1122
        %v4599 = vpop.f32.mrb[0].mxu0
        %v4600 = vadd.f32 %v4535, %v4599
        %v4601 = vpop.f32.mrb[0].mxu0
        %v4602 = vpop.f32.mrb[0].mxu0
        %v4603 = vadd.f32 %v4538, %v4602
        %v4604 = vpop.f32.mrb[0].mxu0
        %4605 = vmatprep.mubr.bf16.mxu0 %v1127
        %4606 = vmatmul.mubr.bf16.gmra.mrb[0].mxu0 %v1126
        %v4607 = vpop.f32.mrb[0].mxu0
        %v4608 = vadd.f32 %v4543, %v4607
        %v4609 = vpop.f32.mrb[0].mxu0
        %v4610 = vpop.f32.mrb[0].mxu0
        %v4611 = vadd.f32 %v4546, %v4610
        %v4612 = vpop.f32.mrb[0].mxu0
        %4613 = vmatprep.mubr.bf16.mxu0 %v1321
        %4614 = vmatmul.mubr.bf16.gmra.mrb[0].mxu0 %v1320
        %v4615 = vpop.f32.mrb[0].mxu0
        %v4616 = vadd.f32 %v4551, %v4615
        %v4617 = vpop.f32.mrb[0].mxu0
        %v4618 = vpop.f32.mrb[0].mxu0
        %v4619 = vadd.f32 %v4554, %v4618
        %v4620 = vpop.f32.mrb[0].mxu0
        %4621 = vdwg.mxu0
        %4622 = vmatprep.subr.bf16.mxu0 0
        %4623 = vmatpush1.bf16.msra.mxu0 %v3311
        %4624 = vmatprep.subr.bf16.mxu0 0
        %4625 = vmatpush1.bf16.msra.mxu0 %v3312
        %4626 = vmatprep.subr.bf16.mxu0 0
        %4627 = vmatpush1.bf16.msra.mxu0 %v3313
        %4628 = vmatprep.subr.bf16.mxu0 0
        %4629 = vmatpush1.bf16.msra.mxu0 %v3314
        %4630 = vmatprep.subr.bf16.mxu0 0
        %4631 = vmatpush1.bf16.msra.mxu0 %v3315
        %4632 = vmatprep.subr.bf16.mxu0 0
        %4633 = vmatpush1.bf16.msra.mxu0 %v3316
        %4634 = vmatprep.subr.bf16.mxu0 0
        %4635 = vmatpush1.bf16.msra.mxu0 %v3317
        %4636 = vmatprep.subr.bf16.mxu0 0
        %4637 = vmatpush1.bf16.msra.mxu0 %v3318
        %4638 = vmatprep.subr.bf16.mxu0 0
        %4639 = vmatpush1.bf16.msra.mxu0 %v3319
        %4640 = vmatprep.subr.bf16.mxu0 0
        %4641 = vmatpush1.bf16.msra.mxu0 %v3320
        %4642 = vmatprep.subr.bf16.mxu0 0
        %4643 = vmatpush1.bf16.msra.mxu0 %v3321
        %4644 = vmatprep.subr.bf16.mxu0 0
        %4645 = vmatpush1.bf16.msra.mxu0 %v3322
        %4646 = vmatprep.subr.bf16.mxu0 0
        %4647 = vmatpush1.bf16.msra.mxu0 %v3323
        %4648 = vmatprep.subr.bf16.mxu0 0
        %4649 = vmatpush1.bf16.msra.mxu0 %v3324
        %4650 = vmatprep.subr.bf16.mxu0 0
        %4651 = vmatpush1.bf16.msra.mxu0 %v3325
        %4652 = vmatprep.subr.bf16.mxu0 0
        %4653 = vmatpush1.bf16.msra.mxu0 %v3326
        %4654 = vmatprep.mubr.bf16.mxu0 %v1121
        %4655 = vmatmul.mubr.bf16.gmra.mrb[0].mxu0 %v1120
        %v4656 = vpop.f32.mrb[0].mxu0
        %v4657 = vadd.f32 %v4592, %v4656
        %v4658 = vpop.f32.mrb[0].mxu0
        %v4659 = vpop.f32.mrb[0].mxu0
        %v4660 = vadd.f32 %v4595, %v4659
        %v4661 = vpop.f32.mrb[0].mxu0
        %4662 = vmatprep.mubr.bf16.mxu0 %v1125
        %4663 = vmatmul.mubr.bf16.gmra.mrb[0].mxu0 %v1124
        %v4664 = vpop.f32.mrb[0].mxu0
        %v4665 = vadd.f32 %v4600, %v4664
        %v4666 = vpop.f32.mrb[0].mxu0
        %v4667 = vpop.f32.mrb[0].mxu0
        %v4668 = vadd.f32 %v4603, %v4667
        %v4669 = vpop.f32.mrb[0].mxu0
        %4670 = vmatprep.mubr.bf16.mxu0 %v1129
        %4671 = vmatmul.mubr.bf16.gmra.mrb[0].mxu0 %v1128
        %v4672 = vpop.f32.mrb[0].mxu0
        %v4673 = vadd.f32 %v4608, %v4672
        %v4674 = vpop.f32.mrb[0].mxu0
        %v4675 = vpop.f32.mrb[0].mxu0
        %v4676 = vadd.f32 %v4611, %v4675
        %v4677 = vpop.f32.mrb[0].mxu0
        %4678 = vmatprep.mubr.bf16.mxu0 %v1323
        %4679 = vmatmul.mubr.bf16.gmra.mrb[0].mxu0 %v1322
        %v4680 = vpop.f32.mrb[0].mxu0
        %v4681 = vadd.f32 %v4616, %v4680
        %v4682 = vpop.f32.mrb[0].mxu0
        %v4683 = vpop.f32.mrb[0].mxu0
        %v4684 = vadd.f32 %v4619, %v4683
        %v4685 = vpop.f32.mrb[0].mxu0
        %4686 = vdwg.mxu0
        %4687 = vmatprep.subr.bf16.mxu0 0
        %4688 = vmatpush1.bf16.msra.mxu0 %v3327
        %4689 = vmatprep.subr.bf16.mxu0 0
        %4690 = vmatpush1.bf16.msra.mxu0 %v3328
        %4691 = vmatprep.subr.bf16.mxu0 0
        %4692 = vmatpush1.bf16.msra.mxu0 %v3329
        %4693 = vmatprep.subr.bf16.mxu0 0
        %4694 = vmatpush1.bf16.msra.mxu0 %v3330
        %4695 = vmatprep.subr.bf16.mxu0 0
        %4696 = vmatpush1.bf16.msra.mxu0 %v3331
        %4697 = vmatprep.subr.bf16.mxu0 0
        %4698 = vmatpush1.bf16.msra.mxu0 %v3332
        %4699 = vmatprep.subr.bf16.mxu0 0
        %4700 = vmatpush1.bf16.msra.mxu0 %v3333
        %4701 = vmatprep.subr.bf16.mxu0 0
        %4702 = vmatpush1.bf16.msra.mxu0 %v3334
        %4703 = vmatprep.subr.bf16.mxu0 0
        %4704 = vmatpush1.bf16.msra.mxu0 %v3335
        %4705 = vmatprep.subr.bf16.mxu0 0
        %4706 = vmatpush1.bf16.msra.mxu0 %v3336
        %4707 = vmatprep.subr.bf16.mxu0 0
        %4708 = vmatpush1.bf16.msra.mxu0 %v3337
        %4709 = vmatprep.subr.bf16.mxu0 0
        %4710 = vmatpush1.bf16.msra.mxu0 %v3338
        %4711 = vmatprep.subr.bf16.mxu0 0
        %4712 = vmatpush1.bf16.msra.mxu0 %v3339
        %4713 = vmatprep.subr.bf16.mxu0 0
        %4714 = vmatpush1.bf16.msra.mxu0 %v3340
        %4715 = vmatprep.subr.bf16.mxu0 0
        %4716 = vmatpush1.bf16.msra.mxu0 %v3341
        %4717 = vmatprep.subr.bf16.mxu0 0
        %4718 = vmatpush1.bf16.msra.mxu0 %v3342
        %4719 = vmatprep.mubr.bf16.mxu0 %v1181
        %4720 = vmatmul.mubr.bf16.gmra.mrb[0].mxu0 %v1180
        %v4721 = vpop.f32.mrb[0].mxu0
        %v4722 = vadd.f32 %v4657, %v4721
        %v4723 = vpop.f32.mrb[0].mxu0
        %v4724 = vpop.f32.mrb[0].mxu0
        %v4725 = vadd.f32 %v4660, %v4724
        %v4726 = vpop.f32.mrb[0].mxu0
        %4727 = vmatprep.mubr.bf16.mxu0 %v1185
        %4728 = vmatmul.mubr.bf16.gmra.mrb[0].mxu0 %v1184
        %v4729 = vpop.f32.mrb[0].mxu0
        %v4730 = vadd.f32 %v4665, %v4729
        %v4731 = vpop.f32.mrb[0].mxu0
        %v4732 = vpop.f32.mrb[0].mxu0
        %v4733 = vadd.f32 %v4668, %v4732
        %v4734 = vpop.f32.mrb[0].mxu0
        %4735 = vmatprep.mubr.bf16.mxu0 %v1189
        %4736 = vmatmul.mubr.bf16.gmra.mrb[0].mxu0 %v1188
        %v4737 = vpop.f32.mrb[0].mxu0
        %v4738 = vadd.f32 %v4673, %v4737
        %v4739 = vpop.f32.mrb[0].mxu0
        %v4740 = vpop.f32.mrb[0].mxu0
        %v4741 = vadd.f32 %v4676, %v4740
        %v4742 = vpop.f32.mrb[0].mxu0
        %4743 = vmatprep.mubr.bf16.mxu0 %v1329
        %4744 = vmatmul.mubr.bf16.gmra.mrb[0].mxu0 %v1328
        %v4745 = vpop.f32.mrb[0].mxu0
        %v4746 = vadd.f32 %v4681, %v4745
        %v4747 = vpop.f32.mrb[0].mxu0
        %v4748 = vpop.f32.mrb[0].mxu0
        %v4749 = vadd.f32 %v4684, %v4748
        %v4750 = vpop.f32.mrb[0].mxu0
        %4751 = vdwg.mxu0
        %4752 = vmatprep.subr.bf16.mxu0 0
        %4753 = vmatpush1.bf16.msra.mxu0 %v3343
        %4754 = vmatprep.subr.bf16.mxu0 0
        %4755 = vmatpush1.bf16.msra.mxu0 %v3344
        %4756 = vmatprep.subr.bf16.mxu0 0
        %4757 = vmatpush1.bf16.msra.mxu0 %v3345
        %4758 = vmatprep.subr.bf16.mxu0 0
        %4759 = vmatpush1.bf16.msra.mxu0 %v3346
        %4760 = vmatprep.subr.bf16.mxu0 0
        %4761 = vmatpush1.bf16.msra.mxu0 %v3347
        %4762 = vmatprep.subr.bf16.mxu0 0
        %4763 = vmatpush1.bf16.msra.mxu0 %v3348
        %4764 = vmatprep.subr.bf16.mxu0 0
        %4765 = vmatpush1.bf16.msra.mxu0 %v3349
        %4766 = vmatprep.subr.bf16.mxu0 0
        %4767 = vmatpush1.bf16.msra.mxu0 %v3350
        %4768 = vmatprep.subr.bf16.mxu0 0
        %4769 = vmatpush1.bf16.msra.mxu0 %v3351
        %4770 = vmatprep.subr.bf16.mxu0 0
        %4771 = vmatpush1.bf16.msra.mxu0 %v3352
        %4772 = vmatprep.subr.bf16.mxu0 0
        %4773 = vmatpush1.bf16.msra.mxu0 %v3353
        %4774 = vmatprep.subr.bf16.mxu0 0
        %4775 = vmatpush1.bf16.msra.mxu0 %v3354
        %4776 = vmatprep.subr.bf16.mxu0 0
        %4777 = vmatpush1.bf16.msra.mxu0 %v3355
        %4778 = vmatprep.subr.bf16.mxu0 0
        %4779 = vmatpush1.bf16.msra.mxu0 %v3356
        %4780 = vmatprep.subr.bf16.mxu0 0
        %4781 = vmatpush1.bf16.msra.mxu0 %v3357
        %4782 = vmatprep.subr.bf16.mxu0 0
        %4783 = vmatpush1.bf16.msra.mxu0 %v3358
        %4784 = vmatprep.mubr.bf16.mxu0 %v1183
        %4785 = vmatmul.mubr.bf16.gmra.mrb[0].mxu0 %v1182
        %v4786 = vpop.f32.mrb[0].mxu0
        %v4787 = vadd.f32 %v4722, %v4786
        %v4788 = vpop.f32.mrb[0].mxu0
        %v4789 = vpop.f32.mrb[0].mxu0
        %v4790 = vadd.f32 %v4725, %v4789
        %v4791 = vpop.f32.mrb[0].mxu0
        %4792 = vmatprep.mubr.bf16.mxu0 %v1187
        %4793 = vmatmul.mubr.bf16.gmra.mrb[0].mxu0 %v1186
        %v4794 = vpop.f32.mrb[0].mxu0
        %v4795 = vadd.f32 %v4730, %v4794
        %v4796 = vpop.f32.mrb[0].mxu0
        %v4797 = vpop.f32.mrb[0].mxu0
        %v4798 = vadd.f32 %v4733, %v4797
        %v4799 = vpop.f32.mrb[0].mxu0
        %4800 = vmatprep.mubr.bf16.mxu0 %v1191
        %4801 = vmatmul.mubr.bf16.gmra.mrb[0].mxu0 %v1190
        %v4802 = vpop.f32.mrb[0].mxu0
        %v4803 = vadd.f32 %v4738, %v4802
        %v4804 = vpop.f32.mrb[0].mxu0
        %v4805 = vpop.f32.mrb[0].mxu0
        %v4806 = vadd.f32 %v4741, %v4805
        %v4807 = vpop.f32.mrb[0].mxu0
        %4808 = vmatprep.mubr.bf16.mxu0 %v1331
        %4809 = vmatmul.mubr.bf16.gmra.mrb[0].mxu0 %v1330
        %v4810 = vpop.f32.mrb[0].mxu0
        %v4811 = vadd.f32 %v4746, %v4810
        %v4812 = vpop.f32.mrb[0].mxu0
        %v4813 = vpop.f32.mrb[0].mxu0
        %v4814 = vadd.f32 %v4749, %v4813
        %v4815 = vpop.f32.mrb[0].mxu0
        %4816 = vdwg.mxu0
        %4817 = vst [vmem:[%s215] sm:$0xff] %v4787
        %4818 = vst [vmem:[%s215 + $0x8] sm:$0xff] %v4790
        %4819 = vst [vmem:[%s215 + $0x10] sm:$0xff] %v4795
        %4820 = vst [vmem:[%s215 + $0x18] sm:$0xff] %v4798
        %4821 = vst [vmem:[%s215 + $0x20] sm:$0xff] %v4803
        %4822 = vst [vmem:[%s215 + $0x28] sm:$0xff] %v4806
        %4823 = vst [vmem:[%s215 + $0x30] sm:$0xff] %v4811
        %4824 = vst [vmem:[%s215 + $0x38] sm:$0xff] %v4814
        %s4825 = sand.u32 %s97, 1
        %s4826 = scalar_lea.sflag [#allocation4], %s4825
        %s4827 = sand.u32 %s97, 1
        %s4828 = smul.addr %s4827, 64
        %s4829 = scalar_lea.vmem [#allocation8], %s4828
        // Predicated region
        $region45: #{tpu_custom_call.1} parent=31 // pred_check
          %p4830 = pneg %p107
        $region46: #{tpu_custom_call.1} parent=31 // pred_check_branch
          %4832 = sbr.rel (%p4830) target = $region48
        $region47: #{tpu_custom_call.1} parent=31 // pred_region
          %s4834 = ssub.s32 1024, 1024
          %4835 = vsyncadd %s4826, %s4834
          %s4836 = smul.addr %s21, 8
          %s4837 = smul.addr %s4836, 128
          %s4838 = scalar_lea.hbm %s3, %s4837
          %s4839 = sshll.u32 %s4829, 4
          %s4840 = int_to_ptr.vmem [resolvable:$true] %s4839
          %4845 = dma.vmem_to_hbm [thread:$0]  %s4840, 1024, %s4838, %s4826, 128, 128, 8
        $region48: #{tpu_custom_call.1} parent=31 // pred_fallthru
          _
      $region32: #{tpu_custom_call.1} parent=5 // pred_fallthru
        _
      %p4846 = scmp.le.s32.totalorder 2, %s16
      // Predicated region
      $region49: #{tpu_custom_call.1} parent=5 // pred_check
        %p4847 = pneg %p4846
      $region50: #{tpu_custom_call.1} parent=5 // pred_check_branch
        %4849 = sbr.rel (%p4847) target = $region52
      $region51: #{tpu_custom_call.1} parent=5 // pred_region
        %s4850 = ssub.s32 %s16, 2
        // Predicated region
        $region53: #{tpu_custom_call.1} parent=51 // pred_check
          %p4851 = pneg %p113
        $region54: #{tpu_custom_call.1} parent=51 // pred_check_branch
          %4853 = sbr.rel (%p4851) target = $region56
        $region55: #{tpu_custom_call.1} parent=51 // pred_region
          %s4854 = sand.u32 %s98, 1
          %s4855 = scalar_lea.sflag [#allocation4], %s4854
          %s4856 = sand.u32 %s98, 1
          %s4857 = smul.addr %s4856, 64
          %s4858 = scalar_lea.vmem [#allocation8], %s4857
          %4859 = dma.done %s4855, 1024
        $region56: #{tpu_custom_call.1} parent=51 // pred_fallthru
          _
      $region52: #{tpu_custom_call.1} parent=5 // pred_fallthru
        _
    $region6: #{tpu_custom_call.1} parent=1 // loop_footer
      %s20 = sadd.s32 1, %s16
    $region7: #{tpu_custom_call.1} parent=1 // loop_footer_branch
      %15 = sbr.rel target = $region3
    $region8: #{tpu_custom_call.1} parent=1 // loop_exit
      _
    %4860 = vsyncpa [#allocation3], 1
    %s4861 = scalar_lea.sflag [#allocation3], 1
    %4862 = vsyncpa %s4861, 1
    %4863 = vsyncpa [#allocation6], 1
    %4864 = vsyncpa [#allocation4], 1
    %s4865 = scalar_lea.sflag [#allocation4], 1
    %4866 = vsyncpa %s4865, 1

</llo_original>
